<compile_context>
chip_gen: v6e
topology: v6e:2x2x1
jax: 0.10.0
libtpu: 0.0.40
codegen_flags: <defaults>
</compile_context>

<pallas_src>
import functools

import jax
import jax.numpy as jnp
from jax.experimental import pallas as pl
from jax.experimental.pallas import tpu as pltpu

IMAGENET_MEAN = jnp.array([0.485, 0.456, 0.406], dtype=jnp.float32)
IMAGENET_STD = jnp.array([0.229, 0.224, 0.225], dtype=jnp.float32)


def _round_up(x, m):
    return ((x + m - 1) // m) * m


def _loss_kernel(x_cur_ref, x_halo_ref, mask_ref, w_ref, b_ref, out_ref, *,
                 row_stride, chunk, n_out):
    # x_cur_ref : (1, 8, chunk)    flat window, channels = [pred RGB, gt RGB, 0, 0]
    # x_halo_ref: (1, 8, halo)     next 3 rows (conv halo), halo = 3*row_stride
    # mask_ref  : (1, chunk)       periodic row-validity mask (constant block)
    # w_ref     : (128, 72)        block-diagonal per-tap conv weights
    # b_ref     : (128, 1)         [bias; bias]
    # out_ref   : (1, 1, 64, 128)  lane-dense per-(batch, chunk) partial sums
    c = pl.program_id(1)

    win = jnp.concatenate([x_cur_ref[0], x_halo_ref[0]], axis=1)  # (8, chunk+halo)

    # Tap (kh, kw) of the 3x3 conv is a static lane shift of kh*row_stride+kw
    # in the flattened lane-padded image.  row_stride is a multiple of 128, so
    # the kh component is lane-block aligned; kw shifts are only 0/1/2 lanes.
    offs = [kh * row_stride + kw for kh in range(3) for kw in range(3)]
    patches = jnp.concatenate([win[:, o:o + chunk] for o in offs], axis=0)  # (72, chunk)

    # One MXU matmul: rows 0..63 = pred features, rows 64..127 = gt features.
    feat = jnp.dot(w_ref[...], patches.astype(w_ref.dtype),
                   preferred_element_type=jnp.float32)                      # (128, chunk)
    feat = jnp.maximum(feat + b_ref[...], 0.0)

    # Validity mask = periodic row mask (from VMEM-resident constant block)
    # * in-kernel tail mask (flat position < n_out), no mod/div needed.
    lane = jax.lax.broadcasted_iota(jnp.int32, (1, chunk), 1)
    tail = (lane < (n_out - c * chunk)).astype(jnp.float32)                 # (1, chunk)
    diff = jnp.abs(feat[:64, :] - feat[64:, :]) * (mask_ref[...] * tail)    # (64, chunk)

    # Lane-dense partial reduction: sum lane-aligned 128-wide column blocks
    # (pure vreg-column adds, tree order to shorten the dependency chain).
    parts = [diff[:, s * 128:(s + 1) * 128] for s in range(chunk // 128)]
    while len(parts) > 1:
        nxt = [parts[i] + parts[i + 1] for i in range(0, len(parts) - 1, 2)]
        if len(parts) % 2:
            nxt.append(parts[-1])
        parts = nxt
    out_ref[0, 0] = parts[0]                                                # (64, 128)


def perceptual_loss(pred_img, gt_img, conv_w, conv_b, *,
                    chunk_target=8192,          # 8192: safe on v5e/v7x; 16384 ok on v6e
                    use_bf16_matmul=False,      # True: ~3x MXU throughput (esp. v5e)
                    vmem_limit_bytes=None):
    """pred_img, gt_img: NCHW float32 [B, 3, H, W].
    conv_w: [64, 3, 3, 3] (O, I, KH, KW), conv_b: [64]."""
    B, C, H, W = pred_img.shape
    assert C == 3
    Hp, Wp = H + 2, W + 2
    Wr = _round_up(Wp, 128)                 # lane-aligned row stride

    # --- normalize, stack pred/gt, pad channels 6->8, zero-pad spatially -----
    mean = IMAGENET_MEAN.reshape(1, 3, 1, 1)
    std = IMAGENET_STD.reshape(1, 3, 1, 1)
    pred_n = (pred_img.astype(jnp.float32) - mean) / std
    gt_n = (gt_img.astype(jnp.float32) - mean) / std
    x = jnp.concatenate([pred_n, gt_n], axis=1)                     # (B, 6, H, W)
    # channel pad (+2 zeros), conv zero-pad (1 each side), row lane-pad to Wr
    x = jnp.pad(x, ((0, 0), (0, 2), (1, 1), (1, Wr - Wp + 1)))      # (B, 8, Hp, Wr)
    x = x.reshape(B, 8, Hp * Wr)

    # --- tiling of the flat output range [0, H*Wr) ---------------------------
    n_out = H * Wr                          # flat positions holding (masked) outputs
    halo = 3 * Wr                           # >= max tap offset 2*Wr+2; multiple of 128 & Wr
    chunk = max(halo, (chunk_target // halo) * halo)
    chunk = min(chunk, _round_up(n_out, halo))
    nc = -(-n_out // chunk)
    if B * nc < 2 and n_out > halo:         # give both v7x TensorCores work
        chunk = max(halo, _round_up(-(-n_out // 2), halo))
        nc = -(-n_out // chunk)
    L = nc * chunk + halo                   # every halo read stays in-bounds
    x = jnp.pad(x, ((0, 0), (0, 0), (0, L - Hp * Wr)))

    # Periodic row-validity mask: chunk % Wr == 0, so one period serves every
    # chunk; constant block index => fetched once, resident in VMEM.
    row_mask = ((jnp.arange(chunk, dtype=jnp.int32) % Wr) < W)
    row_mask = row_mask.astype(jnp.float32).reshape(1, chunk)

    # --- block-diagonal weights: tap-major, 8 channels per tap ---------------
    w9 = jnp.transpose(conv_w.astype(jnp.float32), (2, 3, 0, 1)).reshape(9, 64, 3)
    w9 = jnp.transpose(w9, (1, 0, 2))                               # (64, 9tap, 3in)
    w_big = jnp.zeros((128, 9, 8), jnp.float32)
    w_big = w_big.at[:64, :, 0:3].set(w9)                           # pred channels 0..2
    w_big = w_big.at[64:, :, 3:6].set(w9)                           # gt channels 3..5
    w_big = w_big.reshape(128, 72)
    if use_bf16_matmul:
        w_big = w_big.astype(jnp.bfloat16)
    b_big = jnp.concatenate([conv_b, conv_b]).astype(jnp.float32).reshape(128, 1)

    halo_mult = chunk // halo
    kernel = functools.partial(_loss_kernel, row_stride=Wr, chunk=chunk, n_out=n_out)

    partials = pl.pallas_call(
        kernel,
        out_shape=jax.ShapeDtypeStruct((B, nc, 64, 128), jnp.float32),
        grid=(B, nc),
        in_specs=[
            pl.BlockSpec((1, 8, chunk), lambda b, c: (b, 0, c)),
            pl.BlockSpec((1, 8, halo), lambda b, c: (b, 0, (c + 1) * halo_mult)),
            pl.BlockSpec((1, chunk), lambda b, c: (0, 0)),          # resident mask
            pl.BlockSpec((128, 72), lambda b, c: (0, 0)),           # resident weights
            pl.BlockSpec((128, 1), lambda b, c: (0, 0)),            # resident bias
        ],
        out_specs=pl.BlockSpec((1, 1, 64, 128), lambda b, c: (b, c, 0, 0)),
        compiler_params=pltpu.CompilerParams(
            dimension_semantics=("parallel", "parallel"),
            vmem_limit_bytes=vmem_limit_bytes),
    )(x, x, row_mask, w_big, b_big)

    inv_count = 1.0 / float(B * 64 * H * W)     # L1Loss(reduction='mean') denominator
    return jnp.sum(partials) * inv_count


def _reference_loss(pred_img, gt_img, conv_w, conv_b):
    """Pure-JAX reference (same math, plain XLA) for sanity checking."""
    def feat(xx):
        xn = (xx - IMAGENET_MEAN[None, :, None, None]) / IMAGENET_STD[None, :, None, None]
        y = jax.lax.conv_general_dilated(
            xn, conv_w, window_strides=(1, 1), padding=((1, 1), (1, 1)),
            dimension_numbers=("NCHW", "OIHW", "NCHW"))
        return jnp.maximum(y + conv_b[None, :, None, None], 0.0)
    return jnp.mean(jnp.abs(feat(pred_img) - feat(gt_img)))


if __name__ == "__main__":
    key = jax.random.PRNGKey(0)
    k1, k2, k3, k4 = jax.random.split(key, 4)

    B, C, H, W = 2, 3, 16, 16
    pred = jax.random.uniform(k1, (B, C, H, W), dtype=jnp.float32)
    gt = jax.random.uniform(k2, (B, C, H, W), dtype=jnp.float32)

    # Deterministic synthetic VGG19 first-layer parameters (not a checkpoint).
    # TODO(synk): torchvision's pretrained VGG19 weights are not loadable here.
    conv_w = 0.1 * jax.random.normal(k3, (64, 3, 3, 3), dtype=jnp.float32)
    conv_b = 0.05 * jax.random.normal(k4, (64,), dtype=jnp.float32)

    loss = perceptual_loss(pred, gt, conv_w, conv_b)
    jax.block_until_ready(loss)

    ref = _reference_loss(pred, gt, conv_w, conv_b)
    assert jnp.allclose(loss, ref, rtol=1e-4, atol=1e-5), (loss, ref)

    print("KERNEL_OK")
</pallas_src>

<mosaic_0001>
module attributes {stable_mosaic.version = 11 : i64} {
  func.func @_loss_kernel(%arg0: i32, %arg1: i32, %arg2: memref<1x8x2304xf32, #tpu.memory_space<vmem>>, %arg3: memref<1x8x384xf32, #tpu.memory_space<vmem>>, %arg4: memref<1x2304xf32, #tpu.memory_space<vmem>>, %arg5: memref<128x72xf32, #tpu.memory_space<vmem>>, %arg6: memref<128x1xf32, #tpu.memory_space<vmem>>, %arg7: memref<1x1x64x128xf32, #tpu.memory_space<vmem>>) attributes {dimension_semantics = [#tpu.dimension_semantics<parallel>, #tpu.dimension_semantics<parallel>], iteration_bounds = array<i64: 2, 1>, scalar_prefetch = 0 : i64, scratch_operands = 0 : i64, tpu.core_type = #tpu.core_type<tc>, window_params = [{transform_indices = @transform_0, window_bounds = array<i64: 1, 8, 2304>}, {transform_indices = @transform_1, window_bounds = array<i64: 1, 8, 384>}, {pipeline_mode = #tpu.pipeline_mode<synchronous>, transform_indices = @transform_2, window_bounds = array<i64: 1, 2304>}, {pipeline_mode = #tpu.pipeline_mode<synchronous>, transform_indices = @transform_3, window_bounds = array<i64: 128, 72>}, {pipeline_mode = #tpu.pipeline_mode<synchronous>, transform_indices = @transform_4, window_bounds = array<i64: 128, 1>}, {transform_indices = @transform_5, window_bounds = array<i64: 1, 1, 64, 128>}]} {
    %c0 = arith.constant 0 : index
    %c0_0 = arith.constant 0 : index
    %c0_1 = arith.constant 0 : index
    %0 = vector.load %arg2[%c0, %c0_0, %c0_1] : memref<1x8x2304xf32, #tpu.memory_space<vmem>>, vector<1x8x2304xf32>
    %1 = vector.shape_cast %0 : vector<1x8x2304xf32> to vector<8x2304xf32>
    %c0_2 = arith.constant 0 : index
    %c0_3 = arith.constant 0 : index
    %c0_4 = arith.constant 0 : index
    %2 = vector.load %arg3[%c0_2, %c0_3, %c0_4] : memref<1x8x384xf32, #tpu.memory_space<vmem>>, vector<1x8x384xf32>
    %3 = vector.shape_cast %2 : vector<1x8x384xf32> to vector<8x384xf32>
    %4 = tpu.concatenate %1, %3 in 1 : vector<8x2304xf32>, vector<8x384xf32> -> vector<8x2688xf32>
    %5 = vector.extract_strided_slice %4 {offsets = [0, 0], sizes = [8, 2304], strides = [1, 1]} : vector<8x2688xf32> to vector<8x2304xf32>
    %6 = vector.extract_strided_slice %4 {offsets = [0, 1], sizes = [8, 2304], strides = [1, 1]} : vector<8x2688xf32> to vector<8x2304xf32>
    %7 = vector.extract_strided_slice %4 {offsets = [0, 2], sizes = [8, 2304], strides = [1, 1]} : vector<8x2688xf32> to vector<8x2304xf32>
    %8 = vector.extract_strided_slice %4 {offsets = [0, 128], sizes = [8, 2304], strides = [1, 1]} : vector<8x2688xf32> to vector<8x2304xf32>
    %9 = vector.extract_strided_slice %4 {offsets = [0, 129], sizes = [8, 2304], strides = [1, 1]} : vector<8x2688xf32> to vector<8x2304xf32>
    %10 = vector.extract_strided_slice %4 {offsets = [0, 130], sizes = [8, 2304], strides = [1, 1]} : vector<8x2688xf32> to vector<8x2304xf32>
    %11 = vector.extract_strided_slice %4 {offsets = [0, 256], sizes = [8, 2304], strides = [1, 1]} : vector<8x2688xf32> to vector<8x2304xf32>
    %12 = vector.extract_strided_slice %4 {offsets = [0, 257], sizes = [8, 2304], strides = [1, 1]} : vector<8x2688xf32> to vector<8x2304xf32>
    %13 = vector.extract_strided_slice %4 {offsets = [0, 258], sizes = [8, 2304], strides = [1, 1]} : vector<8x2688xf32> to vector<8x2304xf32>
    %14 = tpu.concatenate %5, %6, %7, %8, %9, %10, %11, %12, %13 in 0 : vector<8x2304xf32>, vector<8x2304xf32>, vector<8x2304xf32>, vector<8x2304xf32>, vector<8x2304xf32>, vector<8x2304xf32>, vector<8x2304xf32>, vector<8x2304xf32>, vector<8x2304xf32> -> vector<72x2304xf32>
    %c0_5 = arith.constant 0 : index
    %c0_6 = arith.constant 0 : index
    %15 = vector.load %arg5[%c0_5, %c0_6] : memref<128x72xf32, #tpu.memory_space<vmem>>, vector<128x72xf32>
    %cst = arith.constant dense<0.000000e+00> : vector<128x2304xf32>
    %16 = tpu.matmul %15, %14, %cst {dimension_numbers = #tpu.dot_dimension_numbers<[1], [0], [0], [1], [0, 0, 1, 1], [], []>} : vector<128x72xf32>, vector<72x2304xf32>, vector<128x2304xf32> -> vector<128x2304xf32>
    %c0_7 = arith.constant 0 : index
    %c0_8 = arith.constant 0 : index
    %17 = vector.load %arg6[%c0_7, %c0_8] : memref<128x1xf32, #tpu.memory_space<vmem>>, vector<128x1xf32>
    %18 = vector.broadcast %17 : vector<128x1xf32> to vector<128x2304xf32>
    %19 = arith.addf %16, %18 : vector<128x2304xf32>
    %cst_9 = arith.constant 0.000000e+00 : f32
    %20 = vector.broadcast %cst_9 : f32 to vector<128x2304xf32>
    %21 = arith.maximumf %19, %20 : vector<128x2304xf32>
    %22 = tpu.iota {dimensions = array<i32: 1>} : vector<1x2304xi32>
    %c2304_i32 = arith.constant 2304 : i32
    %23 = arith.muli %arg1, %c2304_i32 : i32
    %c2048_i32 = arith.constant 2048 : i32
    %24 = arith.subi %c2048_i32, %23 : i32
    %25 = vector.broadcast %24 : i32 to vector<1x2304xi32>
    %26 = arith.cmpi slt, %22, %25 : vector<1x2304xi32>
    %27 = arith.extui %26 : vector<1x2304xi1> to vector<1x2304xi32>
    %28 = arith.sitofp %27 : vector<1x2304xi32> to vector<1x2304xf32>
    %29 = vector.extract_strided_slice %21 {offsets = [0, 0], sizes = [64, 2304], strides = [1, 1]} : vector<128x2304xf32> to vector<64x2304xf32>
    %30 = vector.extract_strided_slice %21 {offsets = [64, 0], sizes = [64, 2304], strides = [1, 1]} : vector<128x2304xf32> to vector<64x2304xf32>
    %31 = arith.subf %29, %30 : vector<64x2304xf32>
    %32 = math.absf %31 : vector<64x2304xf32>
    %c0_10 = arith.constant 0 : index
    %c0_11 = arith.constant 0 : index
    %33 = vector.load %arg4[%c0_10, %c0_11] : memref<1x2304xf32, #tpu.memory_space<vmem>>, vector<1x2304xf32>
    %34 = arith.mulf %33, %28 : vector<1x2304xf32>
    %35 = vector.broadcast %34 : vector<1x2304xf32> to vector<64x2304xf32>
    %36 = arith.mulf %32, %35 : vector<64x2304xf32>
    %37 = vector.extract_strided_slice %36 {offsets = [0, 0], sizes = [64, 128], strides = [1, 1]} : vector<64x2304xf32> to vector<64x128xf32>
    %38 = vector.extract_strided_slice %36 {offsets = [0, 128], sizes = [64, 128], strides = [1, 1]} : vector<64x2304xf32> to vector<64x128xf32>
    %39 = vector.extract_strided_slice %36 {offsets = [0, 256], sizes = [64, 128], strides = [1, 1]} : vector<64x2304xf32> to vector<64x128xf32>
    %40 = vector.extract_strided_slice %36 {offsets = [0, 384], sizes = [64, 128], strides = [1, 1]} : vector<64x2304xf32> to vector<64x128xf32>
    %41 = vector.extract_strided_slice %36 {offsets = [0, 512], sizes = [64, 128], strides = [1, 1]} : vector<64x2304xf32> to vector<64x128xf32>
    %42 = vector.extract_strided_slice %36 {offsets = [0, 640], sizes = [64, 128], strides = [1, 1]} : vector<64x2304xf32> to vector<64x128xf32>
    %43 = vector.extract_strided_slice %36 {offsets = [0, 768], sizes = [64, 128], strides = [1, 1]} : vector<64x2304xf32> to vector<64x128xf32>
    %44 = vector.extract_strided_slice %36 {offsets = [0, 896], sizes = [64, 128], strides = [1, 1]} : vector<64x2304xf32> to vector<64x128xf32>
    %45 = vector.extract_strided_slice %36 {offsets = [0, 1024], sizes = [64, 128], strides = [1, 1]} : vector<64x2304xf32> to vector<64x128xf32>
    %46 = vector.extract_strided_slice %36 {offsets = [0, 1152], sizes = [64, 128], strides = [1, 1]} : vector<64x2304xf32> to vector<64x128xf32>
    %47 = vector.extract_strided_slice %36 {offsets = [0, 1280], sizes = [64, 128], strides = [1, 1]} : vector<64x2304xf32> to vector<64x128xf32>
    %48 = vector.extract_strided_slice %36 {offsets = [0, 1408], sizes = [64, 128], strides = [1, 1]} : vector<64x2304xf32> to vector<64x128xf32>
    %49 = vector.extract_strided_slice %36 {offsets = [0, 1536], sizes = [64, 128], strides = [1, 1]} : vector<64x2304xf32> to vector<64x128xf32>
    %50 = vector.extract_strided_slice %36 {offsets = [0, 1664], sizes = [64, 128], strides = [1, 1]} : vector<64x2304xf32> to vector<64x128xf32>
    %51 = vector.extract_strided_slice %36 {offsets = [0, 1792], sizes = [64, 128], strides = [1, 1]} : vector<64x2304xf32> to vector<64x128xf32>
    %52 = vector.extract_strided_slice %36 {offsets = [0, 1920], sizes = [64, 128], strides = [1, 1]} : vector<64x2304xf32> to vector<64x128xf32>
    %53 = vector.extract_strided_slice %36 {offsets = [0, 2048], sizes = [64, 128], strides = [1, 1]} : vector<64x2304xf32> to vector<64x128xf32>
    %54 = vector.extract_strided_slice %36 {offsets = [0, 2176], sizes = [64, 128], strides = [1, 1]} : vector<64x2304xf32> to vector<64x128xf32>
    %55 = arith.addf %37, %38 : vector<64x128xf32>
    %56 = arith.addf %39, %40 : vector<64x128xf32>
    %57 = arith.addf %41, %42 : vector<64x128xf32>
    %58 = arith.addf %43, %44 : vector<64x128xf32>
    %59 = arith.addf %45, %46 : vector<64x128xf32>
    %60 = arith.addf %47, %48 : vector<64x128xf32>
    %61 = arith.addf %49, %50 : vector<64x128xf32>
    %62 = arith.addf %51, %52 : vector<64x128xf32>
    %63 = arith.addf %53, %54 : vector<64x128xf32>
    %64 = arith.addf %55, %56 : vector<64x128xf32>
    %65 = arith.addf %57, %58 : vector<64x128xf32>
    %66 = arith.addf %59, %60 : vector<64x128xf32>
    %67 = arith.addf %61, %62 : vector<64x128xf32>
    %68 = arith.addf %64, %65 : vector<64x128xf32>
    %69 = arith.addf %66, %67 : vector<64x128xf32>
    %70 = arith.addf %68, %69 : vector<64x128xf32>
    %71 = arith.addf %70, %63 : vector<64x128xf32>
    %c0_12 = arith.constant 0 : index
    %c0_13 = arith.constant 0 : index
    %c0_14 = arith.constant 0 : index
    %c0_15 = arith.constant 0 : index
    %72 = vector.load %arg7[%c0_12, %c0_13, %c0_14, %c0_15] : memref<1x1x64x128xf32, #tpu.memory_space<vmem>>, vector<1x1x64x128xf32>
    %73 = vector.shape_cast %72 : vector<1x1x64x128xf32> to vector<64x128xf32>
    %74 = vector.shape_cast %71 : vector<64x128xf32> to vector<1x1x64x128xf32>
    tpu.vector_store %arg7[%c0_12, %c0_13, %c0_14, %c0_15], %74 {strides = array<i32>} : memref<1x1x64x128xf32, #tpu.memory_space<vmem>>, vector<1x1x64x128xf32>,
    return
  }
  func.func @transform_0(%arg0: i32, %arg1: i32) -> (i32, i32, i32) {
    %c0_i32 = arith.constant 0 : i32
    %c0_i32_0 = arith.constant 0 : i32
    return %arg0, %c0_i32, %arg1 : i32, i32, i32
  }
  func.func @transform_1(%arg0: i32, %arg1: i32) -> (i32, i32, i32) {
    %c1_i32 = arith.constant 1 : i32
    %0 = arith.addi %arg1, %c1_i32 : i32
    %c6_i32 = arith.constant 6 : i32
    %1 = arith.muli %0, %c6_i32 : i32
    %c0_i32 = arith.constant 0 : i32
    %c0_i32_0 = arith.constant 0 : i32
    return %arg0, %c0_i32, %1 : i32, i32, i32
  }
  func.func @transform_2(%arg0: i32, %arg1: i32) -> (i32, i32) {
    %c0_i32 = arith.constant 0 : i32
    %c0_i32_0 = arith.constant 0 : i32
    %c0_i32_1 = arith.constant 0 : i32
    return %c0_i32, %c0_i32_0 : i32, i32
  }
  func.func @transform_3(%arg0: i32, %arg1: i32) -> (i32, i32) {
    %c0_i32 = arith.constant 0 : i32
    %c0_i32_0 = arith.constant 0 : i32
    %c0_i32_1 = arith.constant 0 : i32
    return %c0_i32, %c0_i32_0 : i32, i32
  }
  func.func @transform_4(%arg0: i32, %arg1: i32) -> (i32, i32) {
    %c0_i32 = arith.constant 0 : i32
    %c0_i32_0 = arith.constant 0 : i32
    %c0_i32_1 = arith.constant 0 : i32
    return %c0_i32, %c0_i32_0 : i32, i32
  }
  func.func @transform_5(%arg0: i32, %arg1: i32) -> (i32, i32, i32, i32) {
    %c0_i32 = arith.constant 0 : i32
    %c0_i32_0 = arith.constant 0 : i32
    %c0_i32_1 = arith.constant 0 : i32
    return %arg0, %arg1, %c0_i32, %c0_i32_0 : i32, i32, i32, i32
  }
}

</mosaic_0001>

<llo_original>
// kernel: tpu_custom_call.1
$region0: #{tpu_custom_call.1}
  #allocation0 [shape = 'u32[]', space=smem, size = 0x4, offset = 0x4, fixed_abs, tag = 'smem constant byte address 0x4 - core index']
  #allocation1 [shape = 'u32[144,128]{1,0:T(1,128)}', space=vmem, size = 0x12000, scoped, tag = 'internal scratch']
  %s0 = inlined_call_operand.hbm [shape: f32[2,8,2688], index: 0, kind: input, shape index: {}]
  %s1 = inlined_call_operand.hbm [shape: f32[2,8,2688], index: 1, kind: input, shape index: {}]
  %s2 = inlined_call_operand.vmem [shape: f32[1,2304], index: 2, kind: input, shape index: {}]
  %s3 = inlined_call_operand.vmem [shape: f32[128,72], index: 3, kind: input, shape index: {}]
  %s4 = inlined_call_operand.vmem [shape: f32[128,1], index: 4, kind: input, shape index: {}]
  %s5 = inlined_call_operand.hbm [shape: f32[2,1,64,128], index: 5, kind: output, shape index: {}]
  %s6 = sld [smem:[#allocation0]]
  $region61: #{tpu_custom_call.1} parent=0
    _
  %s8 = ssub.s32 1, %s6
  %s9 = scalar_select 0, %s8, %s6
  $region1: #{tpu_custom_call.1} parent=0
    #allocation2 [shape = 'u8[147456]{0}', space=vmem, size = 0x24000, scoped, tag = 'input window, operand 0']
    #allocation3 [shape = 's32[2]{0}', space=sflag, size = 0x8, scoped, tag = 'scoped memory for tpu_custom_call.1']
    #allocation4 [shape = 's32[2]{0}', space=sflag, size = 0x8, scoped, tag = 'scoped memory for tpu_custom_call.1']
    #allocation5 [shape = 'u8[24576]{0}', space=vmem, size = 0x6000, scoped, tag = 'input window, operand 1']
    #allocation6 [shape = 's32[2]{0}', space=sflag, size = 0x8, scoped, tag = 'scoped memory for tpu_custom_call.1']
    #allocation7 [shape = 'u8[65536]{0}', space=vmem, size = 0x10000, scoped, tag = 'output window, operand 0']
    %10 = vsyncpa [#allocation3], 0
    %s11 = scalar_lea.sflag [#allocation3], 1
    %12 = vsyncpa %s11, 0
    %13 = vsyncpa [#allocation6], 0
    %s14 = scalar_lea.sflag [#allocation6], 1
    %15 = vsyncpa %s14, 0
    %16 = vsyncpa [#allocation4], 0
    %s17 = scalar_lea.sflag [#allocation4], 1
    %18 = vsyncpa %s17, 0
    loop: start=0, step=1, limit=4
    $region2: #{tpu_custom_call.1} parent=1 // loop_pre_header
      _
    $region3: #{tpu_custom_call.1} parent=1 // loop_header
      %s20 = sphi 0, %s24
      %p21 = scmp.ge.s32.totalorder %s20, 4
      %s27 = sphi 0, %s39
      %s28 = sphi 0, %s35
      %s29 = sphi 0, %s27
      %s30 = sphi 0, %s28
      %s31 = sphi 0, %s29
      %s32 = sphi 0, %s30
      %s44 = sphi 0, %s46
      %s47 = sphi 0, %s44
      %s48 = sphi 0, %s47
      %s64 = sphi 0, %s48
      %s76 = sphi 0, %s78
      %s79 = sphi 0, %s76
      %s80 = sphi 0, %s79
      %s96 = sphi 0, %s80
      %s100 = sphi 0, %s100
      %s102 = sphi 0, %s100
      %s103 = sphi 0, %s102
      %s117 = sphi 0, %s103
      %s121 = sphi 0, %s121
      %s123 = sphi 0, %s121
      %s124 = sphi 0, %s123
      %s138 = sphi 0, %s124
      %s142 = sphi 0, %s142
      %s144 = sphi 0, %s142
      %s145 = sphi 0, %s144
      %s159 = sphi 0, %s145
      %s167 = sphi 0, %s169
      %s170 = sphi 0, %s167
      %s171 = sphi 0, %s170
      %s187 = sphi 0, %s171
    $region4: #{tpu_custom_call.1} parent=1 // loop_header_branch
      %23 = sbr.rel (%p21) target = $region8
    $region5: #{tpu_custom_call.1} parent=1 // loop_body
      %s25 = ssub.s32 %s20, 1
      %s26 = ssub.s32 %s20, 2
      %s33 = sadd.s32 1, %s28
      %p34 = scmp.ge.s32.totalorder %s33, 1
      %s35 = scalar_select %p34, 0, %s33
      %s36 = sadd.s32 1, %s27
      %s37 = scalar_select %p34, %s36, %s27
      %p38 = scmp.ge.s32.totalorder %s37, 2
      %s39 = scalar_select %p38, 0, %s37
      %s40 = ssub.s32 %s27, %s39
      %s41 = ssub.s32 %s28, %s35
      %s42 = sor.u32 %s40, %s41
      %p43 = scmp.eq.s32.totalorder %s42, 0
      %s45 = sadd.s32 %s44, 1
      %s46 = scalar_select %p43, %s44, %s45
      %p49 = pneg %p43
      %p50 = scmp.eq.s32.totalorder %s20, 1
      %p51 = por %p49, %p50
      %p52 = scmp.ne.s32.totalorder %s44, %s47
      %p53 = scmp.eq.s32.totalorder %s20, 0
      %p54 = por %p52, %p53
      %p55 = scmp.ne.s32.totalorder %s44, %s47
      %p56 = scmp.eq.s32.totalorder %s25, 1
      %p57 = por %p55, %p56
      %p58 = scmp.ne.s32.totalorder %s47, %s48
      %p59 = scmp.eq.s32.totalorder %s25, 0
      %p60 = por %p58, %p59
      %p61 = scmp.ne.s32.totalorder %s47, %s48
      %p62 = scmp.eq.s32.totalorder %s26, 1
      %p63 = por %p61, %p62
      %p65 = scmp.ne.s32.totalorder %s48, %s64
      %p66 = scmp.eq.s32.totalorder %s26, 0
      %p67 = por %p65, %p66
      %s68 = sadd.s32 %s28, 1
      %s69 = smul.u32 %s68, 6
      %s70 = sadd.s32 %s35, 1
      %s71 = smul.u32 %s70, 6
      %s72 = ssub.s32 %s27, %s39
      %s73 = ssub.s32 %s69, %s71
      %s74 = sor.u32 %s72, %s73
      %p75 = scmp.eq.s32.totalorder %s74, 0
      %s77 = sadd.s32 %s76, 1
      %s78 = scalar_select %p75, %s76, %s77
      %p81 = pneg %p75
      %p82 = scmp.eq.s32.totalorder %s20, 1
      %p83 = por %p81, %p82
      %p84 = scmp.ne.s32.totalorder %s76, %s79
      %p85 = scmp.eq.s32.totalorder %s20, 0
      %p86 = por %p84, %p85
      %p87 = scmp.ne.s32.totalorder %s76, %s79
      %p88 = scmp.eq.s32.totalorder %s25, 1
      %p89 = por %p87, %p88
      %p90 = scmp.ne.s32.totalorder %s79, %s80
      %p91 = scmp.eq.s32.totalorder %s25, 0
      %p92 = por %p90, %p91
      %p93 = scmp.ne.s32.totalorder %s79, %s80
      %p94 = scmp.eq.s32.totalorder %s26, 1
      %p95 = por %p93, %p94
      %p97 = scmp.ne.s32.totalorder %s80, %s96
      %p98 = scmp.eq.s32.totalorder %s26, 0
      %p99 = por %p97, %p98
      %s101 = sadd.s32 %s100, 1
      %p104 = scmp.eq.s32.totalorder %s20, 1
      %p105 = scmp.ne.s32.totalorder %s100, %s102
      %p106 = scmp.eq.s32.totalorder %s20, 0
      %p107 = por %p105, %p106
      %p108 = scmp.ne.s32.totalorder %s100, %s102
      %p109 = scmp.eq.s32.totalorder %s25, 1
      %p110 = por %p108, %p109
      %p111 = scmp.ne.s32.totalorder %s102, %s103
      %p112 = scmp.eq.s32.totalorder %s25, 0
      %p113 = por %p111, %p112
      %p114 = scmp.ne.s32.totalorder %s102, %s103
      %p115 = scmp.eq.s32.totalorder %s26, 1
      %p116 = por %p114, %p115
      %p118 = scmp.ne.s32.totalorder %s103, %s117
      %p119 = scmp.eq.s32.totalorder %s26, 0
      %p120 = por %p118, %p119
      %s122 = sadd.s32 %s121, 1
      %p125 = scmp.eq.s32.totalorder %s20, 1
      %p126 = scmp.ne.s32.totalorder %s121, %s123
      %p127 = scmp.eq.s32.totalorder %s20, 0
      %p128 = por %p126, %p127
      %p129 = scmp.ne.s32.totalorder %s121, %s123
      %p130 = scmp.eq.s32.totalorder %s25, 1
      %p131 = por %p129, %p130
      %p132 = scmp.ne.s32.totalorder %s123, %s124
      %p133 = scmp.eq.s32.totalorder %s25, 0
      %p134 = por %p132, %p133
      %p135 = scmp.ne.s32.totalorder %s123, %s124
      %p136 = scmp.eq.s32.totalorder %s26, 1
      %p137 = por %p135, %p136
      %p139 = scmp.ne.s32.totalorder %s124, %s138
      %p140 = scmp.eq.s32.totalorder %s26, 0
      %p141 = por %p139, %p140
      %s143 = sadd.s32 %s142, 1
      %p146 = scmp.eq.s32.totalorder %s20, 1
      %p147 = scmp.ne.s32.totalorder %s142, %s144
      %p148 = scmp.eq.s32.totalorder %s20, 0
      %p149 = por %p147, %p148
      %p150 = scmp.ne.s32.totalorder %s142, %s144
      %p151 = scmp.eq.s32.totalorder %s25, 1
      %p152 = por %p150, %p151
      %p153 = scmp.ne.s32.totalorder %s144, %s145
      %p154 = scmp.eq.s32.totalorder %s25, 0
      %p155 = por %p153, %p154
      %p156 = scmp.ne.s32.totalorder %s144, %s145
      %p157 = scmp.eq.s32.totalorder %s26, 1
      %p158 = por %p156, %p157
      %p160 = scmp.ne.s32.totalorder %s145, %s159
      %p161 = scmp.eq.s32.totalorder %s26, 0
      %p162 = por %p160, %p161
      %s163 = ssub.s32 %s27, %s39
      %s164 = ssub.s32 %s28, %s35
      %s165 = sor.u32 %s163, %s164
      %p166 = scmp.eq.s32.totalorder %s165, 0
      %s168 = sadd.s32 %s167, 1
      %s169 = scalar_select %p166, %s167, %s168
      %p172 = pneg %p166
      %p173 = scmp.eq.s32.totalorder %s20, 1
      %p174 = por %p172, %p173
      %p175 = scmp.ne.s32.totalorder %s167, %s170
      %p176 = scmp.eq.s32.totalorder %s20, 0
      %p177 = por %p175, %p176
      %p178 = scmp.ne.s32.totalorder %s167, %s170
      %p179 = scmp.eq.s32.totalorder %s25, 1
      %p180 = por %p178, %p179
      %p181 = scmp.ne.s32.totalorder %s170, %s171
      %p182 = scmp.eq.s32.totalorder %s25, 0
      %p183 = por %p181, %p182
      %p184 = scmp.ne.s32.totalorder %s170, %s171
      %p185 = scmp.eq.s32.totalorder %s26, 1
      %p186 = por %p184, %p185
      %p188 = scmp.ne.s32.totalorder %s171, %s187
      %p189 = scmp.eq.s32.totalorder %s26, 0
      %p190 = por %p188, %p189
      %p191 = scmp.le.s32.totalorder 1, %s20
      %p192 = scmp.lt.s32.totalorder %s20, 3
      %p193 = pnand %p191, %p192
      %p194 = pneg %p193
      // Predicated region
      $region9: #{tpu_custom_call.1} parent=5 // pred_check
        _
      $region10: #{tpu_custom_call.1} parent=5 // pred_check_branch
        %196 = sbr.rel (%p193) target = $region12
      $region11: #{tpu_custom_call.1} parent=5 // pred_region
        %s197 = ssub.s32 %s20, 1
        // Predicated region
        $region13: #{tpu_custom_call.1} parent=11 // pred_check
          %p198 = pneg %p113
        $region14: #{tpu_custom_call.1} parent=11 // pred_check_branch
          %200 = sbr.rel (%p198) target = $region16
        $region15: #{tpu_custom_call.1} parent=11 // pred_region
          _
        $region16: #{tpu_custom_call.1} parent=11 // pred_fallthru
          _
        // Predicated region
        $region17: #{tpu_custom_call.1} parent=11 // pred_check
          %p201 = pneg %p134
        $region18: #{tpu_custom_call.1} parent=11 // pred_check_branch
          %203 = sbr.rel (%p201) target = $region20
        $region19: #{tpu_custom_call.1} parent=11 // pred_region
          _
        $region20: #{tpu_custom_call.1} parent=11 // pred_fallthru
          _
        // Predicated region
        $region21: #{tpu_custom_call.1} parent=11 // pred_check
          %p204 = pneg %p155
        $region22: #{tpu_custom_call.1} parent=11 // pred_check_branch
          %206 = sbr.rel (%p204) target = $region24
        $region23: #{tpu_custom_call.1} parent=11 // pred_region
          _
        $region24: #{tpu_custom_call.1} parent=11 // pred_fallthru
          _
      $region12: #{tpu_custom_call.1} parent=5 // pred_fallthru
        _
      %p207 = scmp.lt.s32.totalorder %s20, 2
      // Predicated region
      $region25: #{tpu_custom_call.1} parent=5 // pred_check
        %p208 = pneg %p207
      $region26: #{tpu_custom_call.1} parent=5 // pred_check_branch
        %210 = sbr.rel (%p208) target = $region28
      $region27: #{tpu_custom_call.1} parent=5 // pred_region
        // Predicated region
        $region29: #{tpu_custom_call.1} parent=27 // pred_check
          %p211 = pneg %p54
        $region30: #{tpu_custom_call.1} parent=27 // pred_check_branch
          %213 = sbr.rel (%p211) target = $region32
        $region31: #{tpu_custom_call.1} parent=27 // pred_region
          %s214 = sand.u32 %s44, 1
          %s215 = scalar_lea.sflag [#allocation3], %s214
          %s216 = sand.u32 %s44, 1
          %s217 = smul.addr %s216, 144
          %s218 = scalar_lea.vmem [#allocation2], %s217
          %s219 = smul.u32 18, %s28
          %s220 = ssub.s32 21, %s219
          %p221 = scmp.lt.s32.totalorder %s220, 18
          %s222 = scalar_select %p221, %s220, 18
          %s223 = smul.u32 128, %s222
          %s225 = ssub.s32 2304, %s223
          %226 = vsyncadd %s215, %s225
          %p227 = scmp.ne.s32.totalorder 0, %s223
          %s228 = smul.addr %s27, 21
          %s229 = sadd.s32 %s219, %s228
          %s230 = smul.addr %s229, 128
          %s231 = scalar_lea.hbm %s0, %s230
          %s232 = smul.u32 %s222, 8
          %s233 = sshll.u32 %s232, 4
          %s234 = sshll.u32 %s218, 4
          %s235 = int_to_ptr.vmem [resolvable:$true] %s234
          %237 = dma.hbm_to_vmem [thread:$0]  (%p227), %s231, %s233, %s235, %s215
        $region32: #{tpu_custom_call.1} parent=27 // pred_fallthru
          _
        // Predicated region
        $region33: #{tpu_custom_call.1} parent=27 // pred_check
          %p238 = pneg %p86
        $region34: #{tpu_custom_call.1} parent=27 // pred_check_branch
          %240 = sbr.rel (%p238) target = $region36
        $region35: #{tpu_custom_call.1} parent=27 // pred_region
          %s241 = sand.u32 %s76, 1
          %s242 = scalar_lea.sflag [#allocation6], %s241
          %s243 = sand.u32 %s76, 1
          %s244 = smul.addr %s243, 24
          %s245 = scalar_lea.vmem [#allocation5], %s244
          %s246 = sadd.s32 %s28, 1
          %s247 = smul.u32 %s246, 6
          %s248 = smul.u32 3, %s247
          %s250 = ssub.s32 384, 384
          %251 = vsyncadd %s242, %s250
          %s252 = smul.addr %s27, 21
          %s253 = sadd.s32 %s248, %s252
          %s254 = smul.addr %s253, 128
          %s255 = scalar_lea.hbm %s1, %s254
          %s257 = sshll.u32 %s245, 4
          %s258 = int_to_ptr.vmem [resolvable:$true] %s257
          %260 = dma.hbm_to_vmem [thread:$0]  %s255, 384, %s258, %s242
        $region36: #{tpu_custom_call.1} parent=27 // pred_fallthru
          _
      $region28: #{tpu_custom_call.1} parent=5 // pred_fallthru
        _
      %p261 = scmp.le.s32.totalorder 1, %s20
      %p262 = scmp.lt.s32.totalorder %s20, 3
      %p263 = pnand %p261, %p262
      %p264 = pneg %p263
      // Predicated region
      $region37: #{tpu_custom_call.1} parent=5 // pred_check
        _
      $region38: #{tpu_custom_call.1} parent=5 // pred_check_branch
        %266 = sbr.rel (%p263) target = $region40
      $region39: #{tpu_custom_call.1} parent=5 // pred_region
        %s267 = ssub.s32 %s20, 1
        %s268 = sand.u32 %s47, 1
        %s269 = scalar_lea.sflag [#allocation3], %s268
        %s270 = sand.u32 %s47, 1
        %s271 = smul.addr %s270, 144
        %s272 = scalar_lea.vmem [#allocation2], %s271
        // Predicated region
        $region41: #{tpu_custom_call.1} parent=39 // pred_check
          %p273 = pneg %p60
        $region42: #{tpu_custom_call.1} parent=39 // pred_check_branch
          %275 = sbr.rel (%p273) target = $region44
        $region43: #{tpu_custom_call.1} parent=39 // pred_region
          %276 = dma.done %s269, 2304
        $region44: #{tpu_custom_call.1} parent=39 // pred_fallthru
          _
        %s277 = sand.u32 %s79, 1
        %s278 = scalar_lea.sflag [#allocation6], %s277
        %s279 = sand.u32 %s79, 1
        %s280 = smul.addr %s279, 24
        %s281 = scalar_lea.vmem [#allocation5], %s280
        // Predicated region
        $region45: #{tpu_custom_call.1} parent=39 // pred_check
          %p282 = pneg %p92
        $region46: #{tpu_custom_call.1} parent=39 // pred_check_branch
          %284 = sbr.rel (%p282) target = $region48
        $region47: #{tpu_custom_call.1} parent=39 // pred_region
          %285 = dma.done %s278, 384
        $region48: #{tpu_custom_call.1} parent=39 // pred_fallthru
          _
        %s286 = sand.u32 %s47, 1
        %s287 = scalar_lea.sflag [#allocation3], %s286
        %s288 = sand.u32 %s47, 1
        %s289 = smul.addr %s288, 144
        %s290 = scalar_lea.vmem [#allocation2], %s289
        %p291 = pneg %p60
        %p292 = pneg %p57
        %s293 = sand.u32 %s79, 1
        %s294 = scalar_lea.sflag [#allocation6], %s293
        %s295 = sand.u32 %s79, 1
        %s296 = smul.addr %s295, 24
        %s297 = scalar_lea.vmem [#allocation5], %s296
        %p298 = pneg %p92
        %p299 = pneg %p89
        %p300 = pneg %p113
        %p301 = pneg %p110
        %p302 = pneg %p134
        %p303 = pneg %p131
        %p304 = pneg %p155
        %p305 = pneg %p152
        %p306 = pneg %p183
        %p307 = pneg %p180
        %s308 = sand.u32 %s170, 1
        %s309 = scalar_lea.sflag [#allocation4], %s308
        %s310 = sand.u32 %s170, 1
        %s311 = smul.addr %s310, 64
        %s312 = scalar_lea.vmem [#allocation7], %s311
        %s313 = smul.u32 18, %s30
        %s314 = ssub.s32 21, %s313
        %p315 = scmp.lt.s32.totalorder %s314, 18
        %s316 = scalar_select %p315, %s314, 18
        %s317 = smul.u32 128, %s316
        %s318 = sadd.s32 %s30, 1
        %s319 = smul.u32 %s318, 6
        %s320 = smul.u32 3, %s319
        %v321 = vld [vmem:[%s272] sm:$0xff]
        %v322 = vld [vmem:[%s272 + $0x8] sm:$0xff]
        %v323 = vld [vmem:[%s272 + $0x10] sm:$0xff]
        %v324 = vld [vmem:[%s272 + $0x18] sm:$0xff]
        %v325 = vld [vmem:[%s272 + $0x20] sm:$0xff]
        %v326 = vld [vmem:[%s272 + $0x28] sm:$0xff]
        %v327 = vld [vmem:[%s272 + $0x30] sm:$0xff]
        %v328 = vld [vmem:[%s272 + $0x38] sm:$0xff]
        %v329 = vld [vmem:[%s272 + $0x40] sm:$0xff]
        %v330 = vld [vmem:[%s272 + $0x48] sm:$0xff]
        %v331 = vld [vmem:[%s272 + $0x50] sm:$0xff]
        %v332 = vld [vmem:[%s272 + $0x58] sm:$0xff]
        %v333 = vld [vmem:[%s272 + $0x60] sm:$0xff]
        %v334 = vld [vmem:[%s272 + $0x68] sm:$0xff]
        %v335 = vld [vmem:[%s272 + $0x70] sm:$0xff]
        %v336 = vld [vmem:[%s272 + $0x78] sm:$0xff]
        %v337 = vld [vmem:[%s272 + $0x80] sm:$0xff]
        %v338 = vld [vmem:[%s272 + $0x88] sm:$0xff]
        %v339 = vld [vmem:[%s281] sm:$0xff]
        %v340 = vld [vmem:[%s281 + $0x8] sm:$0xff]
        %v341 = vld [vmem:[%s281 + $0x10] sm:$0xff]
        %361 = vrot.lane.b32.xlu0 %v321, 127
        %v362 = vpop.permute.xlu0 %361
        %363 = vrot.lane.b32.xlu0 %v322, 127
        %v364 = vpop.permute.xlu0 %363
        %365 = vrot.lane.b32.xlu0 %v323, 127
        %v366 = vpop.permute.xlu0 %365
        %367 = vrot.lane.b32.xlu0 %v324, 127
        %v368 = vpop.permute.xlu0 %367
        %369 = vrot.lane.b32.xlu0 %v325, 127
        %v370 = vpop.permute.xlu0 %369
        %371 = vrot.lane.b32.xlu0 %v326, 127
        %v372 = vpop.permute.xlu0 %371
        %373 = vrot.lane.b32.xlu0 %v327, 127
        %v374 = vpop.permute.xlu0 %373
        %375 = vrot.lane.b32.xlu0 %v328, 127
        %v376 = vpop.permute.xlu0 %375
        %377 = vrot.lane.b32.xlu0 %v329, 127
        %v378 = vpop.permute.xlu0 %377
        %379 = vrot.lane.b32.xlu0 %v330, 127
        %v380 = vpop.permute.xlu0 %379
        %381 = vrot.lane.b32.xlu0 %v331, 127
        %v382 = vpop.permute.xlu0 %381
        %383 = vrot.lane.b32.xlu0 %v332, 127
        %v384 = vpop.permute.xlu0 %383
        %385 = vrot.lane.b32.xlu0 %v333, 127
        %v386 = vpop.permute.xlu0 %385
        %387 = vrot.lane.b32.xlu0 %v334, 127
        %v388 = vpop.permute.xlu0 %387
        %389 = vrot.lane.b32.xlu0 %v335, 127
        %v390 = vpop.permute.xlu0 %389
        %391 = vrot.lane.b32.xlu0 %v336, 127
        %v392 = vpop.permute.xlu0 %391
        %393 = vrot.lane.b32.xlu0 %v337, 127
        %v394 = vpop.permute.xlu0 %393
        %395 = vrot.lane.b32.xlu0 %v338, 127
        %v396 = vpop.permute.xlu0 %395
        %397 = vrot.lane.b32.xlu0 %v339, 127
        %v398 = vpop.permute.xlu0 %397
        %vm399 = vcmask 1039360
        %v400 = vsel %vm399, %v362, %v364
        %v401 = vsel %vm399, %v364, %v366
        %v402 = vsel %vm399, %v366, %v368
        %v403 = vsel %vm399, %v368, %v370
        %v404 = vsel %vm399, %v370, %v372
        %v405 = vsel %vm399, %v372, %v374
        %v406 = vsel %vm399, %v374, %v376
        %v407 = vsel %vm399, %v376, %v378
        %v408 = vsel %vm399, %v378, %v380
        %v409 = vsel %vm399, %v380, %v382
        %v410 = vsel %vm399, %v382, %v384
        %v411 = vsel %vm399, %v384, %v386
        %v412 = vsel %vm399, %v386, %v388
        %v413 = vsel %vm399, %v388, %v390
        %v414 = vsel %vm399, %v390, %v392
        %v415 = vsel %vm399, %v392, %v394
        %v416 = vsel %vm399, %v394, %v396
        %v417 = vsel %vm399, %v396, %v398
        %436 = vrot.lane.b32.xlu0 %v321, 126
        %v437 = vpop.permute.xlu0 %436
        %438 = vrot.lane.b32.xlu0 %v322, 126
        %v439 = vpop.permute.xlu0 %438
        %440 = vrot.lane.b32.xlu0 %v323, 126
        %v441 = vpop.permute.xlu0 %440
        %442 = vrot.lane.b32.xlu0 %v324, 126
        %v443 = vpop.permute.xlu0 %442
        %444 = vrot.lane.b32.xlu0 %v325, 126
        %v445 = vpop.permute.xlu0 %444
        %446 = vrot.lane.b32.xlu0 %v326, 126
        %v447 = vpop.permute.xlu0 %446
        %448 = vrot.lane.b32.xlu0 %v327, 126
        %v449 = vpop.permute.xlu0 %448
        %450 = vrot.lane.b32.xlu0 %v328, 126
        %v451 = vpop.permute.xlu0 %450
        %452 = vrot.lane.b32.xlu0 %v329, 126
        %v453 = vpop.permute.xlu0 %452
        %454 = vrot.lane.b32.xlu0 %v330, 126
        %v455 = vpop.permute.xlu0 %454
        %456 = vrot.lane.b32.xlu0 %v331, 126
        %v457 = vpop.permute.xlu0 %456
        %458 = vrot.lane.b32.xlu0 %v332, 126
        %v459 = vpop.permute.xlu0 %458
        %460 = vrot.lane.b32.xlu0 %v333, 126
        %v461 = vpop.permute.xlu0 %460
        %462 = vrot.lane.b32.xlu0 %v334, 126
        %v463 = vpop.permute.xlu0 %462
        %464 = vrot.lane.b32.xlu0 %v335, 126
        %v465 = vpop.permute.xlu0 %464
        %466 = vrot.lane.b32.xlu0 %v336, 126
        %v467 = vpop.permute.xlu0 %466
        %468 = vrot.lane.b32.xlu0 %v337, 126
        %v469 = vpop.permute.xlu0 %468
        %470 = vrot.lane.b32.xlu0 %v338, 126
        %v471 = vpop.permute.xlu0 %470
        %472 = vrot.lane.b32.xlu0 %v339, 126
        %v473 = vpop.permute.xlu0 %472
        %vm474 = vcmask 1031168
        %v475 = vsel %vm474, %v437, %v439
        %v476 = vsel %vm474, %v439, %v441
        %v477 = vsel %vm474, %v441, %v443
        %v478 = vsel %vm474, %v443, %v445
        %v479 = vsel %vm474, %v445, %v447
        %v480 = vsel %vm474, %v447, %v449
        %v481 = vsel %vm474, %v449, %v451
        %v482 = vsel %vm474, %v451, %v453
        %v483 = vsel %vm474, %v453, %v455
        %v484 = vsel %vm474, %v455, %v457
        %v485 = vsel %vm474, %v457, %v459
        %v486 = vsel %vm474, %v459, %v461
        %v487 = vsel %vm474, %v461, %v463
        %v488 = vsel %vm474, %v463, %v465
        %v489 = vsel %vm474, %v465, %v467
        %v490 = vsel %vm474, %v467, %v469
        %v491 = vsel %vm474, %v469, %v471
        %v492 = vsel %vm474, %v471, %v473
        %512 = vrot.lane.b32.xlu0 %v340, 127
        %v513 = vpop.permute.xlu0 %512
        %v514 = vsel %vm399, %v398, %v513
        %516 = vrot.lane.b32.xlu0 %v340, 126
        %v517 = vpop.permute.xlu0 %516
        %v518 = vsel %vm474, %v473, %v517
        %521 = vrot.lane.b32.xlu0 %v341, 127
        %v522 = vpop.permute.xlu0 %521
        %v523 = vsel %vm399, %v513, %v522
        %525 = vrot.lane.b32.xlu0 %v341, 126
        %v526 = vpop.permute.xlu0 %525
        %v527 = vsel %vm474, %v517, %v526
        %v529 = vld [vmem:[%s3] sm:$0xff]
        %v530 = vld [vmem:[%s3 + $0x8] sm:$0xff]
        %v531 = vld [vmem:[%s3 + $0x10] sm:$0xff]
        %v532 = vld [vmem:[%s3 + $0x18] sm:$0xff]
        %v533 = vld [vmem:[%s3 + $0x20] sm:$0xff]
        %v534 = vld [vmem:[%s3 + $0x28] sm:$0xff]
        %v535 = vld [vmem:[%s3 + $0x30] sm:$0xff]
        %v536 = vld [vmem:[%s3 + $0x38] sm:$0xff]
        %v537 = vld [vmem:[%s3 + $0x40] sm:$0xff]
        %v538 = vld [vmem:[%s3 + $0x48] sm:$0xff]
        %v539 = vld [vmem:[%s3 + $0x50] sm:$0xff]
        %v540 = vld [vmem:[%s3 + $0x58] sm:$0xff]
        %v541 = vld [vmem:[%s3 + $0x60] sm:$0xff]
        %v542 = vld [vmem:[%s3 + $0x68] sm:$0xff]
        %v543 = vld [vmem:[%s3 + $0x70] sm:$0xff]
        %v544 = vld [vmem:[%s3 + $0x78] sm:$0xff]
        %v545 = vld [vmem:[%s4] sm:$0xff]
        %v546 = vld [vmem:[%s4 + $0x8] sm:$0xff]
        %v547 = vld [vmem:[%s4 + $0x10] sm:$0xff]
        %v548 = vld [vmem:[%s4 + $0x18] sm:$0xff]
        %v549 = vld [vmem:[%s4 + $0x20] sm:$0xff]
        %v550 = vld [vmem:[%s4 + $0x28] sm:$0xff]
        %v551 = vld [vmem:[%s4 + $0x30] sm:$0xff]
        %v552 = vld [vmem:[%s4 + $0x38] sm:$0xff]
        %v553 = vld [vmem:[%s4 + $0x40] sm:$0xff]
        %v554 = vld [vmem:[%s4 + $0x48] sm:$0xff]
        %v555 = vld [vmem:[%s4 + $0x50] sm:$0xff]
        %v556 = vld [vmem:[%s4 + $0x58] sm:$0xff]
        %v557 = vld [vmem:[%s4 + $0x60] sm:$0xff]
        %v558 = vld [vmem:[%s4 + $0x68] sm:$0xff]
        %v559 = vld [vmem:[%s4 + $0x70] sm:$0xff]
        %v560 = vld [vmem:[%s4 + $0x78] sm:$0xff]
        %562 = vset.pattern.permute.xlu0 0
        %563 = vperm.xlu0 %562, %v545
        %v564 = vpop.permute.xlu0 %563
        %567 = vset.pattern.permute.xlu0 0
        %568 = vperm.xlu0 %567, %v546
        %v569 = vpop.permute.xlu0 %568
        %572 = vset.pattern.permute.xlu0 0
        %573 = vperm.xlu0 %572, %v547
        %v574 = vpop.permute.xlu0 %573
        %577 = vset.pattern.permute.xlu0 0
        %578 = vperm.xlu0 %577, %v548
        %v579 = vpop.permute.xlu0 %578
        %582 = vset.pattern.permute.xlu0 0
        %583 = vperm.xlu0 %582, %v549
        %v584 = vpop.permute.xlu0 %583
        %587 = vset.pattern.permute.xlu0 0
        %588 = vperm.xlu0 %587, %v550
        %v589 = vpop.permute.xlu0 %588
        %592 = vset.pattern.permute.xlu0 0
        %593 = vperm.xlu0 %592, %v551
        %v594 = vpop.permute.xlu0 %593
        %597 = vset.pattern.permute.xlu0 0
        %598 = vperm.xlu0 %597, %v552
        %v599 = vpop.permute.xlu0 %598
        %602 = vset.pattern.permute.xlu0 0
        %603 = vperm.xlu0 %602, %v553
        %v604 = vpop.permute.xlu0 %603
        %607 = vset.pattern.permute.xlu0 0
        %608 = vperm.xlu0 %607, %v554
        %v609 = vpop.permute.xlu0 %608
        %612 = vset.pattern.permute.xlu0 0
        %613 = vperm.xlu0 %612, %v555
        %v614 = vpop.permute.xlu0 %613
        %617 = vset.pattern.permute.xlu0 0
        %618 = vperm.xlu0 %617, %v556
        %v619 = vpop.permute.xlu0 %618
        %622 = vset.pattern.permute.xlu0 0
        %623 = vperm.xlu0 %622, %v557
        %v624 = vpop.permute.xlu0 %623
        %627 = vset.pattern.permute.xlu0 0
        %628 = vperm.xlu0 %627, %v558
        %v629 = vpop.permute.xlu0 %628
        %632 = vset.pattern.permute.xlu0 0
        %633 = vperm.xlu0 %632, %v559
        %v634 = vpop.permute.xlu0 %633
        %637 = vset.pattern.permute.xlu0 0
        %638 = vperm.xlu0 %637, %v560
        %v639 = vpop.permute.xlu0 %638
        %vm641 = vcmask 588800
        %v643 = vsel %vm641, %v529, 0
        %v646 = vsel %vm641, %v530, 0
        %v649 = vsel %vm641, %v531, 0
        %v652 = vsel %vm641, %v532, 0
        %v655 = vsel %vm641, %v533, 0
        %v658 = vsel %vm641, %v534, 0
        %v661 = vsel %vm641, %v535, 0
        %v664 = vsel %vm641, %v536, 0
        %v667 = vsel %vm641, %v537, 0
        %v670 = vsel %vm641, %v538, 0
        %v673 = vsel %vm641, %v539, 0
        %v676 = vsel %vm641, %v540, 0
        %v679 = vsel %vm641, %v541, 0
        %v682 = vsel %vm641, %v542, 0
        %v685 = vsel %vm641, %v543, 0
        %v688 = vsel %vm641, %v544, 0
        %690 = vmatprep.subr.mxu0 0.0
        %691 = vmatpush1.msra.mxu0 0.0
        %692 = vmatprep.subr.mxu0 0.0
        %693 = vmatpush1.msra.mxu0 0.0
        %694 = vmatprep.subr.mxu0 0.0
        %695 = vmatpush1.msra.mxu0 0.0
        %696 = vmatprep.subr.mxu0 0.0
        %697 = vmatpush1.msra.mxu0 0.0
        %698 = vmatprep.subr.mxu0 0.0
        %699 = vmatpush1.msra.mxu0 0.0
        %700 = vmatprep.subr.mxu0 0.0
        %701 = vmatpush1.msra.mxu0 0.0
        %702 = vmatprep.subr.mxu0 0.0
        %703 = vmatpush1.msra.mxu0 0.0
        %704 = vmatprep.subr.mxu0 %v478
        %705 = vmatpush1.msra.mxu0 %v477
        %706 = vmatprep.subr.mxu0 %v403
        %707 = vmatpush1.msra.mxu0 %v402
        %708 = vmatprep.subr.mxu0 %v324
        %709 = vmatpush1.msra.mxu0 %v323
        %710 = vmatprep.subr.mxu0 %v477
        %711 = vmatpush1.msra.mxu0 %v476
        %712 = vmatprep.subr.mxu0 %v402
        %713 = vmatpush1.msra.mxu0 %v401
        %714 = vmatprep.subr.mxu0 %v323
        %715 = vmatpush1.msra.mxu0 %v322
        %716 = vmatprep.subr.mxu0 %v476
        %717 = vmatpush1.msra.mxu0 %v475
        %718 = vmatprep.subr.mxu0 %v401
        %719 = vmatpush1.msra.mxu0 %v400
        %720 = vmatprep.subr.mxu0 %v322
        %721 = vmatpush1.msra.mxu0 %v321
        %722 = vmatprep.subr.mxu0 0.0
        %723 = vmatpush2.msra.mxu0 0.0
        %724 = vmatprep.subr.mxu0 0.0
        %725 = vmatpush2.msra.mxu0 0.0
        %726 = vmatprep.subr.mxu0 0.0
        %727 = vmatpush2.msra.mxu0 0.0
        %728 = vmatprep.subr.mxu0 0.0
        %729 = vmatpush2.msra.mxu0 0.0
        %730 = vmatprep.subr.mxu0 0.0
        %731 = vmatpush2.msra.mxu0 0.0
        %732 = vmatprep.subr.mxu0 0.0
        %733 = vmatpush2.msra.mxu0 0.0
        %734 = vmatprep.subr.mxu0 0.0
        %735 = vmatpush2.msra.mxu0 0.0
        %736 = vmatprep.subr.mxu0 0.0
        %737 = vmatpush2.msra.mxu0 0.0
        %738 = vmatprep.subr.mxu0 0.0
        %739 = vmatpush2.msra.mxu0 0.0
        %740 = vmatprep.subr.mxu0 0.0
        %741 = vmatpush2.msra.mxu0 0.0
        %742 = vmatprep.subr.mxu0 0.0
        %743 = vmatpush2.msra.mxu0 0.0
        %744 = vmatprep.subr.mxu0 0.0
        %745 = vmatpush2.msra.mxu0 0.0
        %746 = vmatprep.subr.mxu0 0.0
        %747 = vmatpush2.msra.mxu0 0.0
        %748 = vmatprep.subr.mxu0 0.0
        %749 = vmatpush2.msra.mxu0 0.0
        %750 = vmatprep.subr.mxu0 0.0
        %751 = vmatpush2.msra.mxu0 0.0
        %752 = vmatprep.subr.mxu0 0.0
        %753 = vmatpush2.msra.mxu0 0.0
        %754 = vmatprep.mubr.f32.mxu0 0.0
        %755 = vmatmul.mubr.f32.gmra.mxu0 %v643
        %v756 = vpop.f32.mrf.mxu0
        %v757 = vadd.f32 %v564, %v756
        %v758 = vpop.f32.mrf.mxu0
        %v759 = vadd.f32 %v564, %v758
        %760 = vmatprep.mubr.f32.mxu0 0.0
        %761 = vmatmul.mubr.f32.gmra.mxu0 %v646
        %v762 = vpop.f32.mrf.mxu0
        %v763 = vadd.f32 %v569, %v762
        %v764 = vpop.f32.mrf.mxu0
        %v765 = vadd.f32 %v569, %v764
        %766 = vmatprep.mubr.f32.mxu0 0.0
        %767 = vmatmul.mubr.f32.gmra.mxu0 %v649
        %v768 = vpop.f32.mrf.mxu0
        %v769 = vadd.f32 %v574, %v768
        %v770 = vpop.f32.mrf.mxu0
        %v771 = vadd.f32 %v574, %v770
        %772 = vmatprep.mubr.f32.mxu0 0.0
        %773 = vmatmul.mubr.f32.gmra.mxu0 %v652
        %v774 = vpop.f32.mrf.mxu0
        %v775 = vadd.f32 %v579, %v774
        %v776 = vpop.f32.mrf.mxu0
        %v777 = vadd.f32 %v579, %v776
        %778 = vmatprep.mubr.f32.mxu0 0.0
        %779 = vmatmul.mubr.f32.gmra.mxu0 %v655
        %v780 = vpop.f32.mrf.mxu0
        %v781 = vadd.f32 %v584, %v780
        %v782 = vpop.f32.mrf.mxu0
        %v783 = vadd.f32 %v584, %v782
        %784 = vmatprep.mubr.f32.mxu0 0.0
        %785 = vmatmul.mubr.f32.gmra.mxu0 %v658
        %v786 = vpop.f32.mrf.mxu0
        %v787 = vadd.f32 %v589, %v786
        %v788 = vpop.f32.mrf.mxu0
        %v789 = vadd.f32 %v589, %v788
        %790 = vmatprep.mubr.f32.mxu0 0.0
        %791 = vmatmul.mubr.f32.gmra.mxu0 %v661
        %v792 = vpop.f32.mrf.mxu0
        %v793 = vadd.f32 %v594, %v792
        %v794 = vpop.f32.mrf.mxu0
        %v795 = vadd.f32 %v594, %v794
        %796 = vmatprep.mubr.f32.mxu0 0.0
        %797 = vmatmul.mubr.f32.gmra.mxu0 %v664
        %v798 = vpop.f32.mrf.mxu0
        %v799 = vadd.f32 %v599, %v798
        %v800 = vpop.f32.mrf.mxu0
        %v801 = vadd.f32 %v599, %v800
        %802 = vmatprep.mubr.f32.mxu0 0.0
        %803 = vmatmul.mubr.f32.gmra.mxu0 %v667
        %v804 = vpop.f32.mrf.mxu0
        %v805 = vadd.f32 %v604, %v804
        %v806 = vpop.f32.mrf.mxu0
        %v807 = vadd.f32 %v604, %v806
        %808 = vmatprep.mubr.f32.mxu0 0.0
        %809 = vmatmul.mubr.f32.gmra.mxu0 %v670
        %v810 = vpop.f32.mrf.mxu0
        %v811 = vadd.f32 %v609, %v810
        %v812 = vpop.f32.mrf.mxu0
        %v813 = vadd.f32 %v609, %v812
        %814 = vmatprep.mubr.f32.mxu0 0.0
        %815 = vmatmul.mubr.f32.gmra.mxu0 %v673
        %v816 = vpop.f32.mrf.mxu0
        %v817 = vadd.f32 %v614, %v816
        %v818 = vpop.f32.mrf.mxu0
        %v819 = vadd.f32 %v614, %v818
        %820 = vmatprep.mubr.f32.mxu0 0.0
        %821 = vmatmul.mubr.f32.gmra.mxu0 %v676
        %v822 = vpop.f32.mrf.mxu0
        %v823 = vadd.f32 %v619, %v822
        %v824 = vpop.f32.mrf.mxu0
        %v825 = vadd.f32 %v619, %v824
        %826 = vmatprep.mubr.f32.mxu0 0.0
        %827 = vmatmul.mubr.f32.gmra.mxu0 %v679
        %v828 = vpop.f32.mrf.mxu0
        %v829 = vadd.f32 %v624, %v828
        %v830 = vpop.f32.mrf.mxu0
        %v831 = vadd.f32 %v624, %v830
        %832 = vmatprep.mubr.f32.mxu0 0.0
        %833 = vmatmul.mubr.f32.gmra.mxu0 %v682
        %v834 = vpop.f32.mrf.mxu0
        %v835 = vadd.f32 %v629, %v834
        %v836 = vpop.f32.mrf.mxu0
        %v837 = vadd.f32 %v629, %v836
        %838 = vmatprep.mubr.f32.mxu0 0.0
        %839 = vmatmul.mubr.f32.gmra.mxu0 %v685
        %v840 = vpop.f32.mrf.mxu0
        %v841 = vadd.f32 %v634, %v840
        %v842 = vpop.f32.mrf.mxu0
        %v843 = vadd.f32 %v634, %v842
        %844 = vmatprep.mubr.f32.mxu0 0.0
        %845 = vmatmul.mubr.f32.gmra.mxu0 %v688
        %v846 = vpop.f32.mrf.mxu0
        %v847 = vadd.f32 %v639, %v846
        %v848 = vpop.f32.mrf.mxu0
        %v849 = vadd.f32 %v639, %v848
        %850 = vdwg.mxu0
        %851 = vmatprep.subr.mxu0 0.0
        %852 = vmatpush1.msra.mxu0 0.0
        %853 = vmatprep.subr.mxu0 0.0
        %854 = vmatpush1.msra.mxu0 0.0
        %855 = vmatprep.subr.mxu0 0.0
        %856 = vmatpush1.msra.mxu0 0.0
        %857 = vmatprep.subr.mxu0 0.0
        %858 = vmatpush1.msra.mxu0 0.0
        %859 = vmatprep.subr.mxu0 0.0
        %860 = vmatpush1.msra.mxu0 0.0
        %861 = vmatprep.subr.mxu0 0.0
        %862 = vmatpush1.msra.mxu0 0.0
        %863 = vmatprep.subr.mxu0 0.0
        %864 = vmatpush1.msra.mxu0 0.0
        %865 = vmatprep.subr.mxu0 %v480
        %866 = vmatpush1.msra.mxu0 %v479
        %867 = vmatprep.subr.mxu0 %v405
        %868 = vmatpush1.msra.mxu0 %v404
        %869 = vmatprep.subr.mxu0 %v326
        %870 = vmatpush1.msra.mxu0 %v325
        %871 = vmatprep.subr.mxu0 %v479
        %872 = vmatpush1.msra.mxu0 %v478
        %873 = vmatprep.subr.mxu0 %v404
        %874 = vmatpush1.msra.mxu0 %v403
        %875 = vmatprep.subr.mxu0 %v325
        %876 = vmatpush1.msra.mxu0 %v324
        %877 = vmatprep.subr.mxu0 %v478
        %878 = vmatpush1.msra.mxu0 %v477
        %879 = vmatprep.subr.mxu0 %v403
        %880 = vmatpush1.msra.mxu0 %v402
        %881 = vmatprep.subr.mxu0 %v324
        %882 = vmatpush1.msra.mxu0 %v323
        %883 = vmatprep.subr.mxu0 0.0
        %884 = vmatpush2.msra.mxu0 0.0
        %885 = vmatprep.subr.mxu0 0.0
        %886 = vmatpush2.msra.mxu0 0.0
        %887 = vmatprep.subr.mxu0 0.0
        %888 = vmatpush2.msra.mxu0 0.0
        %889 = vmatprep.subr.mxu0 0.0
        %890 = vmatpush2.msra.mxu0 0.0
        %891 = vmatprep.subr.mxu0 0.0
        %892 = vmatpush2.msra.mxu0 0.0
        %893 = vmatprep.subr.mxu0 0.0
        %894 = vmatpush2.msra.mxu0 0.0
        %895 = vmatprep.subr.mxu0 0.0
        %896 = vmatpush2.msra.mxu0 0.0
        %897 = vmatprep.subr.mxu0 0.0
        %898 = vmatpush2.msra.mxu0 0.0
        %899 = vmatprep.subr.mxu0 0.0
        %900 = vmatpush2.msra.mxu0 0.0
        %901 = vmatprep.subr.mxu0 0.0
        %902 = vmatpush2.msra.mxu0 0.0
        %903 = vmatprep.subr.mxu0 0.0
        %904 = vmatpush2.msra.mxu0 0.0
        %905 = vmatprep.subr.mxu0 0.0
        %906 = vmatpush2.msra.mxu0 0.0
        %907 = vmatprep.subr.mxu0 0.0
        %908 = vmatpush2.msra.mxu0 0.0
        %909 = vmatprep.subr.mxu0 0.0
        %910 = vmatpush2.msra.mxu0 0.0
        %911 = vmatprep.subr.mxu0 0.0
        %912 = vmatpush2.msra.mxu0 0.0
        %913 = vmatprep.subr.mxu0 0.0
        %914 = vmatpush2.msra.mxu0 0.0
        %915 = vmatprep.mubr.f32.mxu0 0.0
        %916 = vmatmul.mubr.f32.gmra.mxu0 %v643
        %v917 = vpop.f32.mrf.mxu0
        %v918 = vadd.f32 %v564, %v917
        %v919 = vpop.f32.mrf.mxu0
        %v920 = vadd.f32 %v564, %v919
        %921 = vmatprep.mubr.f32.mxu0 0.0
        %922 = vmatmul.mubr.f32.gmra.mxu0 %v646
        %v923 = vpop.f32.mrf.mxu0
        %v924 = vadd.f32 %v569, %v923
        %v925 = vpop.f32.mrf.mxu0
        %v926 = vadd.f32 %v569, %v925
        %927 = vmatprep.mubr.f32.mxu0 0.0
        %928 = vmatmul.mubr.f32.gmra.mxu0 %v649
        %v929 = vpop.f32.mrf.mxu0
        %v930 = vadd.f32 %v574, %v929
        %v931 = vpop.f32.mrf.mxu0
        %v932 = vadd.f32 %v574, %v931
        %933 = vmatprep.mubr.f32.mxu0 0.0
        %934 = vmatmul.mubr.f32.gmra.mxu0 %v652
        %v935 = vpop.f32.mrf.mxu0
        %v936 = vadd.f32 %v579, %v935
        %v937 = vpop.f32.mrf.mxu0
        %v938 = vadd.f32 %v579, %v937
        %939 = vmatprep.mubr.f32.mxu0 0.0
        %940 = vmatmul.mubr.f32.gmra.mxu0 %v655
        %v941 = vpop.f32.mrf.mxu0
        %v942 = vadd.f32 %v584, %v941
        %v943 = vpop.f32.mrf.mxu0
        %v944 = vadd.f32 %v584, %v943
        %945 = vmatprep.mubr.f32.mxu0 0.0
        %946 = vmatmul.mubr.f32.gmra.mxu0 %v658
        %v947 = vpop.f32.mrf.mxu0
        %v948 = vadd.f32 %v589, %v947
        %v949 = vpop.f32.mrf.mxu0
        %v950 = vadd.f32 %v589, %v949
        %951 = vmatprep.mubr.f32.mxu0 0.0
        %952 = vmatmul.mubr.f32.gmra.mxu0 %v661
        %v953 = vpop.f32.mrf.mxu0
        %v954 = vadd.f32 %v594, %v953
        %v955 = vpop.f32.mrf.mxu0
        %v956 = vadd.f32 %v594, %v955
        %957 = vmatprep.mubr.f32.mxu0 0.0
        %958 = vmatmul.mubr.f32.gmra.mxu0 %v664
        %v959 = vpop.f32.mrf.mxu0
        %v960 = vadd.f32 %v599, %v959
        %v961 = vpop.f32.mrf.mxu0
        %v962 = vadd.f32 %v599, %v961
        %963 = vmatprep.mubr.f32.mxu0 0.0
        %964 = vmatmul.mubr.f32.gmra.mxu0 %v667
        %v965 = vpop.f32.mrf.mxu0
        %v966 = vadd.f32 %v604, %v965
        %v967 = vpop.f32.mrf.mxu0
        %v968 = vadd.f32 %v604, %v967
        %969 = vmatprep.mubr.f32.mxu0 0.0
        %970 = vmatmul.mubr.f32.gmra.mxu0 %v670
        %v971 = vpop.f32.mrf.mxu0
        %v972 = vadd.f32 %v609, %v971
        %v973 = vpop.f32.mrf.mxu0
        %v974 = vadd.f32 %v609, %v973
        %975 = vmatprep.mubr.f32.mxu0 0.0
        %976 = vmatmul.mubr.f32.gmra.mxu0 %v673
        %v977 = vpop.f32.mrf.mxu0
        %v978 = vadd.f32 %v614, %v977
        %v979 = vpop.f32.mrf.mxu0
        %v980 = vadd.f32 %v614, %v979
        %981 = vmatprep.mubr.f32.mxu0 0.0
        %982 = vmatmul.mubr.f32.gmra.mxu0 %v676
        %v983 = vpop.f32.mrf.mxu0
        %v984 = vadd.f32 %v619, %v983
        %v985 = vpop.f32.mrf.mxu0
        %v986 = vadd.f32 %v619, %v985
        %987 = vmatprep.mubr.f32.mxu0 0.0
        %988 = vmatmul.mubr.f32.gmra.mxu0 %v679
        %v989 = vpop.f32.mrf.mxu0
        %v990 = vadd.f32 %v624, %v989
        %v991 = vpop.f32.mrf.mxu0
        %v992 = vadd.f32 %v624, %v991
        %993 = vmatprep.mubr.f32.mxu0 0.0
        %994 = vmatmul.mubr.f32.gmra.mxu0 %v682
        %v995 = vpop.f32.mrf.mxu0
        %v996 = vadd.f32 %v629, %v995
        %v997 = vpop.f32.mrf.mxu0
        %v998 = vadd.f32 %v629, %v997
        %999 = vmatprep.mubr.f32.mxu0 0.0
        %1000 = vmatmul.mubr.f32.gmra.mxu0 %v685
        %v1001 = vpop.f32.mrf.mxu0
        %v1002 = vadd.f32 %v634, %v1001
        %v1003 = vpop.f32.mrf.mxu0
        %v1004 = vadd.f32 %v634, %v1003
        %1005 = vmatprep.mubr.f32.mxu0 0.0
        %1006 = vmatmul.mubr.f32.gmra.mxu0 %v688
        %v1007 = vpop.f32.mrf.mxu0
        %v1008 = vadd.f32 %v639, %v1007
        %v1009 = vpop.f32.mrf.mxu0
        %v1010 = vadd.f32 %v639, %v1009
        %1011 = vdwg.mxu0
        %1012 = vmatprep.subr.mxu0 0.0
        %1013 = vmatpush1.msra.mxu0 0.0
        %1014 = vmatprep.subr.mxu0 0.0
        %1015 = vmatpush1.msra.mxu0 0.0
        %1016 = vmatprep.subr.mxu0 0.0
        %1017 = vmatpush1.msra.mxu0 0.0
        %1018 = vmatprep.subr.mxu0 0.0
        %1019 = vmatpush1.msra.mxu0 0.0
        %1020 = vmatprep.subr.mxu0 0.0
        %1021 = vmatpush1.msra.mxu0 0.0
        %1022 = vmatprep.subr.mxu0 0.0
        %1023 = vmatpush1.msra.mxu0 0.0
        %1024 = vmatprep.subr.mxu0 0.0
        %1025 = vmatpush1.msra.mxu0 0.0
        %1026 = vmatprep.subr.mxu0 %v482
        %1027 = vmatpush1.msra.mxu0 %v481
        %1028 = vmatprep.subr.mxu0 %v407
        %1029 = vmatpush1.msra.mxu0 %v406
        %1030 = vmatprep.subr.mxu0 %v328
        %1031 = vmatpush1.msra.mxu0 %v327
        %1032 = vmatprep.subr.mxu0 %v481
        %1033 = vmatpush1.msra.mxu0 %v480
        %1034 = vmatprep.subr.mxu0 %v406
        %1035 = vmatpush1.msra.mxu0 %v405
        %1036 = vmatprep.subr.mxu0 %v327
        %1037 = vmatpush1.msra.mxu0 %v326
        %1038 = vmatprep.subr.mxu0 %v480
        %1039 = vmatpush1.msra.mxu0 %v479
        %1040 = vmatprep.subr.mxu0 %v405
        %1041 = vmatpush1.msra.mxu0 %v404
        %1042 = vmatprep.subr.mxu0 %v326
        %1043 = vmatpush1.msra.mxu0 %v325
        %1044 = vmatprep.subr.mxu0 0.0
        %1045 = vmatpush2.msra.mxu0 0.0
        %1046 = vmatprep.subr.mxu0 0.0
        %1047 = vmatpush2.msra.mxu0 0.0
        %1048 = vmatprep.subr.mxu0 0.0
        %1049 = vmatpush2.msra.mxu0 0.0
        %1050 = vmatprep.subr.mxu0 0.0
        %1051 = vmatpush2.msra.mxu0 0.0
        %1052 = vmatprep.subr.mxu0 0.0
        %1053 = vmatpush2.msra.mxu0 0.0
        %1054 = vmatprep.subr.mxu0 0.0
        %1055 = vmatpush2.msra.mxu0 0.0
        %1056 = vmatprep.subr.mxu0 0.0
        %1057 = vmatpush2.msra.mxu0 0.0
        %1058 = vmatprep.subr.mxu0 0.0
        %1059 = vmatpush2.msra.mxu0 0.0
        %1060 = vmatprep.subr.mxu0 0.0
        %1061 = vmatpush2.msra.mxu0 0.0
        %1062 = vmatprep.subr.mxu0 0.0
        %1063 = vmatpush2.msra.mxu0 0.0
        %1064 = vmatprep.subr.mxu0 0.0
        %1065 = vmatpush2.msra.mxu0 0.0
        %1066 = vmatprep.subr.mxu0 0.0
        %1067 = vmatpush2.msra.mxu0 0.0
        %1068 = vmatprep.subr.mxu0 0.0
        %1069 = vmatpush2.msra.mxu0 0.0
        %1070 = vmatprep.subr.mxu0 0.0
        %1071 = vmatpush2.msra.mxu0 0.0
        %1072 = vmatprep.subr.mxu0 0.0
        %1073 = vmatpush2.msra.mxu0 0.0
        %1074 = vmatprep.subr.mxu0 0.0
        %1075 = vmatpush2.msra.mxu0 0.0
        %1076 = vmatprep.mubr.f32.mxu0 0.0
        %1077 = vmatmul.mubr.f32.gmra.mxu0 %v643
        %v1078 = vpop.f32.mrf.mxu0
        %v1079 = vadd.f32 %v564, %v1078
        %v1080 = vpop.f32.mrf.mxu0
        %v1081 = vadd.f32 %v564, %v1080
        %1082 = vmatprep.mubr.f32.mxu0 0.0
        %1083 = vmatmul.mubr.f32.gmra.mxu0 %v646
        %v1084 = vpop.f32.mrf.mxu0
        %v1085 = vadd.f32 %v569, %v1084
        %v1086 = vpop.f32.mrf.mxu0
        %v1087 = vadd.f32 %v569, %v1086
        %1088 = vmatprep.mubr.f32.mxu0 0.0
        %1089 = vmatmul.mubr.f32.gmra.mxu0 %v649
        %v1090 = vpop.f32.mrf.mxu0
        %v1091 = vadd.f32 %v574, %v1090
        %v1092 = vpop.f32.mrf.mxu0
        %v1093 = vadd.f32 %v574, %v1092
        %1094 = vmatprep.mubr.f32.mxu0 0.0
        %1095 = vmatmul.mubr.f32.gmra.mxu0 %v652
        %v1096 = vpop.f32.mrf.mxu0
        %v1097 = vadd.f32 %v579, %v1096
        %v1098 = vpop.f32.mrf.mxu0
        %v1099 = vadd.f32 %v579, %v1098
        %1100 = vmatprep.mubr.f32.mxu0 0.0
        %1101 = vmatmul.mubr.f32.gmra.mxu0 %v655
        %v1102 = vpop.f32.mrf.mxu0
        %v1103 = vadd.f32 %v584, %v1102
        %v1104 = vpop.f32.mrf.mxu0
        %v1105 = vadd.f32 %v584, %v1104
        %1106 = vmatprep.mubr.f32.mxu0 0.0
        %1107 = vmatmul.mubr.f32.gmra.mxu0 %v658
        %v1108 = vpop.f32.mrf.mxu0
        %v1109 = vadd.f32 %v589, %v1108
        %v1110 = vpop.f32.mrf.mxu0
        %v1111 = vadd.f32 %v589, %v1110
        %1112 = vmatprep.mubr.f32.mxu0 0.0
        %1113 = vmatmul.mubr.f32.gmra.mxu0 %v661
        %v1114 = vpop.f32.mrf.mxu0
        %v1115 = vadd.f32 %v594, %v1114
        %v1116 = vpop.f32.mrf.mxu0
        %v1117 = vadd.f32 %v594, %v1116
        %1118 = vmatprep.mubr.f32.mxu0 0.0
        %1119 = vmatmul.mubr.f32.gmra.mxu0 %v664
        %v1120 = vpop.f32.mrf.mxu0
        %v1121 = vadd.f32 %v599, %v1120
        %v1122 = vpop.f32.mrf.mxu0
        %v1123 = vadd.f32 %v599, %v1122
        %1124 = vmatprep.mubr.f32.mxu0 0.0
        %1125 = vmatmul.mubr.f32.gmra.mxu0 %v667
        %v1126 = vpop.f32.mrf.mxu0
        %v1127 = vadd.f32 %v604, %v1126
        %v1128 = vpop.f32.mrf.mxu0
        %v1129 = vadd.f32 %v604, %v1128
        %1130 = vmatprep.mubr.f32.mxu0 0.0
        %1131 = vmatmul.mubr.f32.gmra.mxu0 %v670
        %v1132 = vpop.f32.mrf.mxu0
        %v1133 = vadd.f32 %v609, %v1132
        %v1134 = vpop.f32.mrf.mxu0
        %v1135 = vadd.f32 %v609, %v1134
        %1136 = vmatprep.mubr.f32.mxu0 0.0
        %1137 = vmatmul.mubr.f32.gmra.mxu0 %v673
        %v1138 = vpop.f32.mrf.mxu0
        %v1139 = vadd.f32 %v614, %v1138
        %v1140 = vpop.f32.mrf.mxu0
        %v1141 = vadd.f32 %v614, %v1140
        %1142 = vmatprep.mubr.f32.mxu0 0.0
        %1143 = vmatmul.mubr.f32.gmra.mxu0 %v676
        %v1144 = vpop.f32.mrf.mxu0
        %v1145 = vadd.f32 %v619, %v1144
        %v1146 = vpop.f32.mrf.mxu0
        %v1147 = vadd.f32 %v619, %v1146
        %1148 = vmatprep.mubr.f32.mxu0 0.0
        %1149 = vmatmul.mubr.f32.gmra.mxu0 %v679
        %v1150 = vpop.f32.mrf.mxu0
        %v1151 = vadd.f32 %v624, %v1150
        %v1152 = vpop.f32.mrf.mxu0
        %v1153 = vadd.f32 %v624, %v1152
        %1154 = vmatprep.mubr.f32.mxu0 0.0
        %1155 = vmatmul.mubr.f32.gmra.mxu0 %v682
        %v1156 = vpop.f32.mrf.mxu0
        %v1157 = vadd.f32 %v629, %v1156
        %v1158 = vpop.f32.mrf.mxu0
        %v1159 = vadd.f32 %v629, %v1158
        %1160 = vmatprep.mubr.f32.mxu0 0.0
        %1161 = vmatmul.mubr.f32.gmra.mxu0 %v685
        %v1162 = vpop.f32.mrf.mxu0
        %v1163 = vadd.f32 %v634, %v1162
        %v1164 = vpop.f32.mrf.mxu0
        %v1165 = vadd.f32 %v634, %v1164
        %1166 = vmatprep.mubr.f32.mxu0 0.0
        %1167 = vmatmul.mubr.f32.gmra.mxu0 %v688
        %v1168 = vpop.f32.mrf.mxu0
        %v1169 = vadd.f32 %v639, %v1168
        %v1170 = vpop.f32.mrf.mxu0
        %v1171 = vadd.f32 %v639, %v1170
        %1172 = vdwg.mxu0
        %1173 = vmatprep.subr.mxu0 0.0
        %1174 = vmatpush1.msra.mxu0 0.0
        %1175 = vmatprep.subr.mxu0 0.0
        %1176 = vmatpush1.msra.mxu0 0.0
        %1177 = vmatprep.subr.mxu0 0.0
        %1178 = vmatpush1.msra.mxu0 0.0
        %1179 = vmatprep.subr.mxu0 0.0
        %1180 = vmatpush1.msra.mxu0 0.0
        %1181 = vmatprep.subr.mxu0 0.0
        %1182 = vmatpush1.msra.mxu0 0.0
        %1183 = vmatprep.subr.mxu0 0.0
        %1184 = vmatpush1.msra.mxu0 0.0
        %1185 = vmatprep.subr.mxu0 0.0
        %1186 = vmatpush1.msra.mxu0 0.0
        %1187 = vmatprep.subr.mxu0 %v484
        %1188 = vmatpush1.msra.mxu0 %v483
        %1189 = vmatprep.subr.mxu0 %v409
        %1190 = vmatpush1.msra.mxu0 %v408
        %1191 = vmatprep.subr.mxu0 %v330
        %1192 = vmatpush1.msra.mxu0 %v329
        %1193 = vmatprep.subr.mxu0 %v483
        %1194 = vmatpush1.msra.mxu0 %v482
        %1195 = vmatprep.subr.mxu0 %v408
        %1196 = vmatpush1.msra.mxu0 %v407
        %1197 = vmatprep.subr.mxu0 %v329
        %1198 = vmatpush1.msra.mxu0 %v328
        %1199 = vmatprep.subr.mxu0 %v482
        %1200 = vmatpush1.msra.mxu0 %v481
        %1201 = vmatprep.subr.mxu0 %v407
        %1202 = vmatpush1.msra.mxu0 %v406
        %1203 = vmatprep.subr.mxu0 %v328
        %1204 = vmatpush1.msra.mxu0 %v327
        %1205 = vmatprep.subr.mxu0 0.0
        %1206 = vmatpush2.msra.mxu0 0.0
        %1207 = vmatprep.subr.mxu0 0.0
        %1208 = vmatpush2.msra.mxu0 0.0
        %1209 = vmatprep.subr.mxu0 0.0
        %1210 = vmatpush2.msra.mxu0 0.0
        %1211 = vmatprep.subr.mxu0 0.0
        %1212 = vmatpush2.msra.mxu0 0.0
        %1213 = vmatprep.subr.mxu0 0.0
        %1214 = vmatpush2.msra.mxu0 0.0
        %1215 = vmatprep.subr.mxu0 0.0
        %1216 = vmatpush2.msra.mxu0 0.0
        %1217 = vmatprep.subr.mxu0 0.0
        %1218 = vmatpush2.msra.mxu0 0.0
        %1219 = vmatprep.subr.mxu0 0.0
        %1220 = vmatpush2.msra.mxu0 0.0
        %1221 = vmatprep.subr.mxu0 0.0
        %1222 = vmatpush2.msra.mxu0 0.0
        %1223 = vmatprep.subr.mxu0 0.0
        %1224 = vmatpush2.msra.mxu0 0.0
        %1225 = vmatprep.subr.mxu0 0.0
        %1226 = vmatpush2.msra.mxu0 0.0
        %1227 = vmatprep.subr.mxu0 0.0
        %1228 = vmatpush2.msra.mxu0 0.0
        %1229 = vmatprep.subr.mxu0 0.0
        %1230 = vmatpush2.msra.mxu0 0.0
        %1231 = vmatprep.subr.mxu0 0.0
        %1232 = vmatpush2.msra.mxu0 0.0
        %1233 = vmatprep.subr.mxu0 0.0
        %1234 = vmatpush2.msra.mxu0 0.0
        %1235 = vmatprep.subr.mxu0 0.0
        %1236 = vmatpush2.msra.mxu0 0.0
        %1237 = vmatprep.mubr.f32.mxu0 0.0
        %1238 = vmatmul.mubr.f32.gmra.mxu0 %v643
        %v1239 = vpop.f32.mrf.mxu0
        %v1240 = vadd.f32 %v564, %v1239
        %v1241 = vpop.f32.mrf.mxu0
        %v1242 = vadd.f32 %v564, %v1241
        %1243 = vmatprep.mubr.f32.mxu0 0.0
        %1244 = vmatmul.mubr.f32.gmra.mxu0 %v646
        %v1245 = vpop.f32.mrf.mxu0
        %v1246 = vadd.f32 %v569, %v1245
        %v1247 = vpop.f32.mrf.mxu0
        %v1248 = vadd.f32 %v569, %v1247
        %1249 = vmatprep.mubr.f32.mxu0 0.0
        %1250 = vmatmul.mubr.f32.gmra.mxu0 %v649
        %v1251 = vpop.f32.mrf.mxu0
        %v1252 = vadd.f32 %v574, %v1251
        %v1253 = vpop.f32.mrf.mxu0
        %v1254 = vadd.f32 %v574, %v1253
        %1255 = vmatprep.mubr.f32.mxu0 0.0
        %1256 = vmatmul.mubr.f32.gmra.mxu0 %v652
        %v1257 = vpop.f32.mrf.mxu0
        %v1258 = vadd.f32 %v579, %v1257
        %v1259 = vpop.f32.mrf.mxu0
        %v1260 = vadd.f32 %v579, %v1259
        %1261 = vmatprep.mubr.f32.mxu0 0.0
        %1262 = vmatmul.mubr.f32.gmra.mxu0 %v655
        %v1263 = vpop.f32.mrf.mxu0
        %v1264 = vadd.f32 %v584, %v1263
        %v1265 = vpop.f32.mrf.mxu0
        %v1266 = vadd.f32 %v584, %v1265
        %1267 = vmatprep.mubr.f32.mxu0 0.0
        %1268 = vmatmul.mubr.f32.gmra.mxu0 %v658
        %v1269 = vpop.f32.mrf.mxu0
        %v1270 = vadd.f32 %v589, %v1269
        %v1271 = vpop.f32.mrf.mxu0
        %v1272 = vadd.f32 %v589, %v1271
        %1273 = vmatprep.mubr.f32.mxu0 0.0
        %1274 = vmatmul.mubr.f32.gmra.mxu0 %v661
        %v1275 = vpop.f32.mrf.mxu0
        %v1276 = vadd.f32 %v594, %v1275
        %v1277 = vpop.f32.mrf.mxu0
        %v1278 = vadd.f32 %v594, %v1277
        %1279 = vmatprep.mubr.f32.mxu0 0.0
        %1280 = vmatmul.mubr.f32.gmra.mxu0 %v664
        %v1281 = vpop.f32.mrf.mxu0
        %v1282 = vadd.f32 %v599, %v1281
        %v1283 = vpop.f32.mrf.mxu0
        %v1284 = vadd.f32 %v599, %v1283
        %1285 = vmatprep.mubr.f32.mxu0 0.0
        %1286 = vmatmul.mubr.f32.gmra.mxu0 %v667
        %v1287 = vpop.f32.mrf.mxu0
        %v1288 = vadd.f32 %v604, %v1287
        %v1289 = vpop.f32.mrf.mxu0
        %v1290 = vadd.f32 %v604, %v1289
        %1291 = vmatprep.mubr.f32.mxu0 0.0
        %1292 = vmatmul.mubr.f32.gmra.mxu0 %v670
        %v1293 = vpop.f32.mrf.mxu0
        %v1294 = vadd.f32 %v609, %v1293
        %v1295 = vpop.f32.mrf.mxu0
        %v1296 = vadd.f32 %v609, %v1295
        %1297 = vmatprep.mubr.f32.mxu0 0.0
        %1298 = vmatmul.mubr.f32.gmra.mxu0 %v673
        %v1299 = vpop.f32.mrf.mxu0
        %v1300 = vadd.f32 %v614, %v1299
        %v1301 = vpop.f32.mrf.mxu0
        %v1302 = vadd.f32 %v614, %v1301
        %1303 = vmatprep.mubr.f32.mxu0 0.0
        %1304 = vmatmul.mubr.f32.gmra.mxu0 %v676
        %v1305 = vpop.f32.mrf.mxu0
        %v1306 = vadd.f32 %v619, %v1305
        %v1307 = vpop.f32.mrf.mxu0
        %v1308 = vadd.f32 %v619, %v1307
        %1309 = vmatprep.mubr.f32.mxu0 0.0
        %1310 = vmatmul.mubr.f32.gmra.mxu0 %v679
        %v1311 = vpop.f32.mrf.mxu0
        %v1312 = vadd.f32 %v624, %v1311
        %v1313 = vpop.f32.mrf.mxu0
        %v1314 = vadd.f32 %v624, %v1313
        %1315 = vmatprep.mubr.f32.mxu0 0.0
        %1316 = vmatmul.mubr.f32.gmra.mxu0 %v682
        %v1317 = vpop.f32.mrf.mxu0
        %v1318 = vadd.f32 %v629, %v1317
        %v1319 = vpop.f32.mrf.mxu0
        %v1320 = vadd.f32 %v629, %v1319
        %1321 = vmatprep.mubr.f32.mxu0 0.0
        %1322 = vmatmul.mubr.f32.gmra.mxu0 %v685
        %v1323 = vpop.f32.mrf.mxu0
        %v1324 = vadd.f32 %v634, %v1323
        %v1325 = vpop.f32.mrf.mxu0
        %v1326 = vadd.f32 %v634, %v1325
        %1327 = vmatprep.mubr.f32.mxu0 0.0
        %1328 = vmatmul.mubr.f32.gmra.mxu0 %v688
        %v1329 = vpop.f32.mrf.mxu0
        %v1330 = vadd.f32 %v639, %v1329
        %v1331 = vpop.f32.mrf.mxu0
        %v1332 = vadd.f32 %v639, %v1331
        %1333 = vdwg.mxu0
        %1334 = vmatprep.subr.mxu0 0.0
        %1335 = vmatpush1.msra.mxu0 0.0
        %1336 = vmatprep.subr.mxu0 0.0
        %1337 = vmatpush1.msra.mxu0 0.0
        %1338 = vmatprep.subr.mxu0 0.0
        %1339 = vmatpush1.msra.mxu0 0.0
        %1340 = vmatprep.subr.mxu0 0.0
        %1341 = vmatpush1.msra.mxu0 0.0
        %1342 = vmatprep.subr.mxu0 0.0
        %1343 = vmatpush1.msra.mxu0 0.0
        %1344 = vmatprep.subr.mxu0 0.0
        %1345 = vmatpush1.msra.mxu0 0.0
        %1346 = vmatprep.subr.mxu0 0.0
        %1347 = vmatpush1.msra.mxu0 0.0
        %1348 = vmatprep.subr.mxu0 %v486
        %1349 = vmatpush1.msra.mxu0 %v485
        %1350 = vmatprep.subr.mxu0 %v411
        %1351 = vmatpush1.msra.mxu0 %v410
        %1352 = vmatprep.subr.mxu0 %v332
        %1353 = vmatpush1.msra.mxu0 %v331
        %1354 = vmatprep.subr.mxu0 %v485
        %1355 = vmatpush1.msra.mxu0 %v484
        %1356 = vmatprep.subr.mxu0 %v410
        %1357 = vmatpush1.msra.mxu0 %v409
        %1358 = vmatprep.subr.mxu0 %v331
        %1359 = vmatpush1.msra.mxu0 %v330
        %1360 = vmatprep.subr.mxu0 %v484
        %1361 = vmatpush1.msra.mxu0 %v483
        %1362 = vmatprep.subr.mxu0 %v409
        %1363 = vmatpush1.msra.mxu0 %v408
        %1364 = vmatprep.subr.mxu0 %v330
        %1365 = vmatpush1.msra.mxu0 %v329
        %1366 = vmatprep.subr.mxu0 0.0
        %1367 = vmatpush2.msra.mxu0 0.0
        %1368 = vmatprep.subr.mxu0 0.0
        %1369 = vmatpush2.msra.mxu0 0.0
        %1370 = vmatprep.subr.mxu0 0.0
        %1371 = vmatpush2.msra.mxu0 0.0
        %1372 = vmatprep.subr.mxu0 0.0
        %1373 = vmatpush2.msra.mxu0 0.0
        %1374 = vmatprep.subr.mxu0 0.0
        %1375 = vmatpush2.msra.mxu0 0.0
        %1376 = vmatprep.subr.mxu0 0.0
        %1377 = vmatpush2.msra.mxu0 0.0
        %1378 = vmatprep.subr.mxu0 0.0
        %1379 = vmatpush2.msra.mxu0 0.0
        %1380 = vmatprep.subr.mxu0 0.0
        %1381 = vmatpush2.msra.mxu0 0.0
        %1382 = vmatprep.subr.mxu0 0.0
        %1383 = vmatpush2.msra.mxu0 0.0
        %1384 = vmatprep.subr.mxu0 0.0
        %1385 = vmatpush2.msra.mxu0 0.0
        %1386 = vmatprep.subr.mxu0 0.0
        %1387 = vmatpush2.msra.mxu0 0.0
        %1388 = vmatprep.subr.mxu0 0.0
        %1389 = vmatpush2.msra.mxu0 0.0
        %1390 = vmatprep.subr.mxu0 0.0
        %1391 = vmatpush2.msra.mxu0 0.0
        %1392 = vmatprep.subr.mxu0 0.0
        %1393 = vmatpush2.msra.mxu0 0.0
        %1394 = vmatprep.subr.mxu0 0.0
        %1395 = vmatpush2.msra.mxu0 0.0
        %1396 = vmatprep.subr.mxu0 0.0
        %1397 = vmatpush2.msra.mxu0 0.0
        %1398 = vmatprep.mubr.f32.mxu0 0.0
        %1399 = vmatmul.mubr.f32.gmra.mxu0 %v643
        %v1400 = vpop.f32.mrf.mxu0
        %v1401 = vadd.f32 %v564, %v1400
        %v1402 = vpop.f32.mrf.mxu0
        %v1403 = vadd.f32 %v564, %v1402
        %1404 = vmatprep.mubr.f32.mxu0 0.0
        %1405 = vmatmul.mubr.f32.gmra.mxu0 %v646
        %v1406 = vpop.f32.mrf.mxu0
        %v1407 = vadd.f32 %v569, %v1406
        %v1408 = vpop.f32.mrf.mxu0
        %v1409 = vadd.f32 %v569, %v1408
        %1410 = vmatprep.mubr.f32.mxu0 0.0
        %1411 = vmatmul.mubr.f32.gmra.mxu0 %v649
        %v1412 = vpop.f32.mrf.mxu0
        %v1413 = vadd.f32 %v574, %v1412
        %v1414 = vpop.f32.mrf.mxu0
        %v1415 = vadd.f32 %v574, %v1414
        %1416 = vmatprep.mubr.f32.mxu0 0.0
        %1417 = vmatmul.mubr.f32.gmra.mxu0 %v652
        %v1418 = vpop.f32.mrf.mxu0
        %v1419 = vadd.f32 %v579, %v1418
        %v1420 = vpop.f32.mrf.mxu0
        %v1421 = vadd.f32 %v579, %v1420
        %1422 = vmatprep.mubr.f32.mxu0 0.0
        %1423 = vmatmul.mubr.f32.gmra.mxu0 %v655
        %v1424 = vpop.f32.mrf.mxu0
        %v1425 = vadd.f32 %v584, %v1424
        %v1426 = vpop.f32.mrf.mxu0
        %v1427 = vadd.f32 %v584, %v1426
        %1428 = vmatprep.mubr.f32.mxu0 0.0
        %1429 = vmatmul.mubr.f32.gmra.mxu0 %v658
        %v1430 = vpop.f32.mrf.mxu0
        %v1431 = vadd.f32 %v589, %v1430
        %v1432 = vpop.f32.mrf.mxu0
        %v1433 = vadd.f32 %v589, %v1432
        %1434 = vmatprep.mubr.f32.mxu0 0.0
        %1435 = vmatmul.mubr.f32.gmra.mxu0 %v661
        %v1436 = vpop.f32.mrf.mxu0
        %v1437 = vadd.f32 %v594, %v1436
        %v1438 = vpop.f32.mrf.mxu0
        %v1439 = vadd.f32 %v594, %v1438
        %1440 = vmatprep.mubr.f32.mxu0 0.0
        %1441 = vmatmul.mubr.f32.gmra.mxu0 %v664
        %v1442 = vpop.f32.mrf.mxu0
        %v1443 = vadd.f32 %v599, %v1442
        %v1444 = vpop.f32.mrf.mxu0
        %v1445 = vadd.f32 %v599, %v1444
        %1446 = vmatprep.mubr.f32.mxu0 0.0
        %1447 = vmatmul.mubr.f32.gmra.mxu0 %v667
        %v1448 = vpop.f32.mrf.mxu0
        %v1449 = vadd.f32 %v604, %v1448
        %v1450 = vpop.f32.mrf.mxu0
        %v1451 = vadd.f32 %v604, %v1450
        %1452 = vmatprep.mubr.f32.mxu0 0.0
        %1453 = vmatmul.mubr.f32.gmra.mxu0 %v670
        %v1454 = vpop.f32.mrf.mxu0
        %v1455 = vadd.f32 %v609, %v1454
        %v1456 = vpop.f32.mrf.mxu0
        %v1457 = vadd.f32 %v609, %v1456
        %1458 = vmatprep.mubr.f32.mxu0 0.0
        %1459 = vmatmul.mubr.f32.gmra.mxu0 %v673
        %v1460 = vpop.f32.mrf.mxu0
        %v1461 = vadd.f32 %v614, %v1460
        %v1462 = vpop.f32.mrf.mxu0
        %v1463 = vadd.f32 %v614, %v1462
        %1464 = vmatprep.mubr.f32.mxu0 0.0
        %1465 = vmatmul.mubr.f32.gmra.mxu0 %v676
        %v1466 = vpop.f32.mrf.mxu0
        %v1467 = vadd.f32 %v619, %v1466
        %v1468 = vpop.f32.mrf.mxu0
        %v1469 = vadd.f32 %v619, %v1468
        %1470 = vmatprep.mubr.f32.mxu0 0.0
        %1471 = vmatmul.mubr.f32.gmra.mxu0 %v679
        %v1472 = vpop.f32.mrf.mxu0
        %v1473 = vadd.f32 %v624, %v1472
        %v1474 = vpop.f32.mrf.mxu0
        %v1475 = vadd.f32 %v624, %v1474
        %1476 = vmatprep.mubr.f32.mxu0 0.0
        %1477 = vmatmul.mubr.f32.gmra.mxu0 %v682
        %v1478 = vpop.f32.mrf.mxu0
        %v1479 = vadd.f32 %v629, %v1478
        %v1480 = vpop.f32.mrf.mxu0
        %v1481 = vadd.f32 %v629, %v1480
        %1482 = vmatprep.mubr.f32.mxu0 0.0
        %1483 = vmatmul.mubr.f32.gmra.mxu0 %v685
        %v1484 = vpop.f32.mrf.mxu0
        %v1485 = vadd.f32 %v634, %v1484
        %v1486 = vpop.f32.mrf.mxu0
        %v1487 = vadd.f32 %v634, %v1486
        %1488 = vmatprep.mubr.f32.mxu0 0.0
        %1489 = vmatmul.mubr.f32.gmra.mxu0 %v688
        %v1490 = vpop.f32.mrf.mxu0
        %v1491 = vadd.f32 %v639, %v1490
        %v1492 = vpop.f32.mrf.mxu0
        %v1493 = vadd.f32 %v639, %v1492
        %1494 = vdwg.mxu0
        %1495 = vmatprep.subr.mxu0 0.0
        %1496 = vmatpush1.msra.mxu0 0.0
        %1497 = vmatprep.subr.mxu0 0.0
        %1498 = vmatpush1.msra.mxu0 0.0
        %1499 = vmatprep.subr.mxu0 0.0
        %1500 = vmatpush1.msra.mxu0 0.0
        %1501 = vmatprep.subr.mxu0 0.0
        %1502 = vmatpush1.msra.mxu0 0.0
        %1503 = vmatprep.subr.mxu0 0.0
        %1504 = vmatpush1.msra.mxu0 0.0
        %1505 = vmatprep.subr.mxu0 0.0
        %1506 = vmatpush1.msra.mxu0 0.0
        %1507 = vmatprep.subr.mxu0 0.0
        %1508 = vmatpush1.msra.mxu0 0.0
        %1509 = vmatprep.subr.mxu0 %v488
        %1510 = vmatpush1.msra.mxu0 %v487
        %1511 = vmatprep.subr.mxu0 %v413
        %1512 = vmatpush1.msra.mxu0 %v412
        %1513 = vmatprep.subr.mxu0 %v334
        %1514 = vmatpush1.msra.mxu0 %v333
        %1515 = vmatprep.subr.mxu0 %v487
        %1516 = vmatpush1.msra.mxu0 %v486
        %1517 = vmatprep.subr.mxu0 %v412
        %1518 = vmatpush1.msra.mxu0 %v411
        %1519 = vmatprep.subr.mxu0 %v333
        %1520 = vmatpush1.msra.mxu0 %v332
        %1521 = vmatprep.subr.mxu0 %v486
        %1522 = vmatpush1.msra.mxu0 %v485
        %1523 = vmatprep.subr.mxu0 %v411
        %1524 = vmatpush1.msra.mxu0 %v410
        %1525 = vmatprep.subr.mxu0 %v332
        %1526 = vmatpush1.msra.mxu0 %v331
        %1527 = vmatprep.subr.mxu0 0.0
        %1528 = vmatpush2.msra.mxu0 0.0
        %1529 = vmatprep.subr.mxu0 0.0
        %1530 = vmatpush2.msra.mxu0 0.0
        %1531 = vmatprep.subr.mxu0 0.0
        %1532 = vmatpush2.msra.mxu0 0.0
        %1533 = vmatprep.subr.mxu0 0.0
        %1534 = vmatpush2.msra.mxu0 0.0
        %1535 = vmatprep.subr.mxu0 0.0
        %1536 = vmatpush2.msra.mxu0 0.0
        %1537 = vmatprep.subr.mxu0 0.0
        %1538 = vmatpush2.msra.mxu0 0.0
        %1539 = vmatprep.subr.mxu0 0.0
        %1540 = vmatpush2.msra.mxu0 0.0
        %1541 = vmatprep.subr.mxu0 0.0
        %1542 = vmatpush2.msra.mxu0 0.0
        %1543 = vmatprep.subr.mxu0 0.0
        %1544 = vmatpush2.msra.mxu0 0.0
        %1545 = vmatprep.subr.mxu0 0.0
        %1546 = vmatpush2.msra.mxu0 0.0
        %1547 = vmatprep.subr.mxu0 0.0
        %1548 = vmatpush2.msra.mxu0 0.0
        %1549 = vmatprep.subr.mxu0 0.0
        %1550 = vmatpush2.msra.mxu0 0.0
        %1551 = vmatprep.subr.mxu0 0.0
        %1552 = vmatpush2.msra.mxu0 0.0
        %1553 = vmatprep.subr.mxu0 0.0
        %1554 = vmatpush2.msra.mxu0 0.0
        %1555 = vmatprep.subr.mxu0 0.0
        %1556 = vmatpush2.msra.mxu0 0.0
        %1557 = vmatprep.subr.mxu0 0.0
        %1558 = vmatpush2.msra.mxu0 0.0
        %1559 = vmatprep.mubr.f32.mxu0 0.0
        %1560 = vmatmul.mubr.f32.gmra.mxu0 %v643
        %v1561 = vpop.f32.mrf.mxu0
        %v1562 = vadd.f32 %v564, %v1561
        %v1563 = vpop.f32.mrf.mxu0
        %v1564 = vadd.f32 %v564, %v1563
        %1565 = vmatprep.mubr.f32.mxu0 0.0
        %1566 = vmatmul.mubr.f32.gmra.mxu0 %v646
        %v1567 = vpop.f32.mrf.mxu0
        %v1568 = vadd.f32 %v569, %v1567
        %v1569 = vpop.f32.mrf.mxu0
        %v1570 = vadd.f32 %v569, %v1569
        %1571 = vmatprep.mubr.f32.mxu0 0.0
        %1572 = vmatmul.mubr.f32.gmra.mxu0 %v649
        %v1573 = vpop.f32.mrf.mxu0
        %v1574 = vadd.f32 %v574, %v1573
        %v1575 = vpop.f32.mrf.mxu0
        %v1576 = vadd.f32 %v574, %v1575
        %1577 = vmatprep.mubr.f32.mxu0 0.0
        %1578 = vmatmul.mubr.f32.gmra.mxu0 %v652
        %v1579 = vpop.f32.mrf.mxu0
        %v1580 = vadd.f32 %v579, %v1579
        %v1581 = vpop.f32.mrf.mxu0
        %v1582 = vadd.f32 %v579, %v1581
        %1583 = vmatprep.mubr.f32.mxu0 0.0
        %1584 = vmatmul.mubr.f32.gmra.mxu0 %v655
        %v1585 = vpop.f32.mrf.mxu0
        %v1586 = vadd.f32 %v584, %v1585
        %v1587 = vpop.f32.mrf.mxu0
        %v1588 = vadd.f32 %v584, %v1587
        %1589 = vmatprep.mubr.f32.mxu0 0.0
        %1590 = vmatmul.mubr.f32.gmra.mxu0 %v658
        %v1591 = vpop.f32.mrf.mxu0
        %v1592 = vadd.f32 %v589, %v1591
        %v1593 = vpop.f32.mrf.mxu0
        %v1594 = vadd.f32 %v589, %v1593
        %1595 = vmatprep.mubr.f32.mxu0 0.0
        %1596 = vmatmul.mubr.f32.gmra.mxu0 %v661
        %v1597 = vpop.f32.mrf.mxu0
        %v1598 = vadd.f32 %v594, %v1597
        %v1599 = vpop.f32.mrf.mxu0
        %v1600 = vadd.f32 %v594, %v1599
        %1601 = vmatprep.mubr.f32.mxu0 0.0
        %1602 = vmatmul.mubr.f32.gmra.mxu0 %v664
        %v1603 = vpop.f32.mrf.mxu0
        %v1604 = vadd.f32 %v599, %v1603
        %v1605 = vpop.f32.mrf.mxu0
        %v1606 = vadd.f32 %v599, %v1605
        %1607 = vmatprep.mubr.f32.mxu0 0.0
        %1608 = vmatmul.mubr.f32.gmra.mxu0 %v667
        %v1609 = vpop.f32.mrf.mxu0
        %v1610 = vadd.f32 %v604, %v1609
        %v1611 = vpop.f32.mrf.mxu0
        %v1612 = vadd.f32 %v604, %v1611
        %1613 = vmatprep.mubr.f32.mxu0 0.0
        %1614 = vmatmul.mubr.f32.gmra.mxu0 %v670
        %v1615 = vpop.f32.mrf.mxu0
        %v1616 = vadd.f32 %v609, %v1615
        %v1617 = vpop.f32.mrf.mxu0
        %v1618 = vadd.f32 %v609, %v1617
        %1619 = vmatprep.mubr.f32.mxu0 0.0
        %1620 = vmatmul.mubr.f32.gmra.mxu0 %v673
        %v1621 = vpop.f32.mrf.mxu0
        %v1622 = vadd.f32 %v614, %v1621
        %v1623 = vpop.f32.mrf.mxu0
        %v1624 = vadd.f32 %v614, %v1623
        %1625 = vmatprep.mubr.f32.mxu0 0.0
        %1626 = vmatmul.mubr.f32.gmra.mxu0 %v676
        %v1627 = vpop.f32.mrf.mxu0
        %v1628 = vadd.f32 %v619, %v1627
        %v1629 = vpop.f32.mrf.mxu0
        %v1630 = vadd.f32 %v619, %v1629
        %1631 = vmatprep.mubr.f32.mxu0 0.0
        %1632 = vmatmul.mubr.f32.gmra.mxu0 %v679
        %v1633 = vpop.f32.mrf.mxu0
        %v1634 = vadd.f32 %v624, %v1633
        %v1635 = vpop.f32.mrf.mxu0
        %v1636 = vadd.f32 %v624, %v1635
        %1637 = vmatprep.mubr.f32.mxu0 0.0
        %1638 = vmatmul.mubr.f32.gmra.mxu0 %v682
        %v1639 = vpop.f32.mrf.mxu0
        %v1640 = vadd.f32 %v629, %v1639
        %v1641 = vpop.f32.mrf.mxu0
        %v1642 = vadd.f32 %v629, %v1641
        %1643 = vmatprep.mubr.f32.mxu0 0.0
        %1644 = vmatmul.mubr.f32.gmra.mxu0 %v685
        %v1645 = vpop.f32.mrf.mxu0
        %v1646 = vadd.f32 %v634, %v1645
        %v1647 = vpop.f32.mrf.mxu0
        %v1648 = vadd.f32 %v634, %v1647
        %1649 = vmatprep.mubr.f32.mxu0 0.0
        %1650 = vmatmul.mubr.f32.gmra.mxu0 %v688
        %v1651 = vpop.f32.mrf.mxu0
        %v1652 = vadd.f32 %v639, %v1651
        %v1653 = vpop.f32.mrf.mxu0
        %v1654 = vadd.f32 %v639, %v1653
        %1655 = vdwg.mxu0
        %1656 = vmatprep.subr.mxu0 0.0
        %1657 = vmatpush1.msra.mxu0 0.0
        %1658 = vmatprep.subr.mxu0 0.0
        %1659 = vmatpush1.msra.mxu0 0.0
        %1660 = vmatprep.subr.mxu0 0.0
        %1661 = vmatpush1.msra.mxu0 0.0
        %1662 = vmatprep.subr.mxu0 0.0
        %1663 = vmatpush1.msra.mxu0 0.0
        %1664 = vmatprep.subr.mxu0 0.0
        %1665 = vmatpush1.msra.mxu0 0.0
        %1666 = vmatprep.subr.mxu0 0.0
        %1667 = vmatpush1.msra.mxu0 0.0
        %1668 = vmatprep.subr.mxu0 0.0
        %1669 = vmatpush1.msra.mxu0 0.0
        %1670 = vmatprep.subr.mxu0 %v490
        %1671 = vmatpush1.msra.mxu0 %v489
        %1672 = vmatprep.subr.mxu0 %v415
        %1673 = vmatpush1.msra.mxu0 %v414
        %1674 = vmatprep.subr.mxu0 %v336
        %1675 = vmatpush1.msra.mxu0 %v335
        %1676 = vmatprep.subr.mxu0 %v489
        %1677 = vmatpush1.msra.mxu0 %v488
        %1678 = vmatprep.subr.mxu0 %v414
        %1679 = vmatpush1.msra.mxu0 %v413
        %1680 = vmatprep.subr.mxu0 %v335
        %1681 = vmatpush1.msra.mxu0 %v334
        %1682 = vmatprep.subr.mxu0 %v488
        %1683 = vmatpush1.msra.mxu0 %v487
        %1684 = vmatprep.subr.mxu0 %v413
        %1685 = vmatpush1.msra.mxu0 %v412
        %1686 = vmatprep.subr.mxu0 %v334
        %1687 = vmatpush1.msra.mxu0 %v333
        %1688 = vmatprep.subr.mxu0 0.0
        %1689 = vmatpush2.msra.mxu0 0.0
        %1690 = vmatprep.subr.mxu0 0.0
        %1691 = vmatpush2.msra.mxu0 0.0
        %1692 = vmatprep.subr.mxu0 0.0
        %1693 = vmatpush2.msra.mxu0 0.0
        %1694 = vmatprep.subr.mxu0 0.0
        %1695 = vmatpush2.msra.mxu0 0.0
        %1696 = vmatprep.subr.mxu0 0.0
        %1697 = vmatpush2.msra.mxu0 0.0
        %1698 = vmatprep.subr.mxu0 0.0
        %1699 = vmatpush2.msra.mxu0 0.0
        %1700 = vmatprep.subr.mxu0 0.0
        %1701 = vmatpush2.msra.mxu0 0.0
        %1702 = vmatprep.subr.mxu0 0.0
        %1703 = vmatpush2.msra.mxu0 0.0
        %1704 = vmatprep.subr.mxu0 0.0
        %1705 = vmatpush2.msra.mxu0 0.0
        %1706 = vmatprep.subr.mxu0 0.0
        %1707 = vmatpush2.msra.mxu0 0.0
        %1708 = vmatprep.subr.mxu0 0.0
        %1709 = vmatpush2.msra.mxu0 0.0
        %1710 = vmatprep.subr.mxu0 0.0
        %1711 = vmatpush2.msra.mxu0 0.0
        %1712 = vmatprep.subr.mxu0 0.0
        %1713 = vmatpush2.msra.mxu0 0.0
        %1714 = vmatprep.subr.mxu0 0.0
        %1715 = vmatpush2.msra.mxu0 0.0
        %1716 = vmatprep.subr.mxu0 0.0
        %1717 = vmatpush2.msra.mxu0 0.0
        %1718 = vmatprep.subr.mxu0 0.0
        %1719 = vmatpush2.msra.mxu0 0.0
        %1720 = vmatprep.mubr.f32.mxu0 0.0
        %1721 = vmatmul.mubr.f32.gmra.mxu0 %v643
        %v1722 = vpop.f32.mrf.mxu0
        %v1723 = vadd.f32 %v564, %v1722
        %v1724 = vpop.f32.mrf.mxu0
        %v1725 = vadd.f32 %v564, %v1724
        %1726 = vmatprep.mubr.f32.mxu0 0.0
        %1727 = vmatmul.mubr.f32.gmra.mxu0 %v646
        %v1728 = vpop.f32.mrf.mxu0
        %v1729 = vadd.f32 %v569, %v1728
        %v1730 = vpop.f32.mrf.mxu0
        %v1731 = vadd.f32 %v569, %v1730
        %1732 = vmatprep.mubr.f32.mxu0 0.0
        %1733 = vmatmul.mubr.f32.gmra.mxu0 %v649
        %v1734 = vpop.f32.mrf.mxu0
        %v1735 = vadd.f32 %v574, %v1734
        %v1736 = vpop.f32.mrf.mxu0
        %v1737 = vadd.f32 %v574, %v1736
        %1738 = vmatprep.mubr.f32.mxu0 0.0
        %1739 = vmatmul.mubr.f32.gmra.mxu0 %v652
        %v1740 = vpop.f32.mrf.mxu0
        %v1741 = vadd.f32 %v579, %v1740
        %v1742 = vpop.f32.mrf.mxu0
        %v1743 = vadd.f32 %v579, %v1742
        %1744 = vmatprep.mubr.f32.mxu0 0.0
        %1745 = vmatmul.mubr.f32.gmra.mxu0 %v655
        %v1746 = vpop.f32.mrf.mxu0
        %v1747 = vadd.f32 %v584, %v1746
        %v1748 = vpop.f32.mrf.mxu0
        %v1749 = vadd.f32 %v584, %v1748
        %1750 = vmatprep.mubr.f32.mxu0 0.0
        %1751 = vmatmul.mubr.f32.gmra.mxu0 %v658
        %v1752 = vpop.f32.mrf.mxu0
        %v1753 = vadd.f32 %v589, %v1752
        %v1754 = vpop.f32.mrf.mxu0
        %v1755 = vadd.f32 %v589, %v1754
        %1756 = vmatprep.mubr.f32.mxu0 0.0
        %1757 = vmatmul.mubr.f32.gmra.mxu0 %v661
        %v1758 = vpop.f32.mrf.mxu0
        %v1759 = vadd.f32 %v594, %v1758
        %v1760 = vpop.f32.mrf.mxu0
        %v1761 = vadd.f32 %v594, %v1760
        %1762 = vmatprep.mubr.f32.mxu0 0.0
        %1763 = vmatmul.mubr.f32.gmra.mxu0 %v664
        %v1764 = vpop.f32.mrf.mxu0
        %v1765 = vadd.f32 %v599, %v1764
        %v1766 = vpop.f32.mrf.mxu0
        %v1767 = vadd.f32 %v599, %v1766
        %1768 = vmatprep.mubr.f32.mxu0 0.0
        %1769 = vmatmul.mubr.f32.gmra.mxu0 %v667
        %v1770 = vpop.f32.mrf.mxu0
        %v1771 = vadd.f32 %v604, %v1770
        %v1772 = vpop.f32.mrf.mxu0
        %v1773 = vadd.f32 %v604, %v1772
        %1774 = vmatprep.mubr.f32.mxu0 0.0
        %1775 = vmatmul.mubr.f32.gmra.mxu0 %v670
        %v1776 = vpop.f32.mrf.mxu0
        %v1777 = vadd.f32 %v609, %v1776
        %v1778 = vpop.f32.mrf.mxu0
        %v1779 = vadd.f32 %v609, %v1778
        %1780 = vmatprep.mubr.f32.mxu0 0.0
        %1781 = vmatmul.mubr.f32.gmra.mxu0 %v673
        %v1782 = vpop.f32.mrf.mxu0
        %v1783 = vadd.f32 %v614, %v1782
        %v1784 = vpop.f32.mrf.mxu0
        %v1785 = vadd.f32 %v614, %v1784
        %1786 = vmatprep.mubr.f32.mxu0 0.0
        %1787 = vmatmul.mubr.f32.gmra.mxu0 %v676
        %v1788 = vpop.f32.mrf.mxu0
        %v1789 = vadd.f32 %v619, %v1788
        %v1790 = vpop.f32.mrf.mxu0
        %v1791 = vadd.f32 %v619, %v1790
        %1792 = vmatprep.mubr.f32.mxu0 0.0
        %1793 = vmatmul.mubr.f32.gmra.mxu0 %v679
        %v1794 = vpop.f32.mrf.mxu0
        %v1795 = vadd.f32 %v624, %v1794
        %v1796 = vpop.f32.mrf.mxu0
        %v1797 = vadd.f32 %v624, %v1796
        %1798 = vmatprep.mubr.f32.mxu0 0.0
        %1799 = vmatmul.mubr.f32.gmra.mxu0 %v682
        %v1800 = vpop.f32.mrf.mxu0
        %v1801 = vadd.f32 %v629, %v1800
        %v1802 = vpop.f32.mrf.mxu0
        %v1803 = vadd.f32 %v629, %v1802
        %1804 = vmatprep.mubr.f32.mxu0 0.0
        %1805 = vmatmul.mubr.f32.gmra.mxu0 %v685
        %v1806 = vpop.f32.mrf.mxu0
        %v1807 = vadd.f32 %v634, %v1806
        %v1808 = vpop.f32.mrf.mxu0
        %v1809 = vadd.f32 %v634, %v1808
        %1810 = vmatprep.mubr.f32.mxu0 0.0
        %1811 = vmatmul.mubr.f32.gmra.mxu0 %v688
        %v1812 = vpop.f32.mrf.mxu0
        %v1813 = vadd.f32 %v639, %v1812
        %v1814 = vpop.f32.mrf.mxu0
        %v1815 = vadd.f32 %v639, %v1814
        %1816 = vdwg.mxu0
        %1817 = vmatprep.subr.mxu0 0.0
        %1818 = vmatpush1.msra.mxu0 0.0
        %1819 = vmatprep.subr.mxu0 0.0
        %1820 = vmatpush1.msra.mxu0 0.0
        %1821 = vmatprep.subr.mxu0 0.0
        %1822 = vmatpush1.msra.mxu0 0.0
        %1823 = vmatprep.subr.mxu0 0.0
        %1824 = vmatpush1.msra.mxu0 0.0
        %1825 = vmatprep.subr.mxu0 0.0
        %1826 = vmatpush1.msra.mxu0 0.0
        %1827 = vmatprep.subr.mxu0 0.0
        %1828 = vmatpush1.msra.mxu0 0.0
        %1829 = vmatprep.subr.mxu0 0.0
        %1830 = vmatpush1.msra.mxu0 0.0
        %1831 = vmatprep.subr.mxu0 %v492
        %1832 = vmatpush1.msra.mxu0 %v491
        %1833 = vmatprep.subr.mxu0 %v417
        %1834 = vmatpush1.msra.mxu0 %v416
        %1835 = vmatprep.subr.mxu0 %v338
        %1836 = vmatpush1.msra.mxu0 %v337
        %1837 = vmatprep.subr.mxu0 %v491
        %1838 = vmatpush1.msra.mxu0 %v490
        %1839 = vmatprep.subr.mxu0 %v416
        %1840 = vmatpush1.msra.mxu0 %v415
        %1841 = vmatprep.subr.mxu0 %v337
        %1842 = vmatpush1.msra.mxu0 %v336
        %1843 = vmatprep.subr.mxu0 %v490
        %1844 = vmatpush1.msra.mxu0 %v489
        %1845 = vmatprep.subr.mxu0 %v415
        %1846 = vmatpush1.msra.mxu0 %v414
        %1847 = vmatprep.subr.mxu0 %v336
        %1848 = vmatpush1.msra.mxu0 %v335
        %1849 = vmatprep.subr.mxu0 0.0
        %1850 = vmatpush2.msra.mxu0 0.0
        %1851 = vmatprep.subr.mxu0 0.0
        %1852 = vmatpush2.msra.mxu0 0.0
        %1853 = vmatprep.subr.mxu0 0.0
        %1854 = vmatpush2.msra.mxu0 0.0
        %1855 = vmatprep.subr.mxu0 0.0
        %1856 = vmatpush2.msra.mxu0 0.0
        %1857 = vmatprep.subr.mxu0 0.0
        %1858 = vmatpush2.msra.mxu0 0.0
        %1859 = vmatprep.subr.mxu0 0.0
        %1860 = vmatpush2.msra.mxu0 0.0
        %1861 = vmatprep.subr.mxu0 0.0
        %1862 = vmatpush2.msra.mxu0 0.0
        %1863 = vmatprep.subr.mxu0 0.0
        %1864 = vmatpush2.msra.mxu0 0.0
        %1865 = vmatprep.subr.mxu0 0.0
        %1866 = vmatpush2.msra.mxu0 0.0
        %1867 = vmatprep.subr.mxu0 0.0
        %1868 = vmatpush2.msra.mxu0 0.0
        %1869 = vmatprep.subr.mxu0 0.0
        %1870 = vmatpush2.msra.mxu0 0.0
        %1871 = vmatprep.subr.mxu0 0.0
        %1872 = vmatpush2.msra.mxu0 0.0
        %1873 = vmatprep.subr.mxu0 0.0
        %1874 = vmatpush2.msra.mxu0 0.0
        %1875 = vmatprep.subr.mxu0 0.0
        %1876 = vmatpush2.msra.mxu0 0.0
        %1877 = vmatprep.subr.mxu0 0.0
        %1878 = vmatpush2.msra.mxu0 0.0
        %1879 = vmatprep.subr.mxu0 0.0
        %1880 = vmatpush2.msra.mxu0 0.0
        %1881 = vmatprep.mubr.f32.mxu0 0.0
        %1882 = vmatmul.mubr.f32.gmra.mxu0 %v643
        %v1883 = vpop.f32.mrf.mxu0
        %v1884 = vadd.f32 %v564, %v1883
        %v1885 = vpop.f32.mrf.mxu0
        %v1886 = vadd.f32 %v564, %v1885
        %1887 = vmatprep.mubr.f32.mxu0 0.0
        %1888 = vmatmul.mubr.f32.gmra.mxu0 %v646
        %v1889 = vpop.f32.mrf.mxu0
        %v1890 = vadd.f32 %v569, %v1889
        %v1891 = vpop.f32.mrf.mxu0
        %v1892 = vadd.f32 %v569, %v1891
        %1893 = vmatprep.mubr.f32.mxu0 0.0
        %1894 = vmatmul.mubr.f32.gmra.mxu0 %v649
        %v1895 = vpop.f32.mrf.mxu0
        %v1896 = vadd.f32 %v574, %v1895
        %v1897 = vpop.f32.mrf.mxu0
        %v1898 = vadd.f32 %v574, %v1897
        %1899 = vmatprep.mubr.f32.mxu0 0.0
        %1900 = vmatmul.mubr.f32.gmra.mxu0 %v652
        %v1901 = vpop.f32.mrf.mxu0
        %v1902 = vadd.f32 %v579, %v1901
        %v1903 = vpop.f32.mrf.mxu0
        %v1904 = vadd.f32 %v579, %v1903
        %1905 = vmatprep.mubr.f32.mxu0 0.0
        %1906 = vmatmul.mubr.f32.gmra.mxu0 %v655
        %v1907 = vpop.f32.mrf.mxu0
        %v1908 = vadd.f32 %v584, %v1907
        %v1909 = vpop.f32.mrf.mxu0
        %v1910 = vadd.f32 %v584, %v1909
        %1911 = vmatprep.mubr.f32.mxu0 0.0
        %1912 = vmatmul.mubr.f32.gmra.mxu0 %v658
        %v1913 = vpop.f32.mrf.mxu0
        %v1914 = vadd.f32 %v589, %v1913
        %v1915 = vpop.f32.mrf.mxu0
        %v1916 = vadd.f32 %v589, %v1915
        %1917 = vmatprep.mubr.f32.mxu0 0.0
        %1918 = vmatmul.mubr.f32.gmra.mxu0 %v661
        %v1919 = vpop.f32.mrf.mxu0
        %v1920 = vadd.f32 %v594, %v1919
        %v1921 = vpop.f32.mrf.mxu0
        %v1922 = vadd.f32 %v594, %v1921
        %1923 = vmatprep.mubr.f32.mxu0 0.0
        %1924 = vmatmul.mubr.f32.gmra.mxu0 %v664
        %v1925 = vpop.f32.mrf.mxu0
        %v1926 = vadd.f32 %v599, %v1925
        %v1927 = vpop.f32.mrf.mxu0
        %v1928 = vadd.f32 %v599, %v1927
        %1929 = vmatprep.mubr.f32.mxu0 0.0
        %1930 = vmatmul.mubr.f32.gmra.mxu0 %v667
        %v1931 = vpop.f32.mrf.mxu0
        %v1932 = vadd.f32 %v604, %v1931
        %v1933 = vpop.f32.mrf.mxu0
        %v1934 = vadd.f32 %v604, %v1933
        %1935 = vmatprep.mubr.f32.mxu0 0.0
        %1936 = vmatmul.mubr.f32.gmra.mxu0 %v670
        %v1937 = vpop.f32.mrf.mxu0
        %v1938 = vadd.f32 %v609, %v1937
        %v1939 = vpop.f32.mrf.mxu0
        %v1940 = vadd.f32 %v609, %v1939
        %1941 = vmatprep.mubr.f32.mxu0 0.0
        %1942 = vmatmul.mubr.f32.gmra.mxu0 %v673
        %v1943 = vpop.f32.mrf.mxu0
        %v1944 = vadd.f32 %v614, %v1943
        %v1945 = vpop.f32.mrf.mxu0
        %v1946 = vadd.f32 %v614, %v1945
        %1947 = vmatprep.mubr.f32.mxu0 0.0
        %1948 = vmatmul.mubr.f32.gmra.mxu0 %v676
        %v1949 = vpop.f32.mrf.mxu0
        %v1950 = vadd.f32 %v619, %v1949
        %v1951 = vpop.f32.mrf.mxu0
        %v1952 = vadd.f32 %v619, %v1951
        %1953 = vmatprep.mubr.f32.mxu0 0.0
        %1954 = vmatmul.mubr.f32.gmra.mxu0 %v679
        %v1955 = vpop.f32.mrf.mxu0
        %v1956 = vadd.f32 %v624, %v1955
        %v1957 = vpop.f32.mrf.mxu0
        %v1958 = vadd.f32 %v624, %v1957
        %1959 = vmatprep.mubr.f32.mxu0 0.0
        %1960 = vmatmul.mubr.f32.gmra.mxu0 %v682
        %v1961 = vpop.f32.mrf.mxu0
        %v1962 = vadd.f32 %v629, %v1961
        %v1963 = vpop.f32.mrf.mxu0
        %v1964 = vadd.f32 %v629, %v1963
        %1965 = vmatprep.mubr.f32.mxu0 0.0
        %1966 = vmatmul.mubr.f32.gmra.mxu0 %v685
        %v1967 = vpop.f32.mrf.mxu0
        %v1968 = vadd.f32 %v634, %v1967
        %v1969 = vpop.f32.mrf.mxu0
        %v1970 = vadd.f32 %v634, %v1969
        %1971 = vmatprep.mubr.f32.mxu0 0.0
        %1972 = vmatmul.mubr.f32.gmra.mxu0 %v688
        %v1973 = vpop.f32.mrf.mxu0
        %v1974 = vadd.f32 %v639, %v1973
        %v1975 = vpop.f32.mrf.mxu0
        %v1976 = vadd.f32 %v639, %v1975
        %1977 = vdwg.mxu0
        %1978 = vmatprep.subr.mxu0 0.0
        %1979 = vmatpush1.msra.mxu0 0.0
        %1980 = vmatprep.subr.mxu0 0.0
        %1981 = vmatpush1.msra.mxu0 0.0
        %1982 = vmatprep.subr.mxu0 0.0
        %1983 = vmatpush1.msra.mxu0 0.0
        %1984 = vmatprep.subr.mxu0 0.0
        %1985 = vmatpush1.msra.mxu0 0.0
        %1986 = vmatprep.subr.mxu0 0.0
        %1987 = vmatpush1.msra.mxu0 0.0
        %1988 = vmatprep.subr.mxu0 0.0
        %1989 = vmatpush1.msra.mxu0 0.0
        %1990 = vmatprep.subr.mxu0 0.0
        %1991 = vmatpush1.msra.mxu0 0.0
        %1992 = vmatprep.subr.mxu0 %v527
        %1993 = vmatpush1.msra.mxu0 %v518
        %1994 = vmatprep.subr.mxu0 %v523
        %1995 = vmatpush1.msra.mxu0 %v514
        %1996 = vmatprep.subr.mxu0 %v340
        %1997 = vmatpush1.msra.mxu0 %v339
        %1998 = vmatprep.subr.mxu0 %v518
        %1999 = vmatpush1.msra.mxu0 %v492
        %2000 = vmatprep.subr.mxu0 %v514
        %2001 = vmatpush1.msra.mxu0 %v417
        %2002 = vmatprep.subr.mxu0 %v339
        %2003 = vmatpush1.msra.mxu0 %v338
        %2004 = vmatprep.subr.mxu0 %v492
        %2005 = vmatpush1.msra.mxu0 %v491
        %2006 = vmatprep.subr.mxu0 %v417
        %2007 = vmatpush1.msra.mxu0 %v416
        %2008 = vmatprep.subr.mxu0 %v338
        %2009 = vmatpush1.msra.mxu0 %v337
        %2010 = vmatprep.subr.mxu0 0.0
        %2011 = vmatpush2.msra.mxu0 0.0
        %2012 = vmatprep.subr.mxu0 0.0
        %2013 = vmatpush2.msra.mxu0 0.0
        %2014 = vmatprep.subr.mxu0 0.0
        %2015 = vmatpush2.msra.mxu0 0.0
        %2016 = vmatprep.subr.mxu0 0.0
        %2017 = vmatpush2.msra.mxu0 0.0
        %2018 = vmatprep.subr.mxu0 0.0
        %2019 = vmatpush2.msra.mxu0 0.0
        %2020 = vmatprep.subr.mxu0 0.0
        %2021 = vmatpush2.msra.mxu0 0.0
        %2022 = vmatprep.subr.mxu0 0.0
        %2023 = vmatpush2.msra.mxu0 0.0
        %2024 = vmatprep.subr.mxu0 0.0
        %2025 = vmatpush2.msra.mxu0 0.0
        %2026 = vmatprep.subr.mxu0 0.0
        %2027 = vmatpush2.msra.mxu0 0.0
        %2028 = vmatprep.subr.mxu0 0.0
        %2029 = vmatpush2.msra.mxu0 0.0
        %2030 = vmatprep.subr.mxu0 0.0
        %2031 = vmatpush2.msra.mxu0 0.0
        %2032 = vmatprep.subr.mxu0 0.0
        %2033 = vmatpush2.msra.mxu0 0.0
        %2034 = vmatprep.subr.mxu0 0.0
        %2035 = vmatpush2.msra.mxu0 0.0
        %2036 = vmatprep.subr.mxu0 0.0
        %2037 = vmatpush2.msra.mxu0 0.0
        %2038 = vmatprep.subr.mxu0 0.0
        %2039 = vmatpush2.msra.mxu0 0.0
        %2040 = vmatprep.subr.mxu0 0.0
        %2041 = vmatpush2.msra.mxu0 0.0
        %2042 = vmatprep.mubr.f32.mxu0 0.0
        %2043 = vmatmul.mubr.f32.gmra.mxu0 %v643
        %v2044 = vpop.f32.mrf.mxu0
        %v2045 = vadd.f32 %v564, %v2044
        %v2046 = vpop.f32.mrf.mxu0
        %v2047 = vadd.f32 %v564, %v2046
        %2048 = vmatprep.mubr.f32.mxu0 0.0
        %2049 = vmatmul.mubr.f32.gmra.mxu0 %v646
        %v2050 = vpop.f32.mrf.mxu0
        %v2051 = vadd.f32 %v569, %v2050
        %v2052 = vpop.f32.mrf.mxu0
        %v2053 = vadd.f32 %v569, %v2052
        %2054 = vmatprep.mubr.f32.mxu0 0.0
        %2055 = vmatmul.mubr.f32.gmra.mxu0 %v649
        %v2056 = vpop.f32.mrf.mxu0
        %v2057 = vadd.f32 %v574, %v2056
        %v2058 = vpop.f32.mrf.mxu0
        %v2059 = vadd.f32 %v574, %v2058
        %2060 = vmatprep.mubr.f32.mxu0 0.0
        %2061 = vmatmul.mubr.f32.gmra.mxu0 %v652
        %v2062 = vpop.f32.mrf.mxu0
        %v2063 = vadd.f32 %v579, %v2062
        %v2064 = vpop.f32.mrf.mxu0
        %v2065 = vadd.f32 %v579, %v2064
        %2066 = vmatprep.mubr.f32.mxu0 0.0
        %2067 = vmatmul.mubr.f32.gmra.mxu0 %v655
        %v2068 = vpop.f32.mrf.mxu0
        %v2069 = vadd.f32 %v584, %v2068
        %v2070 = vpop.f32.mrf.mxu0
        %v2071 = vadd.f32 %v584, %v2070
        %2072 = vmatprep.mubr.f32.mxu0 0.0
        %2073 = vmatmul.mubr.f32.gmra.mxu0 %v658
        %v2074 = vpop.f32.mrf.mxu0
        %v2075 = vadd.f32 %v589, %v2074
        %v2076 = vpop.f32.mrf.mxu0
        %v2077 = vadd.f32 %v589, %v2076
        %2078 = vmatprep.mubr.f32.mxu0 0.0
        %2079 = vmatmul.mubr.f32.gmra.mxu0 %v661
        %v2080 = vpop.f32.mrf.mxu0
        %v2081 = vadd.f32 %v594, %v2080
        %v2082 = vpop.f32.mrf.mxu0
        %v2083 = vadd.f32 %v594, %v2082
        %2084 = vmatprep.mubr.f32.mxu0 0.0
        %2085 = vmatmul.mubr.f32.gmra.mxu0 %v664
        %v2086 = vpop.f32.mrf.mxu0
        %v2087 = vadd.f32 %v599, %v2086
        %v2088 = vpop.f32.mrf.mxu0
        %v2089 = vadd.f32 %v599, %v2088
        %2090 = vmatprep.mubr.f32.mxu0 0.0
        %2091 = vmatmul.mubr.f32.gmra.mxu0 %v667
        %v2092 = vpop.f32.mrf.mxu0
        %v2093 = vadd.f32 %v604, %v2092
        %v2094 = vpop.f32.mrf.mxu0
        %v2095 = vadd.f32 %v604, %v2094
        %2096 = vmatprep.mubr.f32.mxu0 0.0
        %2097 = vmatmul.mubr.f32.gmra.mxu0 %v670
        %v2098 = vpop.f32.mrf.mxu0
        %v2099 = vadd.f32 %v609, %v2098
        %v2100 = vpop.f32.mrf.mxu0
        %v2101 = vadd.f32 %v609, %v2100
        %2102 = vmatprep.mubr.f32.mxu0 0.0
        %2103 = vmatmul.mubr.f32.gmra.mxu0 %v673
        %v2104 = vpop.f32.mrf.mxu0
        %v2105 = vadd.f32 %v614, %v2104
        %v2106 = vpop.f32.mrf.mxu0
        %v2107 = vadd.f32 %v614, %v2106
        %2108 = vmatprep.mubr.f32.mxu0 0.0
        %2109 = vmatmul.mubr.f32.gmra.mxu0 %v676
        %v2110 = vpop.f32.mrf.mxu0
        %v2111 = vadd.f32 %v619, %v2110
        %v2112 = vpop.f32.mrf.mxu0
        %v2113 = vadd.f32 %v619, %v2112
        %2114 = vmatprep.mubr.f32.mxu0 0.0
        %2115 = vmatmul.mubr.f32.gmra.mxu0 %v679
        %v2116 = vpop.f32.mrf.mxu0
        %v2117 = vadd.f32 %v624, %v2116
        %v2118 = vpop.f32.mrf.mxu0
        %v2119 = vadd.f32 %v624, %v2118
        %2120 = vmatprep.mubr.f32.mxu0 0.0
        %2121 = vmatmul.mubr.f32.gmra.mxu0 %v682
        %v2122 = vpop.f32.mrf.mxu0
        %v2123 = vadd.f32 %v629, %v2122
        %v2124 = vpop.f32.mrf.mxu0
        %v2125 = vadd.f32 %v629, %v2124
        %2126 = vmatprep.mubr.f32.mxu0 0.0
        %2127 = vmatmul.mubr.f32.gmra.mxu0 %v685
        %v2128 = vpop.f32.mrf.mxu0
        %v2129 = vadd.f32 %v634, %v2128
        %v2130 = vpop.f32.mrf.mxu0
        %v2131 = vadd.f32 %v634, %v2130
        %2132 = vmatprep.mubr.f32.mxu0 0.0
        %2133 = vmatmul.mubr.f32.gmra.mxu0 %v688
        %v2134 = vpop.f32.mrf.mxu0
        %v2135 = vadd.f32 %v639, %v2134
        %v2136 = vpop.f32.mrf.mxu0
        %v2137 = vadd.f32 %v639, %v2136
        %2138 = vdwg.mxu0
        %v2139 = vmax.f32 %v757, 0.0
        %v2140 = vmax.f32 %v759, 0.0
        %v2141 = vmax.f32 %v918, 0.0
        %v2142 = vmax.f32 %v920, 0.0
        %v2143 = vmax.f32 %v1079, 0.0
        %v2144 = vmax.f32 %v1081, 0.0
        %v2145 = vmax.f32 %v1240, 0.0
        %v2146 = vmax.f32 %v1242, 0.0
        %v2147 = vmax.f32 %v1401, 0.0
        %v2148 = vmax.f32 %v1403, 0.0
        %v2149 = vmax.f32 %v1562, 0.0
        %v2150 = vmax.f32 %v1564, 0.0
        %v2151 = vmax.f32 %v1723, 0.0
        %v2152 = vmax.f32 %v1725, 0.0
        %v2153 = vmax.f32 %v1884, 0.0
        %v2154 = vmax.f32 %v1886, 0.0
        %v2155 = vmax.f32 %v2045, 0.0
        %v2156 = vmax.f32 %v2047, 0.0
        %v2157 = vmax.f32 %v763, 0.0
        %v2158 = vmax.f32 %v765, 0.0
        %v2159 = vmax.f32 %v924, 0.0
        %v2160 = vmax.f32 %v926, 0.0
        %v2161 = vmax.f32 %v1085, 0.0
        %v2162 = vmax.f32 %v1087, 0.0
        %v2163 = vmax.f32 %v1246, 0.0
        %v2164 = vmax.f32 %v1248, 0.0
        %v2165 = vmax.f32 %v1407, 0.0
        %v2166 = vmax.f32 %v1409, 0.0
        %v2167 = vmax.f32 %v1568, 0.0
        %v2168 = vmax.f32 %v1570, 0.0
        %v2169 = vmax.f32 %v1729, 0.0
        %v2170 = vmax.f32 %v1731, 0.0
        %v2171 = vmax.f32 %v1890, 0.0
        %v2172 = vmax.f32 %v1892, 0.0
        %v2173 = vmax.f32 %v2051, 0.0
        %v2174 = vmax.f32 %v2053, 0.0
        %v2175 = vmax.f32 %v769, 0.0
        %v2176 = vmax.f32 %v771, 0.0
        %v2177 = vmax.f32 %v930, 0.0
        %v2178 = vmax.f32 %v932, 0.0
        %v2179 = vmax.f32 %v1091, 0.0
        %v2180 = vmax.f32 %v1093, 0.0
        %v2181 = vmax.f32 %v1252, 0.0
        %v2182 = vmax.f32 %v1254, 0.0
        %v2183 = vmax.f32 %v1413, 0.0
        %v2184 = vmax.f32 %v1415, 0.0
        %v2185 = vmax.f32 %v1574, 0.0
        %v2186 = vmax.f32 %v1576, 0.0
        %v2187 = vmax.f32 %v1735, 0.0
        %v2188 = vmax.f32 %v1737, 0.0
        %v2189 = vmax.f32 %v1896, 0.0
        %v2190 = vmax.f32 %v1898, 0.0
        %v2191 = vmax.f32 %v2057, 0.0
        %v2192 = vmax.f32 %v2059, 0.0
        %v2193 = vmax.f32 %v775, 0.0
        %v2194 = vmax.f32 %v777, 0.0
        %v2195 = vmax.f32 %v936, 0.0
        %v2196 = vmax.f32 %v938, 0.0
        %v2197 = vmax.f32 %v1097, 0.0
        %v2198 = vmax.f32 %v1099, 0.0
        %v2199 = vmax.f32 %v1258, 0.0
        %v2200 = vmax.f32 %v1260, 0.0
        %v2201 = vmax.f32 %v1419, 0.0
        %v2202 = vmax.f32 %v1421, 0.0
        %v2203 = vmax.f32 %v1580, 0.0
        %v2204 = vmax.f32 %v1582, 0.0
        %v2205 = vmax.f32 %v1741, 0.0
        %v2206 = vmax.f32 %v1743, 0.0
        %v2207 = vmax.f32 %v1902, 0.0
        %v2208 = vmax.f32 %v1904, 0.0
        %v2209 = vmax.f32 %v2063, 0.0
        %v2210 = vmax.f32 %v2065, 0.0
        %v2211 = vmax.f32 %v781, 0.0
        %v2212 = vmax.f32 %v783, 0.0
        %v2213 = vmax.f32 %v942, 0.0
        %v2214 = vmax.f32 %v944, 0.0
        %v2215 = vmax.f32 %v1103, 0.0
        %v2216 = vmax.f32 %v1105, 0.0
        %v2217 = vmax.f32 %v1264, 0.0
        %v2218 = vmax.f32 %v1266, 0.0
        %v2219 = vmax.f32 %v1425, 0.0
        %v2220 = vmax.f32 %v1427, 0.0
        %v2221 = vmax.f32 %v1586, 0.0
        %v2222 = vmax.f32 %v1588, 0.0
        %v2223 = vmax.f32 %v1747, 0.0
        %v2224 = vmax.f32 %v1749, 0.0
        %v2225 = vmax.f32 %v1908, 0.0
        %v2226 = vmax.f32 %v1910, 0.0
        %v2227 = vmax.f32 %v2069, 0.0
        %v2228 = vmax.f32 %v2071, 0.0
        %v2229 = vmax.f32 %v787, 0.0
        %v2230 = vmax.f32 %v789, 0.0
        %v2231 = vmax.f32 %v948, 0.0
        %v2232 = vmax.f32 %v950, 0.0
        %v2233 = vmax.f32 %v1109, 0.0
        %v2234 = vmax.f32 %v1111, 0.0
        %v2235 = vmax.f32 %v1270, 0.0
        %v2236 = vmax.f32 %v1272, 0.0
        %v2237 = vmax.f32 %v1431, 0.0
        %v2238 = vmax.f32 %v1433, 0.0
        %v2239 = vmax.f32 %v1592, 0.0
        %v2240 = vmax.f32 %v1594, 0.0
        %v2241 = vmax.f32 %v1753, 0.0
        %v2242 = vmax.f32 %v1755, 0.0
        %v2243 = vmax.f32 %v1914, 0.0
        %v2244 = vmax.f32 %v1916, 0.0
        %v2245 = vmax.f32 %v2075, 0.0
        %v2246 = vmax.f32 %v2077, 0.0
        %v2247 = vmax.f32 %v793, 0.0
        %v2248 = vmax.f32 %v795, 0.0
        %v2249 = vmax.f32 %v954, 0.0
        %v2250 = vmax.f32 %v956, 0.0
        %v2251 = vmax.f32 %v1115, 0.0
        %v2252 = vmax.f32 %v1117, 0.0
        %v2253 = vmax.f32 %v1276, 0.0
        %v2254 = vmax.f32 %v1278, 0.0
        %v2255 = vmax.f32 %v1437, 0.0
        %v2256 = vmax.f32 %v1439, 0.0
        %v2257 = vmax.f32 %v1598, 0.0
        %v2258 = vmax.f32 %v1600, 0.0
        %v2259 = vmax.f32 %v1759, 0.0
        %v2260 = vmax.f32 %v1761, 0.0
        %v2261 = vmax.f32 %v1920, 0.0
        %v2262 = vmax.f32 %v1922, 0.0
        %v2263 = vmax.f32 %v2081, 0.0
        %v2264 = vmax.f32 %v2083, 0.0
        %v2265 = vmax.f32 %v799, 0.0
        %v2266 = vmax.f32 %v801, 0.0
        %v2267 = vmax.f32 %v960, 0.0
        %v2268 = vmax.f32 %v962, 0.0
        %v2269 = vmax.f32 %v1121, 0.0
        %v2270 = vmax.f32 %v1123, 0.0
        %v2271 = vmax.f32 %v1282, 0.0
        %v2272 = vmax.f32 %v1284, 0.0
        %v2273 = vmax.f32 %v1443, 0.0
        %v2274 = vmax.f32 %v1445, 0.0
        %v2275 = vmax.f32 %v1604, 0.0
        %v2276 = vmax.f32 %v1606, 0.0
        %v2277 = vmax.f32 %v1765, 0.0
        %v2278 = vmax.f32 %v1767, 0.0
        %v2279 = vmax.f32 %v1926, 0.0
        %v2280 = vmax.f32 %v1928, 0.0
        %v2281 = vmax.f32 %v2087, 0.0
        %v2282 = vmax.f32 %v2089, 0.0
        %v2283 = vmax.f32 %v805, 0.0
        %v2284 = vmax.f32 %v807, 0.0
        %v2285 = vmax.f32 %v966, 0.0
        %v2286 = vmax.f32 %v968, 0.0
        %v2287 = vmax.f32 %v1127, 0.0
        %v2288 = vmax.f32 %v1129, 0.0
        %v2289 = vmax.f32 %v1288, 0.0
        %v2290 = vmax.f32 %v1290, 0.0
        %v2291 = vmax.f32 %v1449, 0.0
        %v2292 = vmax.f32 %v1451, 0.0
        %v2293 = vmax.f32 %v1610, 0.0
        %v2294 = vmax.f32 %v1612, 0.0
        %v2295 = vmax.f32 %v1771, 0.0
        %v2296 = vmax.f32 %v1773, 0.0
        %v2297 = vmax.f32 %v1932, 0.0
        %v2298 = vmax.f32 %v1934, 0.0
        %v2299 = vmax.f32 %v2093, 0.0
        %v2300 = vmax.f32 %v2095, 0.0
        %v2301 = vmax.f32 %v811, 0.0
        %v2302 = vmax.f32 %v813, 0.0
        %v2303 = vmax.f32 %v972, 0.0
        %v2304 = vmax.f32 %v974, 0.0
        %v2305 = vmax.f32 %v1133, 0.0
        %v2306 = vmax.f32 %v1135, 0.0
        %v2307 = vmax.f32 %v1294, 0.0
        %v2308 = vmax.f32 %v1296, 0.0
        %v2309 = vmax.f32 %v1455, 0.0
        %v2310 = vmax.f32 %v1457, 0.0
        %v2311 = vmax.f32 %v1616, 0.0
        %v2312 = vmax.f32 %v1618, 0.0
        %v2313 = vmax.f32 %v1777, 0.0
        %v2314 = vmax.f32 %v1779, 0.0
        %v2315 = vmax.f32 %v1938, 0.0
        %v2316 = vmax.f32 %v1940, 0.0
        %v2317 = vmax.f32 %v2099, 0.0
        %v2318 = vmax.f32 %v2101, 0.0
        %v2319 = vmax.f32 %v817, 0.0
        %v2320 = vmax.f32 %v819, 0.0
        %v2321 = vmax.f32 %v978, 0.0
        %v2322 = vmax.f32 %v980, 0.0
        %v2323 = vmax.f32 %v1139, 0.0
        %v2324 = vmax.f32 %v1141, 0.0
        %v2325 = vmax.f32 %v1300, 0.0
        %v2326 = vmax.f32 %v1302, 0.0
        %v2327 = vmax.f32 %v1461, 0.0
        %v2328 = vmax.f32 %v1463, 0.0
        %v2329 = vmax.f32 %v1622, 0.0
        %v2330 = vmax.f32 %v1624, 0.0
        %v2331 = vmax.f32 %v1783, 0.0
        %v2332 = vmax.f32 %v1785, 0.0
        %v2333 = vmax.f32 %v1944, 0.0
        %v2334 = vmax.f32 %v1946, 0.0
        %v2335 = vmax.f32 %v2105, 0.0
        %v2336 = vmax.f32 %v2107, 0.0
        %v2337 = vmax.f32 %v823, 0.0
        %v2338 = vmax.f32 %v825, 0.0
        %v2339 = vmax.f32 %v984, 0.0
        %v2340 = vmax.f32 %v986, 0.0
        %v2341 = vmax.f32 %v1145, 0.0
        %v2342 = vmax.f32 %v1147, 0.0
        %v2343 = vmax.f32 %v1306, 0.0
        %v2344 = vmax.f32 %v1308, 0.0
        %v2345 = vmax.f32 %v1467, 0.0
        %v2346 = vmax.f32 %v1469, 0.0
        %v2347 = vmax.f32 %v1628, 0.0
        %v2348 = vmax.f32 %v1630, 0.0
        %v2349 = vmax.f32 %v1789, 0.0
        %v2350 = vmax.f32 %v1791, 0.0
        %v2351 = vmax.f32 %v1950, 0.0
        %v2352 = vmax.f32 %v1952, 0.0
        %v2353 = vmax.f32 %v2111, 0.0
        %v2354 = vmax.f32 %v2113, 0.0
        %v2355 = vmax.f32 %v829, 0.0
        %v2356 = vmax.f32 %v831, 0.0
        %v2357 = vmax.f32 %v990, 0.0
        %v2358 = vmax.f32 %v992, 0.0
        %v2359 = vmax.f32 %v1151, 0.0
        %v2360 = vmax.f32 %v1153, 0.0
        %v2361 = vmax.f32 %v1312, 0.0
        %v2362 = vmax.f32 %v1314, 0.0
        %v2363 = vmax.f32 %v1473, 0.0
        %v2364 = vmax.f32 %v1475, 0.0
        %v2365 = vmax.f32 %v1634, 0.0
        %v2366 = vmax.f32 %v1636, 0.0
        %v2367 = vmax.f32 %v1795, 0.0
        %v2368 = vmax.f32 %v1797, 0.0
        %v2369 = vmax.f32 %v1956, 0.0
        %v2370 = vmax.f32 %v1958, 0.0
        %v2371 = vmax.f32 %v2117, 0.0
        %v2372 = vmax.f32 %v2119, 0.0
        %v2373 = vmax.f32 %v835, 0.0
        %v2374 = vmax.f32 %v837, 0.0
        %v2375 = vmax.f32 %v996, 0.0
        %v2376 = vmax.f32 %v998, 0.0
        %v2377 = vmax.f32 %v1157, 0.0
        %v2378 = vmax.f32 %v1159, 0.0
        %v2379 = vmax.f32 %v1318, 0.0
        %v2380 = vmax.f32 %v1320, 0.0
        %v2381 = vmax.f32 %v1479, 0.0
        %v2382 = vmax.f32 %v1481, 0.0
        %v2383 = vmax.f32 %v1640, 0.0
        %v2384 = vmax.f32 %v1642, 0.0
        %v2385 = vmax.f32 %v1801, 0.0
        %v2386 = vmax.f32 %v1803, 0.0
        %v2387 = vmax.f32 %v1962, 0.0
        %v2388 = vmax.f32 %v1964, 0.0
        %v2389 = vmax.f32 %v2123, 0.0
        %v2390 = vmax.f32 %v2125, 0.0
        %v2391 = vmax.f32 %v841, 0.0
        %v2392 = vmax.f32 %v843, 0.0
        %v2393 = vmax.f32 %v1002, 0.0
        %v2394 = vmax.f32 %v1004, 0.0
        %v2395 = vmax.f32 %v1163, 0.0
        %v2396 = vmax.f32 %v1165, 0.0
        %v2397 = vmax.f32 %v1324, 0.0
        %v2398 = vmax.f32 %v1326, 0.0
        %v2399 = vmax.f32 %v1485, 0.0
        %v2400 = vmax.f32 %v1487, 0.0
        %v2401 = vmax.f32 %v1646, 0.0
        %v2402 = vmax.f32 %v1648, 0.0
        %v2403 = vmax.f32 %v1807, 0.0
        %v2404 = vmax.f32 %v1809, 0.0
        %v2405 = vmax.f32 %v1968, 0.0
        %v2406 = vmax.f32 %v1970, 0.0
        %v2407 = vmax.f32 %v2129, 0.0
        %v2408 = vmax.f32 %v2131, 0.0
        %v2409 = vmax.f32 %v847, 0.0
        %v2410 = vmax.f32 %v849, 0.0
        %v2411 = vmax.f32 %v1008, 0.0
        %v2412 = vmax.f32 %v1010, 0.0
        %v2413 = vmax.f32 %v1169, 0.0
        %v2414 = vmax.f32 %v1171, 0.0
        %v2415 = vmax.f32 %v1330, 0.0
        %v2416 = vmax.f32 %v1332, 0.0
        %v2417 = vmax.f32 %v1491, 0.0
        %v2418 = vmax.f32 %v1493, 0.0
        %v2419 = vmax.f32 %v1652, 0.0
        %v2420 = vmax.f32 %v1654, 0.0
        %v2421 = vmax.f32 %v1813, 0.0
        %v2422 = vmax.f32 %v1815, 0.0
        %v2423 = vmax.f32 %v1974, 0.0
        %v2424 = vmax.f32 %v1976, 0.0
        %v2425 = vmax.f32 %v2135, 0.0
        %v2426 = vmax.f32 %v2137, 0.0
        %v2427 = vlaneseq
        %v2428 = vand.u32 %v2427, 127
        %v2429 = vadd.s32 %v2428, 128
        %v2430 = vadd.s32 %v2428, 256
        %v2431 = vadd.s32 %v2428, 384
        %v2432 = vadd.s32 %v2428, 512
        %v2433 = vadd.s32 %v2428, 640
        %v2434 = vadd.s32 %v2428, 768
        %v2435 = vadd.s32 %v2428, 896
        %v2436 = vadd.s32 %v2428, 1024
        %v2437 = vadd.s32 %v2428, 1152
        %v2438 = vadd.s32 %v2428, 1280
        %v2439 = vadd.s32 %v2428, 1408
        %v2440 = vadd.s32 %v2428, 1536
        %v2441 = vadd.s32 %v2428, 1664
        %v2442 = vadd.s32 %v2428, 1792
        %v2443 = vadd.s32 %v2428, 1920
        %v2444 = vadd.s32 %v2428, 2048
        %v2445 = vadd.s32 %v2428, 2176
        %s2446 = smul.u32 %s30, 2304
        %s2447 = ssub.s32 2048, %s2446
        %v2448 = vstv %s2447
        %vm2449 = vcmp.lt.s32.totalorder %v2428, %v2448
        %vm2450 = vcmp.lt.s32.totalorder %v2429, %v2448
        %vm2451 = vcmp.lt.s32.totalorder %v2430, %v2448
        %vm2452 = vcmp.lt.s32.totalorder %v2431, %v2448
        %vm2453 = vcmp.lt.s32.totalorder %v2432, %v2448
        %vm2454 = vcmp.lt.s32.totalorder %v2433, %v2448
        %vm2455 = vcmp.lt.s32.totalorder %v2434, %v2448
        %vm2456 = vcmp.lt.s32.totalorder %v2435, %v2448
        %vm2457 = vcmp.lt.s32.totalorder %v2436, %v2448
        %vm2458 = vcmp.lt.s32.totalorder %v2437, %v2448
        %vm2459 = vcmp.lt.s32.totalorder %v2438, %v2448
        %vm2460 = vcmp.lt.s32.totalorder %v2439, %v2448
        %vm2461 = vcmp.lt.s32.totalorder %v2440, %v2448
        %vm2462 = vcmp.lt.s32.totalorder %v2441, %v2448
        %vm2463 = vcmp.lt.s32.totalorder %v2442, %v2448
        %vm2464 = vcmp.lt.s32.totalorder %v2443, %v2448
        %vm2465 = vcmp.lt.s32.totalorder %v2444, %v2448
        %vm2466 = vcmp.lt.s32.totalorder %v2445, %v2448
        %v2467 = vsel %vm2449, 1, 0
        %v2468 = vsel %vm2450, 1, 0
        %v2469 = vsel %vm2451, 1, 0
        %v2470 = vsel %vm2452, 1, 0
        %v2471 = vsel %vm2453, 1, 0
        %v2472 = vsel %vm2454, 1, 0
        %v2473 = vsel %vm2455, 1, 0
        %v2474 = vsel %vm2456, 1, 0
        %v2475 = vsel %vm2457, 1, 0
        %v2476 = vsel %vm2458, 1, 0
        %v2477 = vsel %vm2459, 1, 0
        %v2478 = vsel %vm2460, 1, 0
        %v2479 = vsel %vm2461, 1, 0
        %v2480 = vsel %vm2462, 1, 0
        %v2481 = vsel %vm2463, 1, 0
        %v2482 = vsel %vm2464, 1, 0
        %v2483 = vsel %vm2465, 1, 0
        %v2484 = vsel %vm2466, 1, 0
        %v2485 = vcvt.s32.f32 %v2467
        %v2486 = vcvt.s32.f32 %v2468
        %v2487 = vcvt.s32.f32 %v2469
        %v2488 = vcvt.s32.f32 %v2470
        %v2489 = vcvt.s32.f32 %v2471
        %v2490 = vcvt.s32.f32 %v2472
        %v2491 = vcvt.s32.f32 %v2473
        %v2492 = vcvt.s32.f32 %v2474
        %v2493 = vcvt.s32.f32 %v2475
        %v2494 = vcvt.s32.f32 %v2476
        %v2495 = vcvt.s32.f32 %v2477
        %v2496 = vcvt.s32.f32 %v2478
        %v2497 = vcvt.s32.f32 %v2479
        %v2498 = vcvt.s32.f32 %v2480
        %v2499 = vcvt.s32.f32 %v2481
        %v2500 = vcvt.s32.f32 %v2482
        %v2501 = vcvt.s32.f32 %v2483
        %v2502 = vcvt.s32.f32 %v2484
        %v2503 = vsub.f32 %v2139, %v2283
        %v2504 = vsub.f32 %v2140, %v2284
        %v2505 = vsub.f32 %v2141, %v2285
        %v2506 = vsub.f32 %v2142, %v2286
        %v2507 = vsub.f32 %v2143, %v2287
        %v2508 = vsub.f32 %v2144, %v2288
        %v2509 = vsub.f32 %v2145, %v2289
        %v2510 = vsub.f32 %v2146, %v2290
        %v2511 = vsub.f32 %v2147, %v2291
        %v2512 = vsub.f32 %v2148, %v2292
        %v2513 = vsub.f32 %v2149, %v2293
        %v2514 = vsub.f32 %v2150, %v2294
        %v2515 = vsub.f32 %v2151, %v2295
        %v2516 = vsub.f32 %v2152, %v2296
        %v2517 = vsub.f32 %v2153, %v2297
        %v2518 = vsub.f32 %v2154, %v2298
        %v2519 = vsub.f32 %v2155, %v2299
        %v2520 = vsub.f32 %v2156, %v2300
        %v2521 = vsub.f32 %v2157, %v2301
        %v2522 = vsub.f32 %v2158, %v2302
        %v2523 = vsub.f32 %v2159, %v2303
        %v2524 = vsub.f32 %v2160, %v2304
        %v2525 = vsub.f32 %v2161, %v2305
        %v2526 = vsub.f32 %v2162, %v2306
        %v2527 = vsub.f32 %v2163, %v2307
        %v2528 = vsub.f32 %v2164, %v2308
        %v2529 = vsub.f32 %v2165, %v2309
        %v2530 = vsub.f32 %v2166, %v2310
        %v2531 = vsub.f32 %v2167, %v2311
        %v2532 = vsub.f32 %v2168, %v2312
        %v2533 = vsub.f32 %v2169, %v2313
        %v2534 = vsub.f32 %v2170, %v2314
        %v2535 = vsub.f32 %v2171, %v2315
        %v2536 = vsub.f32 %v2172, %v2316
        %v2537 = vsub.f32 %v2173, %v2317
        %v2538 = vsub.f32 %v2174, %v2318
        %v2539 = vsub.f32 %v2175, %v2319
        %v2540 = vsub.f32 %v2176, %v2320
        %v2541 = vsub.f32 %v2177, %v2321
        %v2542 = vsub.f32 %v2178, %v2322
        %v2543 = vsub.f32 %v2179, %v2323
        %v2544 = vsub.f32 %v2180, %v2324
        %v2545 = vsub.f32 %v2181, %v2325
        %v2546 = vsub.f32 %v2182, %v2326
        %v2547 = vsub.f32 %v2183, %v2327
        %v2548 = vsub.f32 %v2184, %v2328
        %v2549 = vsub.f32 %v2185, %v2329
        %v2550 = vsub.f32 %v2186, %v2330
        %v2551 = vsub.f32 %v2187, %v2331
        %v2552 = vsub.f32 %v2188, %v2332
        %v2553 = vsub.f32 %v2189, %v2333
        %v2554 = vsub.f32 %v2190, %v2334
        %v2555 = vsub.f32 %v2191, %v2335
        %v2556 = vsub.f32 %v2192, %v2336
        %v2557 = vsub.f32 %v2193, %v2337
        %v2558 = vsub.f32 %v2194, %v2338
        %v2559 = vsub.f32 %v2195, %v2339
        %v2560 = vsub.f32 %v2196, %v2340
        %v2561 = vsub.f32 %v2197, %v2341
        %v2562 = vsub.f32 %v2198, %v2342
        %v2563 = vsub.f32 %v2199, %v2343
        %v2564 = vsub.f32 %v2200, %v2344
        %v2565 = vsub.f32 %v2201, %v2345
        %v2566 = vsub.f32 %v2202, %v2346
        %v2567 = vsub.f32 %v2203, %v2347
        %v2568 = vsub.f32 %v2204, %v2348
        %v2569 = vsub.f32 %v2205, %v2349
        %v2570 = vsub.f32 %v2206, %v2350
        %v2571 = vsub.f32 %v2207, %v2351
        %v2572 = vsub.f32 %v2208, %v2352
        %v2573 = vsub.f32 %v2209, %v2353
        %v2574 = vsub.f32 %v2210, %v2354
        %v2575 = vsub.f32 %v2211, %v2355
        %v2576 = vsub.f32 %v2212, %v2356
        %v2577 = vsub.f32 %v2213, %v2357
        %v2578 = vsub.f32 %v2214, %v2358
        %v2579 = vsub.f32 %v2215, %v2359
        %v2580 = vsub.f32 %v2216, %v2360
        %v2581 = vsub.f32 %v2217, %v2361
        %v2582 = vsub.f32 %v2218, %v2362
        %v2583 = vsub.f32 %v2219, %v2363
        %v2584 = vsub.f32 %v2220, %v2364
        %v2585 = vsub.f32 %v2221, %v2365
        %v2586 = vsub.f32 %v2222, %v2366
        %v2587 = vsub.f32 %v2223, %v2367
        %v2588 = vsub.f32 %v2224, %v2368
        %v2589 = vsub.f32 %v2225, %v2369
        %v2590 = vsub.f32 %v2226, %v2370
        %v2591 = vsub.f32 %v2227, %v2371
        %v2592 = vsub.f32 %v2228, %v2372
        %v2593 = vsub.f32 %v2229, %v2373
        %v2594 = vsub.f32 %v2230, %v2374
        %v2595 = vsub.f32 %v2231, %v2375
        %v2596 = vsub.f32 %v2232, %v2376
        %v2597 = vsub.f32 %v2233, %v2377
        %v2598 = vsub.f32 %v2234, %v2378
        %v2599 = vsub.f32 %v2235, %v2379
        %v2600 = vsub.f32 %v2236, %v2380
        %v2601 = vsub.f32 %v2237, %v2381
        %v2602 = vsub.f32 %v2238, %v2382
        %v2603 = vsub.f32 %v2239, %v2383
        %v2604 = vsub.f32 %v2240, %v2384
        %v2605 = vsub.f32 %v2241, %v2385
        %v2606 = vsub.f32 %v2242, %v2386
        %v2607 = vsub.f32 %v2243, %v2387
        %v2608 = vsub.f32 %v2244, %v2388
        %v2609 = vsub.f32 %v2245, %v2389
        %v2610 = vsub.f32 %v2246, %v2390
        %v2611 = vsub.f32 %v2247, %v2391
        %v2612 = vsub.f32 %v2248, %v2392
        %v2613 = vsub.f32 %v2249, %v2393
        %v2614 = vsub.f32 %v2250, %v2394
        %v2615 = vsub.f32 %v2251, %v2395
        %v2616 = vsub.f32 %v2252, %v2396
        %v2617 = vsub.f32 %v2253, %v2397
        %v2618 = vsub.f32 %v2254, %v2398
        %v2619 = vsub.f32 %v2255, %v2399
        %v2620 = vsub.f32 %v2256, %v2400
        %v2621 = vsub.f32 %v2257, %v2401
        %v2622 = vsub.f32 %v2258, %v2402
        %v2623 = vsub.f32 %v2259, %v2403
        %v2624 = vsub.f32 %v2260, %v2404
        %v2625 = vsub.f32 %v2261, %v2405
        %v2626 = vsub.f32 %v2262, %v2406
        %v2627 = vsub.f32 %v2263, %v2407
        %v2628 = vsub.f32 %v2264, %v2408
        %v2629 = vsub.f32 %v2265, %v2409
        %v2630 = vsub.f32 %v2266, %v2410
        %v2631 = vsub.f32 %v2267, %v2411
        %v2632 = vsub.f32 %v2268, %v2412
        %v2633 = vsub.f32 %v2269, %v2413
        %v2634 = vsub.f32 %v2270, %v2414
        %v2635 = vsub.f32 %v2271, %v2415
        %v2636 = vsub.f32 %v2272, %v2416
        %v2637 = vsub.f32 %v2273, %v2417
        %v2638 = vsub.f32 %v2274, %v2418
        %v2639 = vsub.f32 %v2275, %v2419
        %v2640 = vsub.f32 %v2276, %v2420
        %v2641 = vsub.f32 %v2277, %v2421
        %v2642 = vsub.f32 %v2278, %v2422
        %v2643 = vsub.f32 %v2279, %v2423
        %v2644 = vsub.f32 %v2280, %v2424
        %v2645 = vsub.f32 %v2281, %v2425
        %v2646 = vsub.f32 %v2282, %v2426
        %v2647 = vand.u32 2147483647, %v2503
        %v2648 = vand.u32 2147483647, %v2504
        %v2649 = vand.u32 2147483647, %v2505
        %v2650 = vand.u32 2147483647, %v2506
        %v2651 = vand.u32 2147483647, %v2507
        %v2652 = vand.u32 2147483647, %v2508
        %v2653 = vand.u32 2147483647, %v2509
        %v2654 = vand.u32 2147483647, %v2510
        %v2655 = vand.u32 2147483647, %v2511
        %v2656 = vand.u32 2147483647, %v2512
        %v2657 = vand.u32 2147483647, %v2513
        %v2658 = vand.u32 2147483647, %v2514
        %v2659 = vand.u32 2147483647, %v2515
        %v2660 = vand.u32 2147483647, %v2516
        %v2661 = vand.u32 2147483647, %v2517
        %v2662 = vand.u32 2147483647, %v2518
        %v2663 = vand.u32 2147483647, %v2519
        %v2664 = vand.u32 2147483647, %v2520
        %v2665 = vand.u32 2147483647, %v2521
        %v2666 = vand.u32 2147483647, %v2522
        %v2667 = vand.u32 2147483647, %v2523
        %v2668 = vand.u32 2147483647, %v2524
        %v2669 = vand.u32 2147483647, %v2525
        %v2670 = vand.u32 2147483647, %v2526
        %v2671 = vand.u32 2147483647, %v2527
        %v2672 = vand.u32 2147483647, %v2528
        %v2673 = vand.u32 2147483647, %v2529
        %v2674 = vand.u32 2147483647, %v2530
        %v2675 = vand.u32 2147483647, %v2531
        %v2676 = vand.u32 2147483647, %v2532
        %v2677 = vand.u32 2147483647, %v2533
        %v2678 = vand.u32 2147483647, %v2534
        %v2679 = vand.u32 2147483647, %v2535
        %v2680 = vand.u32 2147483647, %v2536
        %v2681 = vand.u32 2147483647, %v2537
        %v2682 = vand.u32 2147483647, %v2538
        %v2683 = vand.u32 2147483647, %v2539
        %v2684 = vand.u32 2147483647, %v2540
        %v2685 = vand.u32 2147483647, %v2541
        %v2686 = vand.u32 2147483647, %v2542
        %v2687 = vand.u32 2147483647, %v2543
        %v2688 = vand.u32 2147483647, %v2544
        %v2689 = vand.u32 2147483647, %v2545
        %v2690 = vand.u32 2147483647, %v2546
        %v2691 = vand.u32 2147483647, %v2547
        %v2692 = vand.u32 2147483647, %v2548
        %v2693 = vand.u32 2147483647, %v2549
        %v2694 = vand.u32 2147483647, %v2550
        %v2695 = vand.u32 2147483647, %v2551
        %v2696 = vand.u32 2147483647, %v2552
        %v2697 = vand.u32 2147483647, %v2553
        %v2698 = vand.u32 2147483647, %v2554
        %v2699 = vand.u32 2147483647, %v2555
        %v2700 = vand.u32 2147483647, %v2556
        %v2701 = vand.u32 2147483647, %v2557
        %v2702 = vand.u32 2147483647, %v2558
        %v2703 = vand.u32 2147483647, %v2559
        %v2704 = vand.u32 2147483647, %v2560
        %v2705 = vand.u32 2147483647, %v2561
        %v2706 = vand.u32 2147483647, %v2562
        %v2707 = vand.u32 2147483647, %v2563
        %v2708 = vand.u32 2147483647, %v2564
        %v2709 = vand.u32 2147483647, %v2565
        %v2710 = vand.u32 2147483647, %v2566
        %v2711 = vand.u32 2147483647, %v2567
        %v2712 = vand.u32 2147483647, %v2568
        %v2713 = vand.u32 2147483647, %v2569
        %v2714 = vand.u32 2147483647, %v2570
        %v2715 = vand.u32 2147483647, %v2571
        %v2716 = vand.u32 2147483647, %v2572
        %v2717 = vand.u32 2147483647, %v2573
        %v2718 = vand.u32 2147483647, %v2574
        %v2719 = vand.u32 2147483647, %v2575
        %v2720 = vand.u32 2147483647, %v2576
        %v2721 = vand.u32 2147483647, %v2577
        %v2722 = vand.u32 2147483647, %v2578
        %v2723 = vand.u32 2147483647, %v2579
        %v2724 = vand.u32 2147483647, %v2580
        %v2725 = vand.u32 2147483647, %v2581
        %v2726 = vand.u32 2147483647, %v2582
        %v2727 = vand.u32 2147483647, %v2583
        %v2728 = vand.u32 2147483647, %v2584
        %v2729 = vand.u32 2147483647, %v2585
        %v2730 = vand.u32 2147483647, %v2586
        %v2731 = vand.u32 2147483647, %v2587
        %v2732 = vand.u32 2147483647, %v2588
        %v2733 = vand.u32 2147483647, %v2589
        %v2734 = vand.u32 2147483647, %v2590
        %v2735 = vand.u32 2147483647, %v2591
        %v2736 = vand.u32 2147483647, %v2592
        %v2737 = vand.u32 2147483647, %v2593
        %v2738 = vand.u32 2147483647, %v2594
        %v2739 = vand.u32 2147483647, %v2595
        %v2740 = vand.u32 2147483647, %v2596
        %v2741 = vand.u32 2147483647, %v2597
        %v2742 = vand.u32 2147483647, %v2598
        %v2743 = vand.u32 2147483647, %v2599
        %v2744 = vand.u32 2147483647, %v2600
        %v2745 = vand.u32 2147483647, %v2601
        %v2746 = vand.u32 2147483647, %v2602
        %v2747 = vand.u32 2147483647, %v2603
        %v2748 = vand.u32 2147483647, %v2604
        %v2749 = vand.u32 2147483647, %v2605
        %v2750 = vand.u32 2147483647, %v2606
        %v2751 = vand.u32 2147483647, %v2607
        %v2752 = vand.u32 2147483647, %v2608
        %v2753 = vand.u32 2147483647, %v2609
        %v2754 = vand.u32 2147483647, %v2610
        %v2755 = vand.u32 2147483647, %v2611
        %v2756 = vand.u32 2147483647, %v2612
        %v2757 = vand.u32 2147483647, %v2613
        %v2758 = vand.u32 2147483647, %v2614
        %v2759 = vand.u32 2147483647, %v2615
        %v2760 = vand.u32 2147483647, %v2616
        %v2761 = vand.u32 2147483647, %v2617
        %v2762 = vand.u32 2147483647, %v2618
        %v2763 = vand.u32 2147483647, %v2619
        %v2764 = vand.u32 2147483647, %v2620
        %v2765 = vand.u32 2147483647, %v2621
        %v2766 = vand.u32 2147483647, %v2622
        %v2767 = vand.u32 2147483647, %v2623
        %v2768 = vand.u32 2147483647, %v2624
        %v2769 = vand.u32 2147483647, %v2625
        %v2770 = vand.u32 2147483647, %v2626
        %v2771 = vand.u32 2147483647, %v2627
        %v2772 = vand.u32 2147483647, %v2628
        %v2773 = vand.u32 2147483647, %v2629
        %v2774 = vand.u32 2147483647, %v2630
        %v2775 = vand.u32 2147483647, %v2631
        %v2776 = vand.u32 2147483647, %v2632
        %v2777 = vand.u32 2147483647, %v2633
        %v2778 = vand.u32 2147483647, %v2634
        %v2779 = vand.u32 2147483647, %v2635
        %v2780 = vand.u32 2147483647, %v2636
        %v2781 = vand.u32 2147483647, %v2637
        %v2782 = vand.u32 2147483647, %v2638
        %v2783 = vand.u32 2147483647, %v2639
        %v2784 = vand.u32 2147483647, %v2640
        %v2785 = vand.u32 2147483647, %v2641
        %v2786 = vand.u32 2147483647, %v2642
        %v2787 = vand.u32 2147483647, %v2643
        %v2788 = vand.u32 2147483647, %v2644
        %v2789 = vand.u32 2147483647, %v2645
        %v2790 = vand.u32 2147483647, %v2646
        %v2791 = vld [vmem:[%s2] sm:$0xff]
        %v2792 = vld [vmem:[%s2 + $0x8] sm:$0xff]
        %v2793 = vld [vmem:[%s2 + $0x10] sm:$0x3]
        %v2812 = vcombine.low %v2485, %v2486
        %v2813 = vcombine.low %v2487, %v2488
        %v2814 = vcombine.low %v2489, %v2490
        %v2815 = vcombine.low %v2491, %v2492
        %v2817 = vunpack.c.l.s4 1966171168
        %v2818 = vunpack.c.0.s8 %v2817
        %v2819 = vlaneseq
        %v2820 = vshrl.u32 %v2819, 7
        %v2821 = vsub.s32 %v2818, %v2820
        %v2822 = vrot.slane %v2812, %v2821
        %v2824 = vunpack.c.l.s4 1966171168
        %v2825 = vunpack.c.0.s8 %v2824
        %v2826 = vlaneseq
        %v2827 = vshrl.u32 %v2826, 7
        %v2828 = vsub.s32 %v2825, %v2827
        %v2829 = vrot.slane %v2813, %v2828
        %v2831 = vunpack.c.l.s4 1966171168
        %v2832 = vunpack.c.0.s8 %v2831
        %v2833 = vlaneseq
        %v2834 = vshrl.u32 %v2833, 7
        %v2835 = vsub.s32 %v2832, %v2834
        %v2836 = vrot.slane %v2814, %v2835
        %v2838 = vunpack.c.l.s4 1966171168
        %v2839 = vunpack.c.0.s8 %v2838
        %v2840 = vlaneseq
        %v2841 = vshrl.u32 %v2840, 7
        %v2842 = vsub.s32 %v2839, %v2841
        %v2843 = vrot.slane %v2815, %v2842
        %v2844 = vcombine.low %v2822, %v2829
        %v2845 = vcombine.low %v2836, %v2843
        %v2847 = vunpack.c.l.s4 1966171168
        %v2848 = vunpack.c.0.s8 %v2847
        %v2849 = vlaneseq
        %v2850 = vshrl.u32 %v2849, 7
        %v2851 = vsub.s32 %v2848, %v2850
        %v2852 = vrot.slane %v2844, %v2851
        %v2854 = vunpack.c.l.s4 1966171168
        %v2855 = vunpack.c.0.s8 %v2854
        %v2856 = vlaneseq
        %v2857 = vshrl.u32 %v2856, 7
        %v2858 = vsub.s32 %v2855, %v2857
        %v2859 = vrot.slane %v2845, %v2858
        %v2860 = vcombine.low %v2852, %v2859
        %v2861 = vcombine.low %v2493, %v2494
        %v2862 = vcombine.low %v2495, %v2496
        %v2863 = vcombine.low %v2497, %v2498
        %v2864 = vcombine.low %v2499, %v2500
        %v2866 = vunpack.c.l.s4 1966171168
        %v2867 = vunpack.c.0.s8 %v2866
        %v2868 = vlaneseq
        %v2869 = vshrl.u32 %v2868, 7
        %v2870 = vsub.s32 %v2867, %v2869
        %v2871 = vrot.slane %v2861, %v2870
        %v2873 = vunpack.c.l.s4 1966171168
        %v2874 = vunpack.c.0.s8 %v2873
        %v2875 = vlaneseq
        %v2876 = vshrl.u32 %v2875, 7
        %v2877 = vsub.s32 %v2874, %v2876
        %v2878 = vrot.slane %v2862, %v2877
        %v2880 = vunpack.c.l.s4 1966171168
        %v2881 = vunpack.c.0.s8 %v2880
        %v2882 = vlaneseq
        %v2883 = vshrl.u32 %v2882, 7
        %v2884 = vsub.s32 %v2881, %v2883
        %v2885 = vrot.slane %v2863, %v2884
        %v2887 = vunpack.c.l.s4 1966171168
        %v2888 = vunpack.c.0.s8 %v2887
        %v2889 = vlaneseq
        %v2890 = vshrl.u32 %v2889, 7
        %v2891 = vsub.s32 %v2888, %v2890
        %v2892 = vrot.slane %v2864, %v2891
        %v2893 = vcombine.low %v2871, %v2878
        %v2894 = vcombine.low %v2885, %v2892
        %v2896 = vunpack.c.l.s4 1966171168
        %v2897 = vunpack.c.0.s8 %v2896
        %v2898 = vlaneseq
        %v2899 = vshrl.u32 %v2898, 7
        %v2900 = vsub.s32 %v2897, %v2899
        %v2901 = vrot.slane %v2893, %v2900
        %v2903 = vunpack.c.l.s4 1966171168
        %v2904 = vunpack.c.0.s8 %v2903
        %v2905 = vlaneseq
        %v2906 = vshrl.u32 %v2905, 7
        %v2907 = vsub.s32 %v2904, %v2906
        %v2908 = vrot.slane %v2894, %v2907
        %v2909 = vcombine.low %v2901, %v2908
        %v2910 = vcombine.low %v2501, %v2502
        %v2912 = vunpack.c.l.s4 1966171168
        %v2913 = vunpack.c.0.s8 %v2912
        %v2914 = vlaneseq
        %v2915 = vshrl.u32 %v2914, 7
        %v2916 = vsub.s32 %v2913, %v2915
        %v2917 = vrot.slane %v2910, %v2916
        %v2919 = vunpack.c.l.s4 1966171168
        %v2920 = vunpack.c.0.s8 %v2919
        %v2921 = vlaneseq
        %v2922 = vshrl.u32 %v2921, 7
        %v2923 = vsub.s32 %v2920, %v2922
        %v2924 = vrot.slane %v2917, %v2923
        %v2928 = vmul.f32 %v2791, %v2860
        %v2929 = vmul.f32 %v2792, %v2909
        %v2930 = vmul.f32 %v2793, %v2924
        %v2934 = vlaneseq
        %v2935 = vshrl.u32 %v2934, 7
        %v2936 = vsub.s32 0, %v2935
        %v2937 = vrot.slane %v2928, %v2936
        %v2938 = vlaneseq
        %v2939 = vshrl.u32 %v2938, 7
        %v2940 = vsub.s32 1, %v2939
        %v2941 = vrot.slane %v2928, %v2940
        %v2942 = vlaneseq
        %v2943 = vshrl.u32 %v2942, 7
        %v2944 = vsub.s32 2, %v2943
        %v2945 = vrot.slane %v2928, %v2944
        %v2946 = vlaneseq
        %v2947 = vshrl.u32 %v2946, 7
        %v2948 = vsub.s32 3, %v2947
        %v2949 = vrot.slane %v2928, %v2948
        %v2950 = vlaneseq
        %v2951 = vshrl.u32 %v2950, 7
        %v2952 = vsub.s32 4, %v2951
        %v2953 = vrot.slane %v2928, %v2952
        %v2954 = vlaneseq
        %v2955 = vshrl.u32 %v2954, 7
        %v2956 = vsub.s32 5, %v2955
        %v2957 = vrot.slane %v2928, %v2956
        %v2958 = vlaneseq
        %v2959 = vshrl.u32 %v2958, 7
        %v2960 = vsub.s32 6, %v2959
        %v2961 = vrot.slane %v2928, %v2960
        %v2962 = vlaneseq
        %v2963 = vshrl.u32 %v2962, 7
        %v2964 = vsub.s32 7, %v2963
        %v2965 = vrot.slane %v2928, %v2964
        %v2966 = vlaneseq
        %v2967 = vshrl.u32 %v2966, 7
        %v2968 = vsub.s32 0, %v2967
        %v2969 = vrot.slane %v2929, %v2968
        %v2970 = vlaneseq
        %v2971 = vshrl.u32 %v2970, 7
        %v2972 = vsub.s32 1, %v2971
        %v2973 = vrot.slane %v2929, %v2972
        %v2974 = vlaneseq
        %v2975 = vshrl.u32 %v2974, 7
        %v2976 = vsub.s32 2, %v2975
        %v2977 = vrot.slane %v2929, %v2976
        %v2978 = vlaneseq
        %v2979 = vshrl.u32 %v2978, 7
        %v2980 = vsub.s32 3, %v2979
        %v2981 = vrot.slane %v2929, %v2980
        %v2982 = vlaneseq
        %v2983 = vshrl.u32 %v2982, 7
        %v2984 = vsub.s32 4, %v2983
        %v2985 = vrot.slane %v2929, %v2984
        %v2986 = vlaneseq
        %v2987 = vshrl.u32 %v2986, 7
        %v2988 = vsub.s32 5, %v2987
        %v2989 = vrot.slane %v2929, %v2988
        %v2990 = vlaneseq
        %v2991 = vshrl.u32 %v2990, 7
        %v2992 = vsub.s32 6, %v2991
        %v2993 = vrot.slane %v2929, %v2992
        %v2994 = vlaneseq
        %v2995 = vshrl.u32 %v2994, 7
        %v2996 = vsub.s32 7, %v2995
        %v2997 = vrot.slane %v2929, %v2996
        %v2998 = vlaneseq
        %v2999 = vshrl.u32 %v2998, 7
        %v3000 = vsub.s32 0, %v2999
        %v3001 = vrot.slane %v2930, %v3000
        %v3002 = vlaneseq
        %v3003 = vshrl.u32 %v3002, 7
        %v3004 = vsub.s32 1, %v3003
        %v3005 = vrot.slane %v2930, %v3004
        %v3024 = vmul.f32 %v2647, %v2937
        %v3025 = vmul.f32 %v2648, %v2941
        %v3026 = vmul.f32 %v2649, %v2945
        %v3027 = vmul.f32 %v2650, %v2949
        %v3028 = vmul.f32 %v2651, %v2953
        %v3029 = vmul.f32 %v2652, %v2957
        %v3030 = vmul.f32 %v2653, %v2961
        %v3031 = vmul.f32 %v2654, %v2965
        %v3032 = vmul.f32 %v2655, %v2969
        %v3033 = vmul.f32 %v2656, %v2973
        %v3034 = vmul.f32 %v2657, %v2977
        %v3035 = vmul.f32 %v2658, %v2981
        %v3036 = vmul.f32 %v2659, %v2985
        %v3037 = vmul.f32 %v2660, %v2989
        %v3038 = vmul.f32 %v2661, %v2993
        %v3039 = vmul.f32 %v2662, %v2997
        %v3040 = vmul.f32 %v2663, %v3001
        %v3041 = vmul.f32 %v2664, %v3005
        %v3042 = vmul.f32 %v2665, %v2937
        %v3043 = vmul.f32 %v2666, %v2941
        %v3044 = vmul.f32 %v2667, %v2945
        %v3045 = vmul.f32 %v2668, %v2949
        %v3046 = vmul.f32 %v2669, %v2953
        %v3047 = vmul.f32 %v2670, %v2957
        %v3048 = vmul.f32 %v2671, %v2961
        %v3049 = vmul.f32 %v2672, %v2965
        %v3050 = vmul.f32 %v2673, %v2969
        %v3051 = vmul.f32 %v2674, %v2973
        %v3052 = vmul.f32 %v2675, %v2977
        %v3053 = vmul.f32 %v2676, %v2981
        %v3054 = vmul.f32 %v2677, %v2985
        %v3055 = vmul.f32 %v2678, %v2989
        %v3056 = vmul.f32 %v2679, %v2993
        %v3057 = vmul.f32 %v2680, %v2997
        %v3058 = vmul.f32 %v2681, %v3001
        %v3059 = vmul.f32 %v2682, %v3005
        %v3060 = vmul.f32 %v2683, %v2937
        %v3061 = vmul.f32 %v2684, %v2941
        %v3062 = vmul.f32 %v2685, %v2945
        %v3063 = vmul.f32 %v2686, %v2949
        %v3064 = vmul.f32 %v2687, %v2953
        %v3065 = vmul.f32 %v2688, %v2957
        %v3066 = vmul.f32 %v2689, %v2961
        %v3067 = vmul.f32 %v2690, %v2965
        %v3068 = vmul.f32 %v2691, %v2969
        %v3069 = vmul.f32 %v2692, %v2973
        %v3070 = vmul.f32 %v2693, %v2977
        %v3071 = vmul.f32 %v2694, %v2981
        %v3072 = vmul.f32 %v2695, %v2985
        %v3073 = vmul.f32 %v2696, %v2989
        %v3074 = vmul.f32 %v2697, %v2993
        %v3075 = vmul.f32 %v2698, %v2997
        %v3076 = vmul.f32 %v2699, %v3001
        %v3077 = vmul.f32 %v2700, %v3005
        %v3078 = vmul.f32 %v2701, %v2937
        %v3079 = vmul.f32 %v2702, %v2941
        %v3080 = vmul.f32 %v2703, %v2945
        %v3081 = vmul.f32 %v2704, %v2949
        %v3082 = vmul.f32 %v2705, %v2953
        %v3083 = vmul.f32 %v2706, %v2957
        %v3084 = vmul.f32 %v2707, %v2961
        %v3085 = vmul.f32 %v2708, %v2965
        %v3086 = vmul.f32 %v2709, %v2969
        %v3087 = vmul.f32 %v2710, %v2973
        %v3088 = vmul.f32 %v2711, %v2977
        %v3089 = vmul.f32 %v2712, %v2981
        %v3090 = vmul.f32 %v2713, %v2985
        %v3091 = vmul.f32 %v2714, %v2989
        %v3092 = vmul.f32 %v2715, %v2993
        %v3093 = vmul.f32 %v2716, %v2997
        %v3094 = vmul.f32 %v2717, %v3001
        %v3095 = vmul.f32 %v2718, %v3005
        %v3096 = vmul.f32 %v2719, %v2937
        %v3097 = vmul.f32 %v2720, %v2941
        %v3098 = vmul.f32 %v2721, %v2945
        %v3099 = vmul.f32 %v2722, %v2949
        %v3100 = vmul.f32 %v2723, %v2953
        %v3101 = vmul.f32 %v2724, %v2957
        %v3102 = vmul.f32 %v2725, %v2961
        %v3103 = vmul.f32 %v2726, %v2965
        %v3104 = vmul.f32 %v2727, %v2969
        %v3105 = vmul.f32 %v2728, %v2973
        %v3106 = vmul.f32 %v2729, %v2977
        %v3107 = vmul.f32 %v2730, %v2981
        %v3108 = vmul.f32 %v2731, %v2985
        %v3109 = vmul.f32 %v2732, %v2989
        %v3110 = vmul.f32 %v2733, %v2993
        %v3111 = vmul.f32 %v2734, %v2997
        %v3112 = vmul.f32 %v2735, %v3001
        %v3113 = vmul.f32 %v2736, %v3005
        %v3114 = vmul.f32 %v2737, %v2937
        %v3115 = vmul.f32 %v2738, %v2941
        %v3116 = vmul.f32 %v2739, %v2945
        %v3117 = vmul.f32 %v2740, %v2949
        %v3118 = vmul.f32 %v2741, %v2953
        %v3119 = vmul.f32 %v2742, %v2957
        %v3120 = vmul.f32 %v2743, %v2961
        %v3121 = vmul.f32 %v2744, %v2965
        %v3122 = vmul.f32 %v2745, %v2969
        %v3123 = vmul.f32 %v2746, %v2973
        %v3124 = vmul.f32 %v2747, %v2977
        %v3125 = vmul.f32 %v2748, %v2981
        %v3126 = vmul.f32 %v2749, %v2985
        %v3127 = vmul.f32 %v2750, %v2989
        %v3128 = vmul.f32 %v2751, %v2993
        %v3129 = vmul.f32 %v2752, %v2997
        %v3130 = vmul.f32 %v2753, %v3001
        %v3131 = vmul.f32 %v2754, %v3005
        %v3132 = vmul.f32 %v2755, %v2937
        %v3133 = vmul.f32 %v2756, %v2941
        %v3134 = vmul.f32 %v2757, %v2945
        %v3135 = vmul.f32 %v2758, %v2949
        %v3136 = vmul.f32 %v2759, %v2953
        %v3137 = vmul.f32 %v2760, %v2957
        %v3138 = vmul.f32 %v2761, %v2961
        %v3139 = vmul.f32 %v2762, %v2965
        %v3140 = vmul.f32 %v2763, %v2969
        %v3141 = vmul.f32 %v2764, %v2973
        %v3142 = vmul.f32 %v2765, %v2977
        %v3143 = vmul.f32 %v2766, %v2981
        %v3144 = vmul.f32 %v2767, %v2985
        %v3145 = vmul.f32 %v2768, %v2989
        %v3146 = vmul.f32 %v2769, %v2993
        %v3147 = vmul.f32 %v2770, %v2997
        %v3148 = vmul.f32 %v2771, %v3001
        %v3149 = vmul.f32 %v2772, %v3005
        %v3150 = vmul.f32 %v2773, %v2937
        %v3151 = vmul.f32 %v2774, %v2941
        %v3152 = vmul.f32 %v2775, %v2945
        %v3153 = vmul.f32 %v2776, %v2949
        %v3154 = vmul.f32 %v2777, %v2953
        %v3155 = vmul.f32 %v2778, %v2957
        %v3156 = vmul.f32 %v2779, %v2961
        %v3157 = vmul.f32 %v2780, %v2965
        %v3158 = vmul.f32 %v2781, %v2969
        %v3159 = vmul.f32 %v2782, %v2973
        %v3160 = vmul.f32 %v2783, %v2977
        %v3161 = vmul.f32 %v2784, %v2981
        %v3162 = vmul.f32 %v2785, %v2985
        %v3163 = vmul.f32 %v2786, %v2989
        %v3164 = vmul.f32 %v2787, %v2993
        %v3165 = vmul.f32 %v2788, %v2997
        %v3166 = vmul.f32 %v2789, %v3001
        %v3167 = vmul.f32 %v2790, %v3005
        %v3168 = vadd.f32 %v3024, %v3025
        %v3169 = vadd.f32 %v3042, %v3043
        %v3170 = vadd.f32 %v3060, %v3061
        %v3171 = vadd.f32 %v3078, %v3079
        %v3172 = vadd.f32 %v3096, %v3097
        %v3173 = vadd.f32 %v3114, %v3115
        %v3174 = vadd.f32 %v3132, %v3133
        %v3175 = vadd.f32 %v3150, %v3151
        %v3176 = vadd.f32 %v3026, %v3027
        %v3177 = vadd.f32 %v3044, %v3045
        %v3178 = vadd.f32 %v3062, %v3063
        %v3179 = vadd.f32 %v3080, %v3081
        %v3180 = vadd.f32 %v3098, %v3099
        %v3181 = vadd.f32 %v3116, %v3117
        %v3182 = vadd.f32 %v3134, %v3135
        %v3183 = vadd.f32 %v3152, %v3153
        %v3184 = vadd.f32 %v3028, %v3029
        %v3185 = vadd.f32 %v3046, %v3047
        %v3186 = vadd.f32 %v3064, %v3065
        %v3187 = vadd.f32 %v3082, %v3083
        %v3188 = vadd.f32 %v3100, %v3101
        %v3189 = vadd.f32 %v3118, %v3119
        %v3190 = vadd.f32 %v3136, %v3137
        %v3191 = vadd.f32 %v3154, %v3155
        %v3192 = vadd.f32 %v3030, %v3031
        %v3193 = vadd.f32 %v3048, %v3049
        %v3194 = vadd.f32 %v3066, %v3067
        %v3195 = vadd.f32 %v3084, %v3085
        %v3196 = vadd.f32 %v3102, %v3103
        %v3197 = vadd.f32 %v3120, %v3121
        %v3198 = vadd.f32 %v3138, %v3139
        %v3199 = vadd.f32 %v3156, %v3157
        %v3200 = vadd.f32 %v3032, %v3033
        %v3201 = vadd.f32 %v3050, %v3051
        %v3202 = vadd.f32 %v3068, %v3069
        %v3203 = vadd.f32 %v3086, %v3087
        %v3204 = vadd.f32 %v3104, %v3105
        %v3205 = vadd.f32 %v3122, %v3123
        %v3206 = vadd.f32 %v3140, %v3141
        %v3207 = vadd.f32 %v3158, %v3159
        %v3208 = vadd.f32 %v3034, %v3035
        %v3209 = vadd.f32 %v3052, %v3053
        %v3210 = vadd.f32 %v3070, %v3071
        %v3211 = vadd.f32 %v3088, %v3089
        %v3212 = vadd.f32 %v3106, %v3107
        %v3213 = vadd.f32 %v3124, %v3125
        %v3214 = vadd.f32 %v3142, %v3143
        %v3215 = vadd.f32 %v3160, %v3161
        %v3216 = vadd.f32 %v3036, %v3037
        %v3217 = vadd.f32 %v3054, %v3055
        %v3218 = vadd.f32 %v3072, %v3073
        %v3219 = vadd.f32 %v3090, %v3091
        %v3220 = vadd.f32 %v3108, %v3109
        %v3221 = vadd.f32 %v3126, %v3127
        %v3222 = vadd.f32 %v3144, %v3145
        %v3223 = vadd.f32 %v3162, %v3163
        %v3224 = vadd.f32 %v3038, %v3039
        %v3225 = vadd.f32 %v3056, %v3057
        %v3226 = vadd.f32 %v3074, %v3075
        %v3227 = vadd.f32 %v3092, %v3093
        %v3228 = vadd.f32 %v3110, %v3111
        %v3229 = vadd.f32 %v3128, %v3129
        %v3230 = vadd.f32 %v3146, %v3147
        %v3231 = vadd.f32 %v3164, %v3165
        %v3232 = vadd.f32 %v3040, %v3041
        %v3233 = vadd.f32 %v3058, %v3059
        %v3234 = vadd.f32 %v3076, %v3077
        %v3235 = vadd.f32 %v3094, %v3095
        %v3236 = vadd.f32 %v3112, %v3113
        %v3237 = vadd.f32 %v3130, %v3131
        %v3238 = vadd.f32 %v3148, %v3149
        %v3239 = vadd.f32 %v3166, %v3167
        %v3240 = vadd.f32 %v3168, %v3176
        %v3241 = vadd.f32 %v3169, %v3177
        %v3242 = vadd.f32 %v3170, %v3178
        %v3243 = vadd.f32 %v3171, %v3179
        %v3244 = vadd.f32 %v3172, %v3180
        %v3245 = vadd.f32 %v3173, %v3181
        %v3246 = vadd.f32 %v3174, %v3182
        %v3247 = vadd.f32 %v3175, %v3183
        %v3248 = vadd.f32 %v3184, %v3192
        %v3249 = vadd.f32 %v3185, %v3193
        %v3250 = vadd.f32 %v3186, %v3194
        %v3251 = vadd.f32 %v3187, %v3195
        %v3252 = vadd.f32 %v3188, %v3196
        %v3253 = vadd.f32 %v3189, %v3197
        %v3254 = vadd.f32 %v3190, %v3198
        %v3255 = vadd.f32 %v3191, %v3199
        %v3256 = vadd.f32 %v3200, %v3208
        %v3257 = vadd.f32 %v3201, %v3209
        %v3258 = vadd.f32 %v3202, %v3210
        %v3259 = vadd.f32 %v3203, %v3211
        %v3260 = vadd.f32 %v3204, %v3212
        %v3261 = vadd.f32 %v3205, %v3213
        %v3262 = vadd.f32 %v3206, %v3214
        %v3263 = vadd.f32 %v3207, %v3215
        %v3264 = vadd.f32 %v3216, %v3224
        %v3265 = vadd.f32 %v3217, %v3225
        %v3266 = vadd.f32 %v3218, %v3226
        %v3267 = vadd.f32 %v3219, %v3227
        %v3268 = vadd.f32 %v3220, %v3228
        %v3269 = vadd.f32 %v3221, %v3229
        %v3270 = vadd.f32 %v3222, %v3230
        %v3271 = vadd.f32 %v3223, %v3231
        %v3272 = vadd.f32 %v3240, %v3248
        %v3273 = vadd.f32 %v3241, %v3249
        %v3274 = vadd.f32 %v3242, %v3250
        %v3275 = vadd.f32 %v3243, %v3251
        %v3276 = vadd.f32 %v3244, %v3252
        %v3277 = vadd.f32 %v3245, %v3253
        %v3278 = vadd.f32 %v3246, %v3254
        %v3279 = vadd.f32 %v3247, %v3255
        %v3280 = vadd.f32 %v3256, %v3264
        %v3281 = vadd.f32 %v3257, %v3265
        %v3282 = vadd.f32 %v3258, %v3266
        %v3283 = vadd.f32 %v3259, %v3267
        %v3284 = vadd.f32 %v3260, %v3268
        %v3285 = vadd.f32 %v3261, %v3269
        %v3286 = vadd.f32 %v3262, %v3270
        %v3287 = vadd.f32 %v3263, %v3271
        %v3288 = vadd.f32 %v3272, %v3280
        %v3289 = vadd.f32 %v3273, %v3281
        %v3290 = vadd.f32 %v3274, %v3282
        %v3291 = vadd.f32 %v3275, %v3283
        %v3292 = vadd.f32 %v3276, %v3284
        %v3293 = vadd.f32 %v3277, %v3285
        %v3294 = vadd.f32 %v3278, %v3286
        %v3295 = vadd.f32 %v3279, %v3287
        %v3296 = vadd.f32 %v3288, %v3232
        %v3297 = vadd.f32 %v3289, %v3233
        %v3298 = vadd.f32 %v3290, %v3234
        %v3299 = vadd.f32 %v3291, %v3235
        %v3300 = vadd.f32 %v3292, %v3236
        %v3301 = vadd.f32 %v3293, %v3237
        %v3302 = vadd.f32 %v3294, %v3238
        %v3303 = vadd.f32 %v3295, %v3239
        %3304 = vst [vmem:[%s312] sm:$0xff] %v3296
        %3305 = vst [vmem:[%s312 + $0x8] sm:$0xff] %v3297
        %3306 = vst [vmem:[%s312 + $0x10] sm:$0xff] %v3298
        %3307 = vst [vmem:[%s312 + $0x18] sm:$0xff] %v3299
        %3308 = vst [vmem:[%s312 + $0x20] sm:$0xff] %v3300
        %3309 = vst [vmem:[%s312 + $0x28] sm:$0xff] %v3301
        %3310 = vst [vmem:[%s312 + $0x30] sm:$0xff] %v3302
        %3311 = vst [vmem:[%s312 + $0x38] sm:$0xff] %v3303
        %s3312 = sand.u32 %s170, 1
        %s3313 = scalar_lea.sflag [#allocation4], %s3312
        %s3314 = sand.u32 %s170, 1
        %s3315 = smul.addr %s3314, 64
        %s3316 = scalar_lea.vmem [#allocation7], %s3315
        // Predicated region
        $region49: #{tpu_custom_call.1} parent=39 // pred_check
          %p3317 = pneg %p180
        $region50: #{tpu_custom_call.1} parent=39 // pred_check_branch
          %3319 = sbr.rel (%p3317) target = $region52
        $region51: #{tpu_custom_call.1} parent=39 // pred_region
          %s3321 = ssub.s32 1024, 1024
          %3322 = vsyncadd %s3313, %s3321
          %s3323 = smul.addr %s30, 8
          %s3324 = smul.addr %s29, 8
          %s3325 = sadd.s32 %s3323, %s3324
          %s3326 = smul.addr %s3325, 128
          %s3327 = scalar_lea.hbm %s5, %s3326
          %s3328 = sshll.u32 %s3316, 4
          %s3329 = int_to_ptr.vmem [resolvable:$true] %s3328
          %3334 = dma.vmem_to_hbm [thread:$0]  %s3329, 1024, %s3327, %s3313, 128, 128, 8
        $region52: #{tpu_custom_call.1} parent=39 // pred_fallthru
          _
      $region40: #{tpu_custom_call.1} parent=5 // pred_fallthru
        _
      %p3335 = scmp.le.s32.totalorder 2, %s20
      // Predicated region
      $region53: #{tpu_custom_call.1} parent=5 // pred_check
        %p3336 = pneg %p3335
      $region54: #{tpu_custom_call.1} parent=5 // pred_check_branch
        %3338 = sbr.rel (%p3336) target = $region56
      $region55: #{tpu_custom_call.1} parent=5 // pred_region
        %s3339 = ssub.s32 %s20, 2
        // Predicated region
        $region57: #{tpu_custom_call.1} parent=55 // pred_check
          %p3340 = pneg %p186
        $region58: #{tpu_custom_call.1} parent=55 // pred_check_branch
          %3342 = sbr.rel (%p3340) target = $region60
        $region59: #{tpu_custom_call.1} parent=55 // pred_region
          %s3343 = sand.u32 %s171, 1
          %s3344 = scalar_lea.sflag [#allocation4], %s3343
          %s3345 = sand.u32 %s171, 1
          %s3346 = smul.addr %s3345, 64
          %s3347 = scalar_lea.vmem [#allocation7], %s3346
          %3348 = dma.done %s3344, 1024
        $region60: #{tpu_custom_call.1} parent=55 // pred_fallthru
          _
      $region56: #{tpu_custom_call.1} parent=5 // pred_fallthru
        _
    $region6: #{tpu_custom_call.1} parent=1 // loop_footer
      %s24 = sadd.s32 1, %s20
    $region7: #{tpu_custom_call.1} parent=1 // loop_footer_branch
      %19 = sbr.rel target = $region3
    $region8: #{tpu_custom_call.1} parent=1 // loop_exit
      _
    %3349 = vsyncpa [#allocation3], 1
    %s3350 = scalar_lea.sflag [#allocation3], 1
    %3351 = vsyncpa %s3350, 1
    %3352 = vsyncpa [#allocation6], 1
    %s3353 = scalar_lea.sflag [#allocation6], 1
    %3354 = vsyncpa %s3353, 1
    %3355 = vsyncpa [#allocation4], 1
    %s3356 = scalar_lea.sflag [#allocation4], 1
    %3357 = vsyncpa %s3356, 1

</llo_original>
